<compile_context>
chip_gen: v7x
topology: tpu7x:2x2x1
jax: 0.10.0
libtpu: 0.0.40
codegen_flags: <defaults>
</compile_context>

<pallas_src>
import functools

import jax
import jax.numpy as jnp
from jax.experimental import pallas as pl
from jax.experimental.pallas import tpu as pltpu


_K1 = 3 * 3 * 6     # layer-1 im2col K
_K1P = 64           # padded to a sublane-friendly size


def _round_up(x, m):
    return ((x + m - 1) // m) * m


# -----------------------------------------------------------------------------
# Fused forward kernel: one grid step per batch element.
# -----------------------------------------------------------------------------
def _disc_kernel(p1_ref, w1_ref, w2_ref, w3_ref, w4_ref, epi_ref, o_ref,
                 pf_ref, x2_ref, x3_ref, *, q, h1, h2, h3, h4):
    # p1_ref : (1, h1*h1, K1P) bf16  layer-1 im2col patches, parity-ordered rows
    # w1_ref : (K1P, 64)       bf16
    # w2_ref : (9, 64, 128)    bf16  per-(ky,kx) matrices
    # w3_ref : (9, 128, 256)   bf16
    # w4_ref : (9, 256)        f32   per-(ky,kx) vectors (Cout = 1)
    # epi_ref: (8, 256)        f32   rows: b1, b2, s2, t2, b3, s3, t3, b4
    # o_ref  : (1, h4*h4, 1)   f32
    # pf_ref : (4, PF, 64)     f32   phase-split, zero-padded layer-1 activation
    # x2_ref : (X2, 128)       f32   flat (h2 x q) layer-2 activation (+ zero tail)
    # x3_ref : (X3, 256)       f32   flat (h3 x q) layer-3 activation (+ zero tail)
    f32 = jnp.float32

    def leaky(v):
        return jnp.where(v >= 0, v, f32(0.01) * v)

    # Zero-init flat activation scratches: the zero rows double as layer 2's
    # spatial padding ring and as the finite tail rows touched by the
    # "extended output" slices of layers 3/4.
    pf_ref[...] = jnp.zeros_like(pf_ref)
    x2_ref[...] = jnp.zeros_like(x2_ref)
    x3_ref[...] = jnp.zeros_like(x3_ref)

    # ---- layer 1: Conv(6->64, k3, s2, p1) + bias + LeakyReLU (no BN) --------
    a1 = jnp.dot(p1_ref[0], w1_ref[...], preferred_element_type=f32)   # (h1*h1, 64)
    a1 = leaky(a1 + epi_ref[0:1, 0:64])

    # Scatter the four parity blocks into the zero-padded phase images
    # (q x q flat per phase), turning layer 2's stride-2 windows into
    # contiguous row slices.
    hh = h1 // 2
    for ph in range(2):
        for pw in range(2):
            base = (ph * 2 + pw) * hh * hh
            blk = a1[base:base + hh * hh, :]                   # rows (a, b) row-major
            rh, rw = 1 - ph, 1 - pw
            for a in range(hh):
                dst = (a + rh) * q + rw
                pf_ref[ph * 2 + pw, dst:dst + hh, :] = blk[a * hh:(a + 1) * hh, :]

    # ---- layer 2: Conv(64->128, k3, s2, p1) + bias + LeakyReLU + BN ----------
    acc2 = jnp.zeros((h2 * q, 128), f32)
    for ky in range(3):
        for kx in range(3):
            s = (ky // 2) * q + (kx // 2)
            lhs = pf_ref[(ky % 2) * 2 + (kx % 2), s:s + h2 * q, :].astype(jnp.bfloat16)
            acc2 = acc2 + jnp.dot(lhs, w2_ref[ky * 3 + kx],
                                  preferred_element_type=f32)
    acc2 = leaky(acc2 + epi_ref[1:2, 0:128])
    acc2 = acc2 * epi_ref[2:3, 0:128] + epi_ref[3:4, 0:128]
    x2_ref[0:h2 * q, :] = acc2        # flat (h2, q); col q-1 of each row is junk

    # ---- layer 3: Conv(128->256, k3, s1) + bias + LeakyReLU + BN -------------
    # TODO(synk): F.dropout2d (training=True) is stochastic; identity here.
    acc3 = jnp.zeros((h3 * q, 256), f32)
    for ky in range(3):
        for kx in range(3):
            lhs = x2_ref[ky * q + kx: ky * q + kx + h3 * q, :].astype(jnp.bfloat16)
            acc3 = acc3 + jnp.dot(lhs, w3_ref[ky * 3 + kx],
                                  preferred_element_type=f32)
    acc3 = leaky(acc3 + epi_ref[4:5, :])
    acc3 = acc3 * epi_ref[5:6, :] + epi_ref[6:7, :]
    x3_ref[0:h3 * q, :] = acc3

    # ---- layer 4: Conv(256->1, k3, s1) + sigmoid, as a VPU/XLU reduction -----
    acc4 = jnp.zeros((h4 * q, 256), f32)
    for ky in range(3):
        for kx in range(3):
            acc4 = acc4 + (x3_ref[ky * q + kx: ky * q + kx + h4 * q, :]
                           * w4_ref[ky * 3 + kx:ky * 3 + kx + 1, :])
    y = jnp.sum(acc4, axis=-1, keepdims=True) + epi_ref[7:8, 0:1]      # (h4*q, 1)
    y = pl.reciprocal(1.0 + jnp.exp(-y))                               # exact sigmoid
    for oy in range(h4):
        o_ref[0, oy * h4:(oy + 1) * h4, :] = y[oy * q:oy * q + h4, :]


def _build_pallas_forward(n, h, w, k1p):
    assert h == w and h % 4 == 0 and h >= 12, (h, w)
    h1 = h // 2            # after down1 (k3, s2, p1)
    h2 = h1 // 2           # after down2 (k3, s2, p1)
    h3 = h2 - 2            # after cov1  (k3, s1)
    h4 = h3 - 2            # after last  (k3, s1)
    q = h1 // 2 + 1        # side of the padded phase grid for layer 2
    m1 = h1 * h1

    pf_rows = _round_up((h2 + 1) * q + 1, 8)
    x2_rows = _round_up((h3 + 2) * q + 2, 8)
    x3_rows = _round_up((h4 + 2) * q + 2, 8)

    kernel = functools.partial(_disc_kernel, q=q, h1=h1, h2=h2, h3=h3, h4=h4)

    return pl.pallas_call(
        kernel,
        out_shape=jax.ShapeDtypeStruct((n, h4 * h4, 1), jnp.float32),
        grid=(n,),
        in_specs=[
            pl.BlockSpec((1, m1, k1p), lambda i: (i, 0, 0)),   # layer-1 patches
            pl.BlockSpec((k1p, 64), lambda i: (0, 0)),         # W1 (resident)
            pl.BlockSpec((9, 64, 128), lambda i: (0, 0, 0)),   # W2 (resident)
            pl.BlockSpec((9, 128, 256), lambda i: (0, 0, 0)),  # W3 (resident)
            pl.BlockSpec((9, 256), lambda i: (0, 0)),          # W4 vectors
            pl.BlockSpec((8, 256), lambda i: (0, 0)),          # packed bias/BN
        ],
        out_specs=pl.BlockSpec((1, h4 * h4, 1), lambda i: (i, 0, 0)),
        scratch_shapes=[
            pltpu.VMEM((4, pf_rows, 64), jnp.float32),   # phase-split layer-1 act
            pltpu.VMEM((x2_rows, 128), jnp.float32),     # flat layer-2 act
            pltpu.VMEM((x3_rows, 256), jnp.float32),     # flat layer-3 act
        ],
        compiler_params=pltpu.CompilerParams(
            dimension_semantics=("parallel",),   # one image / grid step -> both TCs on v7x
        ),
    )


# -----------------------------------------------------------------------------
# Forward wrapper (XLA glue only for the raw-input im2col of layer 1).
# -----------------------------------------------------------------------------
def discriminator_forward(img_nchw, mask_nchw, packed):
    n, _, h, w = img_nchw.shape
    k1p = packed['w1'].shape[0]

    x = jnp.concatenate([img_nchw, mask_nchw], axis=1)          # (N, 6, H, W)
    x = jnp.transpose(x, (0, 2, 3, 1))                          # NHWC
    x = jnp.pad(x, ((0, 0), (1, 1), (1, 1), (0, 0)))            # pad=1 for down1

    h1 = h // 2
    # im2col for layer 1 only (k=3, s=2); deeper layers build their windows
    # inside the kernel from VMEM-resident activations.
    cols = []
    for ky in range(3):
        for kx in range(3):
            cols.append(x[:, ky:ky + 2 * h1:2, kx:kx + 2 * h1:2, :])
    patches = jnp.concatenate(cols, axis=-1)                    # (N, h1, h1, 54)

    # Reorder rows into the four (row-parity, col-parity) blocks the kernel
    # expects, so layer 2's stride-2 windows become contiguous slices.
    blocks = []
    for ph in range(2):
        for pw in range(2):
            blk = patches[:, 1 - ph::2, 1 - pw::2, :]           # (N, h1/2, h1/2, 54)
            blocks.append(blk.reshape(n, (h1 // 2) ** 2, _K1))
    p1 = jnp.concatenate(blocks, axis=1)                        # (N, h1*h1, 54)
    p1 = jnp.pad(p1, ((0, 0), (0, 0), (0, k1p - _K1))).astype(jnp.bfloat16)

    call = _build_pallas_forward(n, h, w, k1p)
    out = call(p1, packed['w1'], packed['w2'], packed['w3'], packed['w4'],
               packed['epi'])                                    # (N, h4*h4, 1)
    h4 = h // 4 - 4
    return out.reshape(n, 1, h4, h4)                             # NCHW output


# -----------------------------------------------------------------------------
# Parameter construction / one-time packing into kernel layout.
# -----------------------------------------------------------------------------
def _bn_affine(gamma, beta, running_mean, running_var, eps=1e-5):
    scale = gamma / jnp.sqrt(running_var + eps)
    shift = beta - running_mean * scale
    return scale.astype(jnp.float32), shift.astype(jnp.float32)


def make_params(key):
    ks = jax.random.split(key, 16)

    def conv_params(kw_key, kb_key, cout, cin, k):
        w = 0.05 * jax.random.normal(kw_key, (cout, cin, k, k), jnp.float32)
        b = 0.02 * jax.random.normal(kb_key, (cout,), jnp.float32)
        return w, b

    def bn_params(kg, kb, km, kv, c):
        gamma = 1.0 + 0.1 * jax.random.normal(kg, (c,), jnp.float32)
        beta = 0.05 * jax.random.normal(kb, (c,), jnp.float32)
        mean = 0.05 * jax.random.normal(km, (c,), jnp.float32)
        var = 1.0 + 0.1 * jax.random.uniform(kv, (c,), jnp.float32)
        return _bn_affine(gamma, beta, mean, var)

    p = {}
    p['w1'], p['b1'] = conv_params(ks[0], ks[1], 64, 6, 3)      # down1 conv
    p['w2'], p['b2'] = conv_params(ks[2], ks[3], 128, 64, 3)    # down2 conv
    p['bn2_scale'], p['bn2_shift'] = bn_params(ks[4], ks[5], ks[6], ks[7], 128)
    p['w3'], p['b3'] = conv_params(ks[8], ks[9], 256, 128, 3)   # cov1
    p['bn3_scale'], p['bn3_shift'] = bn_params(ks[10], ks[11], ks[12], ks[13], 256)
    p['w4'], p['b4'] = conv_params(ks[14], ks[15], 1, 256, 3)   # last
    return p


def pack_params(p):
    """One-time repack of PyTorch-layout params into the kernel layout."""
    w1 = jnp.transpose(p['w1'], (2, 3, 1, 0)).reshape(_K1, 64)
    w1 = jnp.pad(w1, ((0, _K1P - _K1), (0, 0))).astype(jnp.bfloat16)           # (64, 64)
    w2 = jnp.transpose(p['w2'], (2, 3, 1, 0)).reshape(9, 64, 128).astype(jnp.bfloat16)
    w3 = jnp.transpose(p['w3'], (2, 3, 1, 0)).reshape(9, 128, 256).astype(jnp.bfloat16)
    w4 = jnp.transpose(p['w4'], (2, 3, 1, 0)).reshape(9, 256).astype(jnp.float32)

    epi = jnp.zeros((8, 256), jnp.float32)
    epi = epi.at[0, :64].set(p['b1'])
    epi = epi.at[1, :128].set(p['b2'])
    epi = epi.at[2, :128].set(p['bn2_scale'])
    epi = epi.at[3, :128].set(p['bn2_shift'])
    epi = epi.at[4, :].set(p['b3'])
    epi = epi.at[5, :].set(p['bn3_scale'])
    epi = epi.at[6, :].set(p['bn3_shift'])
    epi = epi.at[7, 0].set(p['b4'][0])
    return {'w1': w1, 'w2': w2, 'w3': w3, 'w4': w4, 'epi': epi}


# -----------------------------------------------------------------------------
# Pure-JAX reference (f32) for a correctness cross-check.
# -----------------------------------------------------------------------------
def _reference_forward(img, mask, p):
    def conv(x, w, b, stride, pad):
        y = jax.lax.conv_general_dilated(
            x, w, (stride, stride), [(pad, pad), (pad, pad)],
            dimension_numbers=('NCHW', 'OIHW', 'NCHW'),
            precision=jax.lax.Precision.HIGHEST)
        return y + b.reshape(1, -1, 1, 1)

    def lrelu(v):
        return jnp.where(v >= 0, v, 0.01 * v)

    def affine(v, s, t):
        return v * s.reshape(1, -1, 1, 1) + t.reshape(1, -1, 1, 1)

    x = jnp.concatenate([img, mask], axis=1)
    x = lrelu(conv(x, p['w1'], p['b1'], 2, 1))
    x = affine(lrelu(conv(x, p['w2'], p['b2'], 2, 1)), p['bn2_scale'], p['bn2_shift'])
    x = affine(lrelu(conv(x, p['w3'], p['b3'], 1, 0)), p['bn3_scale'], p['bn3_shift'])
    x = conv(x, p['w4'], p['b4'], 1, 0)
    return jax.nn.sigmoid(x)


if __name__ == "__main__":
    key = jax.random.PRNGKey(0)
    k_img, k_mask, k_params = jax.random.split(key, 3)

    N, C, H, W = 2, 3, 32, 32   # img/mask each 3 channels -> concat gives 6
    img = jax.random.normal(k_img, (N, C, H, W), jnp.float32)
    mask = jax.random.normal(k_mask, (N, C, H, W), jnp.float32)

    params = make_params(k_params)
    packed = pack_params(params)     # one-time weight repack (like module init)

    fwd = jax.jit(discriminator_forward)
    out = jax.block_until_ready(fwd(img, mask, packed))

    # 32 -> 16 (down1) -> 8 (down2) -> 6 (cov1) -> 4 (last); 1 output channel.
    assert out.shape == (N, 1, 4, 4), out.shape
    assert bool(jnp.all(jnp.isfinite(out)))
    assert bool(jnp.all(out > 0.0)) and bool(jnp.all(out < 1.0))

    ref = _reference_forward(img, mask, params)
    max_err = float(jnp.max(jnp.abs(out - ref)))
    assert max_err < 2e-2, max_err   # bf16 MXU operands vs f32 reference

    print("KERNEL_OK")
</pallas_src>

<mosaic_0001>
module attributes {stable_mosaic.version = 11 : i64} {
  func.func @_disc_kernel(%arg0: i32, %arg1: memref<1x256x64xbf16, #tpu.memory_space<vmem>>, %arg2: memref<64x64xbf16, #tpu.memory_space<vmem>>, %arg3: memref<9x64x128xbf16, #tpu.memory_space<vmem>>, %arg4: memref<9x128x256xbf16, #tpu.memory_space<vmem>>, %arg5: memref<9x256xf32, #tpu.memory_space<vmem>>, %arg6: memref<8x256xf32, #tpu.memory_space<vmem>>, %arg7: memref<1x16x1xf32, #tpu.memory_space<vmem>>, %arg8: memref<4x88x64xf32, #tpu.memory_space<vmem>>, %arg9: memref<80x128xf32, #tpu.memory_space<vmem>>, %arg10: memref<56x256xf32, #tpu.memory_space<vmem>>) attributes {dimension_semantics = [#tpu.dimension_semantics<parallel>], iteration_bounds = array<i64: 2>, scalar_prefetch = 0 : i64, scratch_operands = 3 : i64, tpu.core_type = #tpu.core_type<tc>, window_params = [{transform_indices = @transform_0, window_bounds = array<i64: 1, 256, 64>}, {pipeline_mode = #tpu.pipeline_mode<synchronous>, transform_indices = @transform_1, window_bounds = array<i64: 64, 64>}, {pipeline_mode = #tpu.pipeline_mode<synchronous>, transform_indices = @transform_2, window_bounds = array<i64: 9, 64, 128>}, {pipeline_mode = #tpu.pipeline_mode<synchronous>, transform_indices = @transform_3, window_bounds = array<i64: 9, 128, 256>}, {pipeline_mode = #tpu.pipeline_mode<synchronous>, transform_indices = @transform_4, window_bounds = array<i64: 9, 256>}, {pipeline_mode = #tpu.pipeline_mode<synchronous>, transform_indices = @transform_5, window_bounds = array<i64: 8, 256>}, {transform_indices = @transform_6, window_bounds = array<i64: 1, 16, 1>}]} {
    %cst = arith.constant 0.000000e+00 : f32
    %0 = vector.broadcast %cst : f32 to vector<4x88x64xf32>
    %c0 = arith.constant 0 : index
    %c0_0 = arith.constant 0 : index
    %c0_1 = arith.constant 0 : index
    %1 = vector.load %arg8[%c0, %c0_0, %c0_1] : memref<4x88x64xf32, #tpu.memory_space<vmem>>, vector<4x88x64xf32>
    tpu.vector_store %arg8[%c0, %c0_0, %c0_1], %0 {strides = array<i32>} : memref<4x88x64xf32, #tpu.memory_space<vmem>>, vector<4x88x64xf32>,
    %cst_2 = arith.constant 0.000000e+00 : f32
    %2 = vector.broadcast %cst_2 : f32 to vector<80x128xf32>
    %c0_3 = arith.constant 0 : index
    %c0_4 = arith.constant 0 : index
    %3 = vector.load %arg9[%c0_3, %c0_4] : memref<80x128xf32, #tpu.memory_space<vmem>>, vector<80x128xf32>
    tpu.vector_store %arg9[%c0_3, %c0_4], %2 {strides = array<i32>} : memref<80x128xf32, #tpu.memory_space<vmem>>, vector<80x128xf32>,
    %cst_5 = arith.constant 0.000000e+00 : f32
    %4 = vector.broadcast %cst_5 : f32 to vector<56x256xf32>
    %c0_6 = arith.constant 0 : index
    %c0_7 = arith.constant 0 : index
    %5 = vector.load %arg10[%c0_6, %c0_7] : memref<56x256xf32, #tpu.memory_space<vmem>>, vector<56x256xf32>
    tpu.vector_store %arg10[%c0_6, %c0_7], %4 {strides = array<i32>} : memref<56x256xf32, #tpu.memory_space<vmem>>, vector<56x256xf32>,
    %c0_8 = arith.constant 0 : index
    %c0_9 = arith.constant 0 : index
    %c0_10 = arith.constant 0 : index
    %6 = vector.load %arg1[%c0_8, %c0_9, %c0_10] : memref<1x256x64xbf16, #tpu.memory_space<vmem>>, vector<1x256x64xbf16>
    %7 = vector.shape_cast %6 : vector<1x256x64xbf16> to vector<256x64xbf16>
    %c0_11 = arith.constant 0 : index
    %c0_12 = arith.constant 0 : index
    %8 = vector.load %arg2[%c0_11, %c0_12] : memref<64x64xbf16, #tpu.memory_space<vmem>>, vector<64x64xbf16>
    %cst_13 = arith.constant dense<0.000000e+00> : vector<256x64xf32>
    %9 = tpu.matmul %7, %8, %cst_13 {dimension_numbers = #tpu.dot_dimension_numbers<[1], [0], [0], [1], [0, 0, 1, 1], [], []>} : vector<256x64xbf16>, vector<64x64xbf16>, vector<256x64xf32> -> vector<256x64xf32>
    %c0_14 = arith.constant 0 : index
    %c0_15 = arith.constant 0 : index
    %10 = vector.load %arg6[%c0_14, %c0_15] : memref<8x256xf32, #tpu.memory_space<vmem>>, vector<1x64xf32>
    %11 = vector.broadcast %10 : vector<1x64xf32> to vector<256x64xf32>
    %12 = arith.addf %9, %11 : vector<256x64xf32>
    %cst_16 = arith.constant 0.000000e+00 : f32
    %13 = vector.broadcast %cst_16 : f32 to vector<256x64xf32>
    %14 = arith.cmpf oge, %12, %13 : vector<256x64xf32>
    %cst_17 = arith.constant 0.00999999977 : f32
    %15 = vector.broadcast %cst_17 : f32 to vector<256x64xf32>
    %16 = arith.mulf %15, %12 : vector<256x64xf32>
    %17 = arith.select %14, %12, %16 : vector<256x64xi1>, vector<256x64xf32>
    %18 = vector.extract_strided_slice %17 {offsets = [0, 0], sizes = [64, 64], strides = [1, 1]} : vector<256x64xf32> to vector<64x64xf32>
    %19 = vector.extract_strided_slice %18 {offsets = [0, 0], sizes = [8, 64], strides = [1, 1]} : vector<64x64xf32> to vector<8x64xf32>
    %c0_18 = arith.constant 0 : index
    %c10 = arith.constant 10 : index
    %c0_19 = arith.constant 0 : index
    %20 = vector.load %arg8[%c0_18, %c10, %c0_19] : memref<4x88x64xf32, #tpu.memory_space<vmem>>, vector<1x8x64xf32>
    %21 = vector.shape_cast %20 : vector<1x8x64xf32> to vector<8x64xf32>
    %22 = vector.shape_cast %19 : vector<8x64xf32> to vector<1x8x64xf32>
    tpu.vector_store %arg8[%c0_18, %c10, %c0_19], %22 {strides = array<i32>} : memref<4x88x64xf32, #tpu.memory_space<vmem>>, vector<1x8x64xf32>,
    %23 = vector.extract_strided_slice %18 {offsets = [8, 0], sizes = [8, 64], strides = [1, 1]} : vector<64x64xf32> to vector<8x64xf32>
    %c0_20 = arith.constant 0 : index
    %c19 = arith.constant 19 : index
    %c0_21 = arith.constant 0 : index
    %24 = vector.load %arg8[%c0_20, %c19, %c0_21] : memref<4x88x64xf32, #tpu.memory_space<vmem>>, vector<1x8x64xf32>
    %25 = vector.shape_cast %24 : vector<1x8x64xf32> to vector<8x64xf32>
    %26 = vector.shape_cast %23 : vector<8x64xf32> to vector<1x8x64xf32>
    tpu.vector_store %arg8[%c0_20, %c19, %c0_21], %26 {strides = array<i32>} : memref<4x88x64xf32, #tpu.memory_space<vmem>>, vector<1x8x64xf32>,
    %27 = vector.extract_strided_slice %18 {offsets = [16, 0], sizes = [8, 64], strides = [1, 1]} : vector<64x64xf32> to vector<8x64xf32>
    %c0_22 = arith.constant 0 : index
    %c28 = arith.constant 28 : index
    %c0_23 = arith.constant 0 : index
    %28 = vector.load %arg8[%c0_22, %c28, %c0_23] : memref<4x88x64xf32, #tpu.memory_space<vmem>>, vector<1x8x64xf32>
    %29 = vector.shape_cast %28 : vector<1x8x64xf32> to vector<8x64xf32>
    %30 = vector.shape_cast %27 : vector<8x64xf32> to vector<1x8x64xf32>
    tpu.vector_store %arg8[%c0_22, %c28, %c0_23], %30 {strides = array<i32>} : memref<4x88x64xf32, #tpu.memory_space<vmem>>, vector<1x8x64xf32>,
    %31 = vector.extract_strided_slice %18 {offsets = [24, 0], sizes = [8, 64], strides = [1, 1]} : vector<64x64xf32> to vector<8x64xf32>
    %c0_24 = arith.constant 0 : index
    %c37 = arith.constant 37 : index
    %c0_25 = arith.constant 0 : index
    %32 = vector.load %arg8[%c0_24, %c37, %c0_25] : memref<4x88x64xf32, #tpu.memory_space<vmem>>, vector<1x8x64xf32>
    %33 = vector.shape_cast %32 : vector<1x8x64xf32> to vector<8x64xf32>
    %34 = vector.shape_cast %31 : vector<8x64xf32> to vector<1x8x64xf32>
    tpu.vector_store %arg8[%c0_24, %c37, %c0_25], %34 {strides = array<i32>} : memref<4x88x64xf32, #tpu.memory_space<vmem>>, vector<1x8x64xf32>,
    %35 = vector.extract_strided_slice %18 {offsets = [32, 0], sizes = [8, 64], strides = [1, 1]} : vector<64x64xf32> to vector<8x64xf32>
    %c0_26 = arith.constant 0 : index
    %c46 = arith.constant 46 : index
    %c0_27 = arith.constant 0 : index
    %36 = vector.load %arg8[%c0_26, %c46, %c0_27] : memref<4x88x64xf32, #tpu.memory_space<vmem>>, vector<1x8x64xf32>
    %37 = vector.shape_cast %36 : vector<1x8x64xf32> to vector<8x64xf32>
    %38 = vector.shape_cast %35 : vector<8x64xf32> to vector<1x8x64xf32>
    tpu.vector_store %arg8[%c0_26, %c46, %c0_27], %38 {strides = array<i32>} : memref<4x88x64xf32, #tpu.memory_space<vmem>>, vector<1x8x64xf32>,
    %39 = vector.extract_strided_slice %18 {offsets = [40, 0], sizes = [8, 64], strides = [1, 1]} : vector<64x64xf32> to vector<8x64xf32>
    %c0_28 = arith.constant 0 : index
    %c55 = arith.constant 55 : index
    %c0_29 = arith.constant 0 : index
    %40 = vector.load %arg8[%c0_28, %c55, %c0_29] : memref<4x88x64xf32, #tpu.memory_space<vmem>>, vector<1x8x64xf32>
    %41 = vector.shape_cast %40 : vector<1x8x64xf32> to vector<8x64xf32>
    %42 = vector.shape_cast %39 : vector<8x64xf32> to vector<1x8x64xf32>
    tpu.vector_store %arg8[%c0_28, %c55, %c0_29], %42 {strides = array<i32>} : memref<4x88x64xf32, #tpu.memory_space<vmem>>, vector<1x8x64xf32>,
    %43 = vector.extract_strided_slice %18 {offsets = [48, 0], sizes = [8, 64], strides = [1, 1]} : vector<64x64xf32> to vector<8x64xf32>
    %c0_30 = arith.constant 0 : index
    %c64 = arith.constant 64 : index
    %c0_31 = arith.constant 0 : index
    %44 = vector.load %arg8[%c0_30, %c64, %c0_31] : memref<4x88x64xf32, #tpu.memory_space<vmem>>, vector<1x8x64xf32>
    %45 = vector.shape_cast %44 : vector<1x8x64xf32> to vector<8x64xf32>
    %46 = vector.shape_cast %43 : vector<8x64xf32> to vector<1x8x64xf32>
    tpu.vector_store %arg8[%c0_30, %c64, %c0_31], %46 {strides = array<i32>} : memref<4x88x64xf32, #tpu.memory_space<vmem>>, vector<1x8x64xf32>,
    %47 = vector.extract_strided_slice %18 {offsets = [56, 0], sizes = [8, 64], strides = [1, 1]} : vector<64x64xf32> to vector<8x64xf32>
    %c0_32 = arith.constant 0 : index
    %c73 = arith.constant 73 : index
    %c0_33 = arith.constant 0 : index
    %48 = vector.load %arg8[%c0_32, %c73, %c0_33] : memref<4x88x64xf32, #tpu.memory_space<vmem>>, vector<1x8x64xf32>
    %49 = vector.shape_cast %48 : vector<1x8x64xf32> to vector<8x64xf32>
    %50 = vector.shape_cast %47 : vector<8x64xf32> to vector<1x8x64xf32>
    tpu.vector_store %arg8[%c0_32, %c73, %c0_33], %50 {strides = array<i32>} : memref<4x88x64xf32, #tpu.memory_space<vmem>>, vector<1x8x64xf32>,
    %51 = vector.extract_strided_slice %17 {offsets = [64, 0], sizes = [64, 64], strides = [1, 1]} : vector<256x64xf32> to vector<64x64xf32>
    %52 = vector.extract_strided_slice %51 {offsets = [0, 0], sizes = [8, 64], strides = [1, 1]} : vector<64x64xf32> to vector<8x64xf32>
    %c1 = arith.constant 1 : index
    %c9 = arith.constant 9 : index
    %c0_34 = arith.constant 0 : index
    %53 = vector.load %arg8[%c1, %c9, %c0_34] : memref<4x88x64xf32, #tpu.memory_space<vmem>>, vector<1x8x64xf32>
    %54 = vector.shape_cast %53 : vector<1x8x64xf32> to vector<8x64xf32>
    %55 = vector.shape_cast %52 : vector<8x64xf32> to vector<1x8x64xf32>
    tpu.vector_store %arg8[%c1, %c9, %c0_34], %55 {strides = array<i32>} : memref<4x88x64xf32, #tpu.memory_space<vmem>>, vector<1x8x64xf32>,
    %56 = vector.extract_strided_slice %51 {offsets = [8, 0], sizes = [8, 64], strides = [1, 1]} : vector<64x64xf32> to vector<8x64xf32>
    %c1_35 = arith.constant 1 : index
    %c18 = arith.constant 18 : index
    %c0_36 = arith.constant 0 : index
    %57 = vector.load %arg8[%c1_35, %c18, %c0_36] : memref<4x88x64xf32, #tpu.memory_space<vmem>>, vector<1x8x64xf32>
    %58 = vector.shape_cast %57 : vector<1x8x64xf32> to vector<8x64xf32>
    %59 = vector.shape_cast %56 : vector<8x64xf32> to vector<1x8x64xf32>
    tpu.vector_store %arg8[%c1_35, %c18, %c0_36], %59 {strides = array<i32>} : memref<4x88x64xf32, #tpu.memory_space<vmem>>, vector<1x8x64xf32>,
    %60 = vector.extract_strided_slice %51 {offsets = [16, 0], sizes = [8, 64], strides = [1, 1]} : vector<64x64xf32> to vector<8x64xf32>
    %c1_37 = arith.constant 1 : index
    %c27 = arith.constant 27 : index
    %c0_38 = arith.constant 0 : index
    %61 = vector.load %arg8[%c1_37, %c27, %c0_38] : memref<4x88x64xf32, #tpu.memory_space<vmem>>, vector<1x8x64xf32>
    %62 = vector.shape_cast %61 : vector<1x8x64xf32> to vector<8x64xf32>
    %63 = vector.shape_cast %60 : vector<8x64xf32> to vector<1x8x64xf32>
    tpu.vector_store %arg8[%c1_37, %c27, %c0_38], %63 {strides = array<i32>} : memref<4x88x64xf32, #tpu.memory_space<vmem>>, vector<1x8x64xf32>,
    %64 = vector.extract_strided_slice %51 {offsets = [24, 0], sizes = [8, 64], strides = [1, 1]} : vector<64x64xf32> to vector<8x64xf32>
    %c1_39 = arith.constant 1 : index
    %c36 = arith.constant 36 : index
    %c0_40 = arith.constant 0 : index
    %65 = vector.load %arg8[%c1_39, %c36, %c0_40] : memref<4x88x64xf32, #tpu.memory_space<vmem>>, vector<1x8x64xf32>
    %66 = vector.shape_cast %65 : vector<1x8x64xf32> to vector<8x64xf32>
    %67 = vector.shape_cast %64 : vector<8x64xf32> to vector<1x8x64xf32>
    tpu.vector_store %arg8[%c1_39, %c36, %c0_40], %67 {strides = array<i32>} : memref<4x88x64xf32, #tpu.memory_space<vmem>>, vector<1x8x64xf32>,
    %68 = vector.extract_strided_slice %51 {offsets = [32, 0], sizes = [8, 64], strides = [1, 1]} : vector<64x64xf32> to vector<8x64xf32>
    %c1_41 = arith.constant 1 : index
    %c45 = arith.constant 45 : index
    %c0_42 = arith.constant 0 : index
    %69 = vector.load %arg8[%c1_41, %c45, %c0_42] : memref<4x88x64xf32, #tpu.memory_space<vmem>>, vector<1x8x64xf32>
    %70 = vector.shape_cast %69 : vector<1x8x64xf32> to vector<8x64xf32>
    %71 = vector.shape_cast %68 : vector<8x64xf32> to vector<1x8x64xf32>
    tpu.vector_store %arg8[%c1_41, %c45, %c0_42], %71 {strides = array<i32>} : memref<4x88x64xf32, #tpu.memory_space<vmem>>, vector<1x8x64xf32>,
    %72 = vector.extract_strided_slice %51 {offsets = [40, 0], sizes = [8, 64], strides = [1, 1]} : vector<64x64xf32> to vector<8x64xf32>
    %c1_43 = arith.constant 1 : index
    %c54 = arith.constant 54 : index
    %c0_44 = arith.constant 0 : index
    %73 = vector.load %arg8[%c1_43, %c54, %c0_44] : memref<4x88x64xf32, #tpu.memory_space<vmem>>, vector<1x8x64xf32>
    %74 = vector.shape_cast %73 : vector<1x8x64xf32> to vector<8x64xf32>
    %75 = vector.shape_cast %72 : vector<8x64xf32> to vector<1x8x64xf32>
    tpu.vector_store %arg8[%c1_43, %c54, %c0_44], %75 {strides = array<i32>} : memref<4x88x64xf32, #tpu.memory_space<vmem>>, vector<1x8x64xf32>,
    %76 = vector.extract_strided_slice %51 {offsets = [48, 0], sizes = [8, 64], strides = [1, 1]} : vector<64x64xf32> to vector<8x64xf32>
    %c1_45 = arith.constant 1 : index
    %c63 = arith.constant 63 : index
    %c0_46 = arith.constant 0 : index
    %77 = vector.load %arg8[%c1_45, %c63, %c0_46] : memref<4x88x64xf32, #tpu.memory_space<vmem>>, vector<1x8x64xf32>
    %78 = vector.shape_cast %77 : vector<1x8x64xf32> to vector<8x64xf32>
    %79 = vector.shape_cast %76 : vector<8x64xf32> to vector<1x8x64xf32>
    tpu.vector_store %arg8[%c1_45, %c63, %c0_46], %79 {strides = array<i32>} : memref<4x88x64xf32, #tpu.memory_space<vmem>>, vector<1x8x64xf32>,
    %80 = vector.extract_strided_slice %51 {offsets = [56, 0], sizes = [8, 64], strides = [1, 1]} : vector<64x64xf32> to vector<8x64xf32>
    %c1_47 = arith.constant 1 : index
    %c72 = arith.constant 72 : index
    %c0_48 = arith.constant 0 : index
    %81 = vector.load %arg8[%c1_47, %c72, %c0_48] : memref<4x88x64xf32, #tpu.memory_space<vmem>>, vector<1x8x64xf32>
    %82 = vector.shape_cast %81 : vector<1x8x64xf32> to vector<8x64xf32>
    %83 = vector.shape_cast %80 : vector<8x64xf32> to vector<1x8x64xf32>
    tpu.vector_store %arg8[%c1_47, %c72, %c0_48], %83 {strides = array<i32>} : memref<4x88x64xf32, #tpu.memory_space<vmem>>, vector<1x8x64xf32>,
    %84 = vector.extract_strided_slice %17 {offsets = [128, 0], sizes = [64, 64], strides = [1, 1]} : vector<256x64xf32> to vector<64x64xf32>
    %85 = vector.extract_strided_slice %84 {offsets = [0, 0], sizes = [8, 64], strides = [1, 1]} : vector<64x64xf32> to vector<8x64xf32>
    %c2 = arith.constant 2 : index
    %c1_49 = arith.constant 1 : index
    %c0_50 = arith.constant 0 : index
    %86 = vector.load %arg8[%c2, %c1_49, %c0_50] : memref<4x88x64xf32, #tpu.memory_space<vmem>>, vector<1x8x64xf32>
    %87 = vector.shape_cast %86 : vector<1x8x64xf32> to vector<8x64xf32>
    %88 = vector.shape_cast %85 : vector<8x64xf32> to vector<1x8x64xf32>
    tpu.vector_store %arg8[%c2, %c1_49, %c0_50], %88 {strides = array<i32>} : memref<4x88x64xf32, #tpu.memory_space<vmem>>, vector<1x8x64xf32>,
    %89 = vector.extract_strided_slice %84 {offsets = [8, 0], sizes = [8, 64], strides = [1, 1]} : vector<64x64xf32> to vector<8x64xf32>
    %c2_51 = arith.constant 2 : index
    %c10_52 = arith.constant 10 : index
    %c0_53 = arith.constant 0 : index
    %90 = vector.load %arg8[%c2_51, %c10_52, %c0_53] : memref<4x88x64xf32, #tpu.memory_space<vmem>>, vector<1x8x64xf32>
    %91 = vector.shape_cast %90 : vector<1x8x64xf32> to vector<8x64xf32>
    %92 = vector.shape_cast %89 : vector<8x64xf32> to vector<1x8x64xf32>
    tpu.vector_store %arg8[%c2_51, %c10_52, %c0_53], %92 {strides = array<i32>} : memref<4x88x64xf32, #tpu.memory_space<vmem>>, vector<1x8x64xf32>,
    %93 = vector.extract_strided_slice %84 {offsets = [16, 0], sizes = [8, 64], strides = [1, 1]} : vector<64x64xf32> to vector<8x64xf32>
    %c2_54 = arith.constant 2 : index
    %c19_55 = arith.constant 19 : index
    %c0_56 = arith.constant 0 : index
    %94 = vector.load %arg8[%c2_54, %c19_55, %c0_56] : memref<4x88x64xf32, #tpu.memory_space<vmem>>, vector<1x8x64xf32>
    %95 = vector.shape_cast %94 : vector<1x8x64xf32> to vector<8x64xf32>
    %96 = vector.shape_cast %93 : vector<8x64xf32> to vector<1x8x64xf32>
    tpu.vector_store %arg8[%c2_54, %c19_55, %c0_56], %96 {strides = array<i32>} : memref<4x88x64xf32, #tpu.memory_space<vmem>>, vector<1x8x64xf32>,
    %97 = vector.extract_strided_slice %84 {offsets = [24, 0], sizes = [8, 64], strides = [1, 1]} : vector<64x64xf32> to vector<8x64xf32>
    %c2_57 = arith.constant 2 : index
    %c28_58 = arith.constant 28 : index
    %c0_59 = arith.constant 0 : index
    %98 = vector.load %arg8[%c2_57, %c28_58, %c0_59] : memref<4x88x64xf32, #tpu.memory_space<vmem>>, vector<1x8x64xf32>
    %99 = vector.shape_cast %98 : vector<1x8x64xf32> to vector<8x64xf32>
    %100 = vector.shape_cast %97 : vector<8x64xf32> to vector<1x8x64xf32>
    tpu.vector_store %arg8[%c2_57, %c28_58, %c0_59], %100 {strides = array<i32>} : memref<4x88x64xf32, #tpu.memory_space<vmem>>, vector<1x8x64xf32>,
    %101 = vector.extract_strided_slice %84 {offsets = [32, 0], sizes = [8, 64], strides = [1, 1]} : vector<64x64xf32> to vector<8x64xf32>
    %c2_60 = arith.constant 2 : index
    %c37_61 = arith.constant 37 : index
    %c0_62 = arith.constant 0 : index
    %102 = vector.load %arg8[%c2_60, %c37_61, %c0_62] : memref<4x88x64xf32, #tpu.memory_space<vmem>>, vector<1x8x64xf32>
    %103 = vector.shape_cast %102 : vector<1x8x64xf32> to vector<8x64xf32>
    %104 = vector.shape_cast %101 : vector<8x64xf32> to vector<1x8x64xf32>
    tpu.vector_store %arg8[%c2_60, %c37_61, %c0_62], %104 {strides = array<i32>} : memref<4x88x64xf32, #tpu.memory_space<vmem>>, vector<1x8x64xf32>,
    %105 = vector.extract_strided_slice %84 {offsets = [40, 0], sizes = [8, 64], strides = [1, 1]} : vector<64x64xf32> to vector<8x64xf32>
    %c2_63 = arith.constant 2 : index
    %c46_64 = arith.constant 46 : index
    %c0_65 = arith.constant 0 : index
    %106 = vector.load %arg8[%c2_63, %c46_64, %c0_65] : memref<4x88x64xf32, #tpu.memory_space<vmem>>, vector<1x8x64xf32>
    %107 = vector.shape_cast %106 : vector<1x8x64xf32> to vector<8x64xf32>
    %108 = vector.shape_cast %105 : vector<8x64xf32> to vector<1x8x64xf32>
    tpu.vector_store %arg8[%c2_63, %c46_64, %c0_65], %108 {strides = array<i32>} : memref<4x88x64xf32, #tpu.memory_space<vmem>>, vector<1x8x64xf32>,
    %109 = vector.extract_strided_slice %84 {offsets = [48, 0], sizes = [8, 64], strides = [1, 1]} : vector<64x64xf32> to vector<8x64xf32>
    %c2_66 = arith.constant 2 : index
    %c55_67 = arith.constant 55 : index
    %c0_68 = arith.constant 0 : index
    %110 = vector.load %arg8[%c2_66, %c55_67, %c0_68] : memref<4x88x64xf32, #tpu.memory_space<vmem>>, vector<1x8x64xf32>
    %111 = vector.shape_cast %110 : vector<1x8x64xf32> to vector<8x64xf32>
    %112 = vector.shape_cast %109 : vector<8x64xf32> to vector<1x8x64xf32>
    tpu.vector_store %arg8[%c2_66, %c55_67, %c0_68], %112 {strides = array<i32>} : memref<4x88x64xf32, #tpu.memory_space<vmem>>, vector<1x8x64xf32>,
    %113 = vector.extract_strided_slice %84 {offsets = [56, 0], sizes = [8, 64], strides = [1, 1]} : vector<64x64xf32> to vector<8x64xf32>
    %c2_69 = arith.constant 2 : index
    %c64_70 = arith.constant 64 : index
    %c0_71 = arith.constant 0 : index
    %114 = vector.load %arg8[%c2_69, %c64_70, %c0_71] : memref<4x88x64xf32, #tpu.memory_space<vmem>>, vector<1x8x64xf32>
    %115 = vector.shape_cast %114 : vector<1x8x64xf32> to vector<8x64xf32>
    %116 = vector.shape_cast %113 : vector<8x64xf32> to vector<1x8x64xf32>
    tpu.vector_store %arg8[%c2_69, %c64_70, %c0_71], %116 {strides = array<i32>} : memref<4x88x64xf32, #tpu.memory_space<vmem>>, vector<1x8x64xf32>,
    %117 = vector.extract_strided_slice %17 {offsets = [192, 0], sizes = [64, 64], strides = [1, 1]} : vector<256x64xf32> to vector<64x64xf32>
    %118 = vector.extract_strided_slice %117 {offsets = [0, 0], sizes = [8, 64], strides = [1, 1]} : vector<64x64xf32> to vector<8x64xf32>
    %c3 = arith.constant 3 : index
    %c0_72 = arith.constant 0 : index
    %c0_73 = arith.constant 0 : index
    %119 = vector.load %arg8[%c3, %c0_72, %c0_73] : memref<4x88x64xf32, #tpu.memory_space<vmem>>, vector<1x8x64xf32>
    %120 = vector.shape_cast %119 : vector<1x8x64xf32> to vector<8x64xf32>
    %121 = vector.shape_cast %118 : vector<8x64xf32> to vector<1x8x64xf32>
    tpu.vector_store %arg8[%c3, %c0_72, %c0_73], %121 {strides = array<i32>} : memref<4x88x64xf32, #tpu.memory_space<vmem>>, vector<1x8x64xf32>,
    %122 = vector.extract_strided_slice %117 {offsets = [8, 0], sizes = [8, 64], strides = [1, 1]} : vector<64x64xf32> to vector<8x64xf32>
    %c3_74 = arith.constant 3 : index
    %c9_75 = arith.constant 9 : index
    %c0_76 = arith.constant 0 : index
    %123 = vector.load %arg8[%c3_74, %c9_75, %c0_76] : memref<4x88x64xf32, #tpu.memory_space<vmem>>, vector<1x8x64xf32>
    %124 = vector.shape_cast %123 : vector<1x8x64xf32> to vector<8x64xf32>
    %125 = vector.shape_cast %122 : vector<8x64xf32> to vector<1x8x64xf32>
    tpu.vector_store %arg8[%c3_74, %c9_75, %c0_76], %125 {strides = array<i32>} : memref<4x88x64xf32, #tpu.memory_space<vmem>>, vector<1x8x64xf32>,
    %126 = vector.extract_strided_slice %117 {offsets = [16, 0], sizes = [8, 64], strides = [1, 1]} : vector<64x64xf32> to vector<8x64xf32>
    %c3_77 = arith.constant 3 : index
    %c18_78 = arith.constant 18 : index
    %c0_79 = arith.constant 0 : index
    %127 = vector.load %arg8[%c3_77, %c18_78, %c0_79] : memref<4x88x64xf32, #tpu.memory_space<vmem>>, vector<1x8x64xf32>
    %128 = vector.shape_cast %127 : vector<1x8x64xf32> to vector<8x64xf32>
    %129 = vector.shape_cast %126 : vector<8x64xf32> to vector<1x8x64xf32>
    tpu.vector_store %arg8[%c3_77, %c18_78, %c0_79], %129 {strides = array<i32>} : memref<4x88x64xf32, #tpu.memory_space<vmem>>, vector<1x8x64xf32>,
    %130 = vector.extract_strided_slice %117 {offsets = [24, 0], sizes = [8, 64], strides = [1, 1]} : vector<64x64xf32> to vector<8x64xf32>
    %c3_80 = arith.constant 3 : index
    %c27_81 = arith.constant 27 : index
    %c0_82 = arith.constant 0 : index
    %131 = vector.load %arg8[%c3_80, %c27_81, %c0_82] : memref<4x88x64xf32, #tpu.memory_space<vmem>>, vector<1x8x64xf32>
    %132 = vector.shape_cast %131 : vector<1x8x64xf32> to vector<8x64xf32>
    %133 = vector.shape_cast %130 : vector<8x64xf32> to vector<1x8x64xf32>
    tpu.vector_store %arg8[%c3_80, %c27_81, %c0_82], %133 {strides = array<i32>} : memref<4x88x64xf32, #tpu.memory_space<vmem>>, vector<1x8x64xf32>,
    %134 = vector.extract_strided_slice %117 {offsets = [32, 0], sizes = [8, 64], strides = [1, 1]} : vector<64x64xf32> to vector<8x64xf32>
    %c3_83 = arith.constant 3 : index
    %c36_84 = arith.constant 36 : index
    %c0_85 = arith.constant 0 : index
    %135 = vector.load %arg8[%c3_83, %c36_84, %c0_85] : memref<4x88x64xf32, #tpu.memory_space<vmem>>, vector<1x8x64xf32>
    %136 = vector.shape_cast %135 : vector<1x8x64xf32> to vector<8x64xf32>
    %137 = vector.shape_cast %134 : vector<8x64xf32> to vector<1x8x64xf32>
    tpu.vector_store %arg8[%c3_83, %c36_84, %c0_85], %137 {strides = array<i32>} : memref<4x88x64xf32, #tpu.memory_space<vmem>>, vector<1x8x64xf32>,
    %138 = vector.extract_strided_slice %117 {offsets = [40, 0], sizes = [8, 64], strides = [1, 1]} : vector<64x64xf32> to vector<8x64xf32>
    %c3_86 = arith.constant 3 : index
    %c45_87 = arith.constant 45 : index
    %c0_88 = arith.constant 0 : index
    %139 = vector.load %arg8[%c3_86, %c45_87, %c0_88] : memref<4x88x64xf32, #tpu.memory_space<vmem>>, vector<1x8x64xf32>
    %140 = vector.shape_cast %139 : vector<1x8x64xf32> to vector<8x64xf32>
    %141 = vector.shape_cast %138 : vector<8x64xf32> to vector<1x8x64xf32>
    tpu.vector_store %arg8[%c3_86, %c45_87, %c0_88], %141 {strides = array<i32>} : memref<4x88x64xf32, #tpu.memory_space<vmem>>, vector<1x8x64xf32>,
    %142 = vector.extract_strided_slice %117 {offsets = [48, 0], sizes = [8, 64], strides = [1, 1]} : vector<64x64xf32> to vector<8x64xf32>
    %c3_89 = arith.constant 3 : index
    %c54_90 = arith.constant 54 : index
    %c0_91 = arith.constant 0 : index
    %143 = vector.load %arg8[%c3_89, %c54_90, %c0_91] : memref<4x88x64xf32, #tpu.memory_space<vmem>>, vector<1x8x64xf32>
    %144 = vector.shape_cast %143 : vector<1x8x64xf32> to vector<8x64xf32>
    %145 = vector.shape_cast %142 : vector<8x64xf32> to vector<1x8x64xf32>
    tpu.vector_store %arg8[%c3_89, %c54_90, %c0_91], %145 {strides = array<i32>} : memref<4x88x64xf32, #tpu.memory_space<vmem>>, vector<1x8x64xf32>,
    %146 = vector.extract_strided_slice %117 {offsets = [56, 0], sizes = [8, 64], strides = [1, 1]} : vector<64x64xf32> to vector<8x64xf32>
    %c3_92 = arith.constant 3 : index
    %c63_93 = arith.constant 63 : index
    %c0_94 = arith.constant 0 : index
    %147 = vector.load %arg8[%c3_92, %c63_93, %c0_94] : memref<4x88x64xf32, #tpu.memory_space<vmem>>, vector<1x8x64xf32>
    %148 = vector.shape_cast %147 : vector<1x8x64xf32> to vector<8x64xf32>
    %149 = vector.shape_cast %146 : vector<8x64xf32> to vector<1x8x64xf32>
    tpu.vector_store %arg8[%c3_92, %c63_93, %c0_94], %149 {strides = array<i32>} : memref<4x88x64xf32, #tpu.memory_space<vmem>>, vector<1x8x64xf32>,
    %cst_95 = arith.constant 0.000000e+00 : f32
    %150 = vector.broadcast %cst_95 : f32 to vector<72x128xf32>
    %c0_96 = arith.constant 0 : index
    %c0_97 = arith.constant 0 : index
    %c0_98 = arith.constant 0 : index
    %151 = vector.load %arg8[%c0_96, %c0_97, %c0_98] : memref<4x88x64xf32, #tpu.memory_space<vmem>>, vector<1x72x64xf32>
    %152 = vector.shape_cast %151 : vector<1x72x64xf32> to vector<72x64xf32>
    %153 = arith.truncf %152 : vector<72x64xf32> to vector<72x64xbf16>
    %c0_99 = arith.constant 0 : index
    %c0_100 = arith.constant 0 : index
    %c0_101 = arith.constant 0 : index
    %154 = vector.load %arg3[%c0_99, %c0_100, %c0_101] : memref<9x64x128xbf16, #tpu.memory_space<vmem>>, vector<1x64x128xbf16>
    %155 = vector.shape_cast %154 : vector<1x64x128xbf16> to vector<64x128xbf16>
    %cst_102 = arith.constant dense<0.000000e+00> : vector<72x128xf32>
    %156 = tpu.matmul %153, %155, %cst_102 {dimension_numbers = #tpu.dot_dimension_numbers<[1], [0], [0], [1], [0, 0, 1, 1], [], []>} : vector<72x64xbf16>, vector<64x128xbf16>, vector<72x128xf32> -> vector<72x128xf32>
    %157 = arith.addf %150, %156 : vector<72x128xf32>
    %c1_103 = arith.constant 1 : index
    %c0_104 = arith.constant 0 : index
    %c0_105 = arith.constant 0 : index
    %158 = vector.load %arg8[%c1_103, %c0_104, %c0_105] : memref<4x88x64xf32, #tpu.memory_space<vmem>>, vector<1x72x64xf32>
    %159 = vector.shape_cast %158 : vector<1x72x64xf32> to vector<72x64xf32>
    %160 = arith.truncf %159 : vector<72x64xf32> to vector<72x64xbf16>
    %c1_106 = arith.constant 1 : index
    %c0_107 = arith.constant 0 : index
    %c0_108 = arith.constant 0 : index
    %161 = vector.load %arg3[%c1_106, %c0_107, %c0_108] : memref<9x64x128xbf16, #tpu.memory_space<vmem>>, vector<1x64x128xbf16>
    %162 = vector.shape_cast %161 : vector<1x64x128xbf16> to vector<64x128xbf16>
    %cst_109 = arith.constant dense<0.000000e+00> : vector<72x128xf32>
    %163 = tpu.matmul %160, %162, %cst_109 {dimension_numbers = #tpu.dot_dimension_numbers<[1], [0], [0], [1], [0, 0, 1, 1], [], []>} : vector<72x64xbf16>, vector<64x128xbf16>, vector<72x128xf32> -> vector<72x128xf32>
    %164 = arith.addf %157, %163 : vector<72x128xf32>
    %c0_110 = arith.constant 0 : index
    %c1_111 = arith.constant 1 : index
    %c0_112 = arith.constant 0 : index
    %165 = vector.load %arg8[%c0_110, %c1_111, %c0_112] : memref<4x88x64xf32, #tpu.memory_space<vmem>>, vector<1x72x64xf32>
    %166 = vector.shape_cast %165 : vector<1x72x64xf32> to vector<72x64xf32>
    %167 = arith.truncf %166 : vector<72x64xf32> to vector<72x64xbf16>
    %c2_113 = arith.constant 2 : index
    %c0_114 = arith.constant 0 : index
    %c0_115 = arith.constant 0 : index
    %168 = vector.load %arg3[%c2_113, %c0_114, %c0_115] : memref<9x64x128xbf16, #tpu.memory_space<vmem>>, vector<1x64x128xbf16>
    %169 = vector.shape_cast %168 : vector<1x64x128xbf16> to vector<64x128xbf16>
    %cst_116 = arith.constant dense<0.000000e+00> : vector<72x128xf32>
    %170 = tpu.matmul %167, %169, %cst_116 {dimension_numbers = #tpu.dot_dimension_numbers<[1], [0], [0], [1], [0, 0, 1, 1], [], []>} : vector<72x64xbf16>, vector<64x128xbf16>, vector<72x128xf32> -> vector<72x128xf32>
    %171 = arith.addf %164, %170 : vector<72x128xf32>
    %c2_117 = arith.constant 2 : index
    %c0_118 = arith.constant 0 : index
    %c0_119 = arith.constant 0 : index
    %172 = vector.load %arg8[%c2_117, %c0_118, %c0_119] : memref<4x88x64xf32, #tpu.memory_space<vmem>>, vector<1x72x64xf32>
    %173 = vector.shape_cast %172 : vector<1x72x64xf32> to vector<72x64xf32>
    %174 = arith.truncf %173 : vector<72x64xf32> to vector<72x64xbf16>
    %c3_120 = arith.constant 3 : index
    %c0_121 = arith.constant 0 : index
    %c0_122 = arith.constant 0 : index
    %175 = vector.load %arg3[%c3_120, %c0_121, %c0_122] : memref<9x64x128xbf16, #tpu.memory_space<vmem>>, vector<1x64x128xbf16>
    %176 = vector.shape_cast %175 : vector<1x64x128xbf16> to vector<64x128xbf16>
    %cst_123 = arith.constant dense<0.000000e+00> : vector<72x128xf32>
    %177 = tpu.matmul %174, %176, %cst_123 {dimension_numbers = #tpu.dot_dimension_numbers<[1], [0], [0], [1], [0, 0, 1, 1], [], []>} : vector<72x64xbf16>, vector<64x128xbf16>, vector<72x128xf32> -> vector<72x128xf32>
    %178 = arith.addf %171, %177 : vector<72x128xf32>
    %c3_124 = arith.constant 3 : index
    %c0_125 = arith.constant 0 : index
    %c0_126 = arith.constant 0 : index
    %179 = vector.load %arg8[%c3_124, %c0_125, %c0_126] : memref<4x88x64xf32, #tpu.memory_space<vmem>>, vector<1x72x64xf32>
    %180 = vector.shape_cast %179 : vector<1x72x64xf32> to vector<72x64xf32>
    %181 = arith.truncf %180 : vector<72x64xf32> to vector<72x64xbf16>
    %c4 = arith.constant 4 : index
    %c0_127 = arith.constant 0 : index
    %c0_128 = arith.constant 0 : index
    %182 = vector.load %arg3[%c4, %c0_127, %c0_128] : memref<9x64x128xbf16, #tpu.memory_space<vmem>>, vector<1x64x128xbf16>
    %183 = vector.shape_cast %182 : vector<1x64x128xbf16> to vector<64x128xbf16>
    %cst_129 = arith.constant dense<0.000000e+00> : vector<72x128xf32>
    %184 = tpu.matmul %181, %183, %cst_129 {dimension_numbers = #tpu.dot_dimension_numbers<[1], [0], [0], [1], [0, 0, 1, 1], [], []>} : vector<72x64xbf16>, vector<64x128xbf16>, vector<72x128xf32> -> vector<72x128xf32>
    %185 = arith.addf %178, %184 : vector<72x128xf32>
    %c2_130 = arith.constant 2 : index
    %c1_131 = arith.constant 1 : index
    %c0_132 = arith.constant 0 : index
    %186 = vector.load %arg8[%c2_130, %c1_131, %c0_132] : memref<4x88x64xf32, #tpu.memory_space<vmem>>, vector<1x72x64xf32>
    %187 = vector.shape_cast %186 : vector<1x72x64xf32> to vector<72x64xf32>
    %188 = arith.truncf %187 : vector<72x64xf32> to vector<72x64xbf16>
    %c5 = arith.constant 5 : index
    %c0_133 = arith.constant 0 : index
    %c0_134 = arith.constant 0 : index
    %189 = vector.load %arg3[%c5, %c0_133, %c0_134] : memref<9x64x128xbf16, #tpu.memory_space<vmem>>, vector<1x64x128xbf16>
    %190 = vector.shape_cast %189 : vector<1x64x128xbf16> to vector<64x128xbf16>
    %cst_135 = arith.constant dense<0.000000e+00> : vector<72x128xf32>
    %191 = tpu.matmul %188, %190, %cst_135 {dimension_numbers = #tpu.dot_dimension_numbers<[1], [0], [0], [1], [0, 0, 1, 1], [], []>} : vector<72x64xbf16>, vector<64x128xbf16>, vector<72x128xf32> -> vector<72x128xf32>
    %192 = arith.addf %185, %191 : vector<72x128xf32>
    %c0_136 = arith.constant 0 : index
    %c9_137 = arith.constant 9 : index
    %c0_138 = arith.constant 0 : index
    %193 = vector.load %arg8[%c0_136, %c9_137, %c0_138] : memref<4x88x64xf32, #tpu.memory_space<vmem>>, vector<1x72x64xf32>
    %194 = vector.shape_cast %193 : vector<1x72x64xf32> to vector<72x64xf32>
    %195 = arith.truncf %194 : vector<72x64xf32> to vector<72x64xbf16>
    %c6 = arith.constant 6 : index
    %c0_139 = arith.constant 0 : index
    %c0_140 = arith.constant 0 : index
    %196 = vector.load %arg3[%c6, %c0_139, %c0_140] : memref<9x64x128xbf16, #tpu.memory_space<vmem>>, vector<1x64x128xbf16>
    %197 = vector.shape_cast %196 : vector<1x64x128xbf16> to vector<64x128xbf16>
    %cst_141 = arith.constant dense<0.000000e+00> : vector<72x128xf32>
    %198 = tpu.matmul %195, %197, %cst_141 {dimension_numbers = #tpu.dot_dimension_numbers<[1], [0], [0], [1], [0, 0, 1, 1], [], []>} : vector<72x64xbf16>, vector<64x128xbf16>, vector<72x128xf32> -> vector<72x128xf32>
    %199 = arith.addf %192, %198 : vector<72x128xf32>
    %c1_142 = arith.constant 1 : index
    %c9_143 = arith.constant 9 : index
    %c0_144 = arith.constant 0 : index
    %200 = vector.load %arg8[%c1_142, %c9_143, %c0_144] : memref<4x88x64xf32, #tpu.memory_space<vmem>>, vector<1x72x64xf32>
    %201 = vector.shape_cast %200 : vector<1x72x64xf32> to vector<72x64xf32>
    %202 = arith.truncf %201 : vector<72x64xf32> to vector<72x64xbf16>
    %c7 = arith.constant 7 : index
    %c0_145 = arith.constant 0 : index
    %c0_146 = arith.constant 0 : index
    %203 = vector.load %arg3[%c7, %c0_145, %c0_146] : memref<9x64x128xbf16, #tpu.memory_space<vmem>>, vector<1x64x128xbf16>
    %204 = vector.shape_cast %203 : vector<1x64x128xbf16> to vector<64x128xbf16>
    %cst_147 = arith.constant dense<0.000000e+00> : vector<72x128xf32>
    %205 = tpu.matmul %202, %204, %cst_147 {dimension_numbers = #tpu.dot_dimension_numbers<[1], [0], [0], [1], [0, 0, 1, 1], [], []>} : vector<72x64xbf16>, vector<64x128xbf16>, vector<72x128xf32> -> vector<72x128xf32>
    %206 = arith.addf %199, %205 : vector<72x128xf32>
    %c0_148 = arith.constant 0 : index
    %c10_149 = arith.constant 10 : index
    %c0_150 = arith.constant 0 : index
    %207 = vector.load %arg8[%c0_148, %c10_149, %c0_150] : memref<4x88x64xf32, #tpu.memory_space<vmem>>, vector<1x72x64xf32>
    %208 = vector.shape_cast %207 : vector<1x72x64xf32> to vector<72x64xf32>
    %209 = arith.truncf %208 : vector<72x64xf32> to vector<72x64xbf16>
    %c8 = arith.constant 8 : index
    %c0_151 = arith.constant 0 : index
    %c0_152 = arith.constant 0 : index
    %210 = vector.load %arg3[%c8, %c0_151, %c0_152] : memref<9x64x128xbf16, #tpu.memory_space<vmem>>, vector<1x64x128xbf16>
    %211 = vector.shape_cast %210 : vector<1x64x128xbf16> to vector<64x128xbf16>
    %cst_153 = arith.constant dense<0.000000e+00> : vector<72x128xf32>
    %212 = tpu.matmul %209, %211, %cst_153 {dimension_numbers = #tpu.dot_dimension_numbers<[1], [0], [0], [1], [0, 0, 1, 1], [], []>} : vector<72x64xbf16>, vector<64x128xbf16>, vector<72x128xf32> -> vector<72x128xf32>
    %213 = arith.addf %206, %212 : vector<72x128xf32>
    %c1_154 = arith.constant 1 : index
    %c0_155 = arith.constant 0 : index
    %214 = vector.load %arg6[%c1_154, %c0_155] : memref<8x256xf32, #tpu.memory_space<vmem>>, vector<1x128xf32>
    %215 = vector.broadcast %214 : vector<1x128xf32> to vector<72x128xf32>
    %216 = arith.addf %213, %215 : vector<72x128xf32>
    %cst_156 = arith.constant 0.000000e+00 : f32
    %217 = vector.broadcast %cst_156 : f32 to vector<72x128xf32>
    %218 = arith.cmpf oge, %216, %217 : vector<72x128xf32>
    %cst_157 = arith.constant 0.00999999977 : f32
    %219 = vector.broadcast %cst_157 : f32 to vector<72x128xf32>
    %220 = arith.mulf %219, %216 : vector<72x128xf32>
    %221 = arith.select %218, %216, %220 : vector<72x128xi1>, vector<72x128xf32>
    %c2_158 = arith.constant 2 : index
    %c0_159 = arith.constant 0 : index
    %222 = vector.load %arg6[%c2_158, %c0_159] : memref<8x256xf32, #tpu.memory_space<vmem>>, vector<1x128xf32>
    %223 = vector.broadcast %222 : vector<1x128xf32> to vector<72x128xf32>
    %224 = arith.mulf %221, %223 : vector<72x128xf32>
    %c3_160 = arith.constant 3 : index
    %c0_161 = arith.constant 0 : index
    %225 = vector.load %arg6[%c3_160, %c0_161] : memref<8x256xf32, #tpu.memory_space<vmem>>, vector<1x128xf32>
    %226 = vector.broadcast %225 : vector<1x128xf32> to vector<72x128xf32>
    %227 = arith.addf %224, %226 : vector<72x128xf32>
    %c0_162 = arith.constant 0 : index
    %c0_163 = arith.constant 0 : index
    %228 = vector.load %arg9[%c0_162, %c0_163] : memref<80x128xf32, #tpu.memory_space<vmem>>, vector<72x128xf32>
    tpu.vector_store %arg9[%c0_162, %c0_163], %227 {strides = array<i32>} : memref<80x128xf32, #tpu.memory_space<vmem>>, vector<72x128xf32>,
    %cst_164 = arith.constant 0.000000e+00 : f32
    %229 = vector.broadcast %cst_164 : f32 to vector<54x256xf32>
    %c0_165 = arith.constant 0 : index
    %c0_166 = arith.constant 0 : index
    %230 = vector.load %arg9[%c0_165, %c0_166] : memref<80x128xf32, #tpu.memory_space<vmem>>, vector<54x128xf32>
    %231 = arith.truncf %230 : vector<54x128xf32> to vector<54x128xbf16>
    %c0_167 = arith.constant 0 : index
    %c0_168 = arith.constant 0 : index
    %c0_169 = arith.constant 0 : index
    %232 = vector.load %arg4[%c0_167, %c0_168, %c0_169] : memref<9x128x256xbf16, #tpu.memory_space<vmem>>, vector<1x128x256xbf16>
    %233 = vector.shape_cast %232 : vector<1x128x256xbf16> to vector<128x256xbf16>
    %cst_170 = arith.constant dense<0.000000e+00> : vector<54x256xf32>
    %234 = tpu.matmul %231, %233, %cst_170 {dimension_numbers = #tpu.dot_dimension_numbers<[1], [0], [0], [1], [0, 0, 1, 1], [], []>} : vector<54x128xbf16>, vector<128x256xbf16>, vector<54x256xf32> -> vector<54x256xf32>
    %235 = arith.addf %229, %234 : vector<54x256xf32>
    %c1_171 = arith.constant 1 : index
    %c0_172 = arith.constant 0 : index
    %236 = vector.load %arg9[%c1_171, %c0_172] : memref<80x128xf32, #tpu.memory_space<vmem>>, vector<54x128xf32>
    %237 = arith.truncf %236 : vector<54x128xf32> to vector<54x128xbf16>
    %c1_173 = arith.constant 1 : index
    %c0_174 = arith.constant 0 : index
    %c0_175 = arith.constant 0 : index
    %238 = vector.load %arg4[%c1_173, %c0_174, %c0_175] : memref<9x128x256xbf16, #tpu.memory_space<vmem>>, vector<1x128x256xbf16>
    %239 = vector.shape_cast %238 : vector<1x128x256xbf16> to vector<128x256xbf16>
    %cst_176 = arith.constant dense<0.000000e+00> : vector<54x256xf32>
    %240 = tpu.matmul %237, %239, %cst_176 {dimension_numbers = #tpu.dot_dimension_numbers<[1], [0], [0], [1], [0, 0, 1, 1], [], []>} : vector<54x128xbf16>, vector<128x256xbf16>, vector<54x256xf32> -> vector<54x256xf32>
    %241 = arith.addf %235, %240 : vector<54x256xf32>
    %c2_177 = arith.constant 2 : index
    %c0_178 = arith.constant 0 : index
    %242 = vector.load %arg9[%c2_177, %c0_178] : memref<80x128xf32, #tpu.memory_space<vmem>>, vector<54x128xf32>
    %243 = arith.truncf %242 : vector<54x128xf32> to vector<54x128xbf16>
    %c2_179 = arith.constant 2 : index
    %c0_180 = arith.constant 0 : index
    %c0_181 = arith.constant 0 : index
    %244 = vector.load %arg4[%c2_179, %c0_180, %c0_181] : memref<9x128x256xbf16, #tpu.memory_space<vmem>>, vector<1x128x256xbf16>
    %245 = vector.shape_cast %244 : vector<1x128x256xbf16> to vector<128x256xbf16>
    %cst_182 = arith.constant dense<0.000000e+00> : vector<54x256xf32>
    %246 = tpu.matmul %243, %245, %cst_182 {dimension_numbers = #tpu.dot_dimension_numbers<[1], [0], [0], [1], [0, 0, 1, 1], [], []>} : vector<54x128xbf16>, vector<128x256xbf16>, vector<54x256xf32> -> vector<54x256xf32>
    %247 = arith.addf %241, %246 : vector<54x256xf32>
    %c9_183 = arith.constant 9 : index
    %c0_184 = arith.constant 0 : index
    %248 = vector.load %arg9[%c9_183, %c0_184] : memref<80x128xf32, #tpu.memory_space<vmem>>, vector<54x128xf32>
    %249 = arith.truncf %248 : vector<54x128xf32> to vector<54x128xbf16>
    %c3_185 = arith.constant 3 : index
    %c0_186 = arith.constant 0 : index
    %c0_187 = arith.constant 0 : index
    %250 = vector.load %arg4[%c3_185, %c0_186, %c0_187] : memref<9x128x256xbf16, #tpu.memory_space<vmem>>, vector<1x128x256xbf16>
    %251 = vector.shape_cast %250 : vector<1x128x256xbf16> to vector<128x256xbf16>
    %cst_188 = arith.constant dense<0.000000e+00> : vector<54x256xf32>
    %252 = tpu.matmul %249, %251, %cst_188 {dimension_numbers = #tpu.dot_dimension_numbers<[1], [0], [0], [1], [0, 0, 1, 1], [], []>} : vector<54x128xbf16>, vector<128x256xbf16>, vector<54x256xf32> -> vector<54x256xf32>
    %253 = arith.addf %247, %252 : vector<54x256xf32>
    %c10_189 = arith.constant 10 : index
    %c0_190 = arith.constant 0 : index
    %254 = vector.load %arg9[%c10_189, %c0_190] : memref<80x128xf32, #tpu.memory_space<vmem>>, vector<54x128xf32>
    %255 = arith.truncf %254 : vector<54x128xf32> to vector<54x128xbf16>
    %c4_191 = arith.constant 4 : index
    %c0_192 = arith.constant 0 : index
    %c0_193 = arith.constant 0 : index
    %256 = vector.load %arg4[%c4_191, %c0_192, %c0_193] : memref<9x128x256xbf16, #tpu.memory_space<vmem>>, vector<1x128x256xbf16>
    %257 = vector.shape_cast %256 : vector<1x128x256xbf16> to vector<128x256xbf16>
    %cst_194 = arith.constant dense<0.000000e+00> : vector<54x256xf32>
    %258 = tpu.matmul %255, %257, %cst_194 {dimension_numbers = #tpu.dot_dimension_numbers<[1], [0], [0], [1], [0, 0, 1, 1], [], []>} : vector<54x128xbf16>, vector<128x256xbf16>, vector<54x256xf32> -> vector<54x256xf32>
    %259 = arith.addf %253, %258 : vector<54x256xf32>
    %c11 = arith.constant 11 : index
    %c0_195 = arith.constant 0 : index
    %260 = vector.load %arg9[%c11, %c0_195] : memref<80x128xf32, #tpu.memory_space<vmem>>, vector<54x128xf32>
    %261 = arith.truncf %260 : vector<54x128xf32> to vector<54x128xbf16>
    %c5_196 = arith.constant 5 : index
    %c0_197 = arith.constant 0 : index
    %c0_198 = arith.constant 0 : index
    %262 = vector.load %arg4[%c5_196, %c0_197, %c0_198] : memref<9x128x256xbf16, #tpu.memory_space<vmem>>, vector<1x128x256xbf16>
    %263 = vector.shape_cast %262 : vector<1x128x256xbf16> to vector<128x256xbf16>
    %cst_199 = arith.constant dense<0.000000e+00> : vector<54x256xf32>
    %264 = tpu.matmul %261, %263, %cst_199 {dimension_numbers = #tpu.dot_dimension_numbers<[1], [0], [0], [1], [0, 0, 1, 1], [], []>} : vector<54x128xbf16>, vector<128x256xbf16>, vector<54x256xf32> -> vector<54x256xf32>
    %265 = arith.addf %259, %264 : vector<54x256xf32>
    %c18_200 = arith.constant 18 : index
    %c0_201 = arith.constant 0 : index
    %266 = vector.load %arg9[%c18_200, %c0_201] : memref<80x128xf32, #tpu.memory_space<vmem>>, vector<54x128xf32>
    %267 = arith.truncf %266 : vector<54x128xf32> to vector<54x128xbf16>
    %c6_202 = arith.constant 6 : index
    %c0_203 = arith.constant 0 : index
    %c0_204 = arith.constant 0 : index
    %268 = vector.load %arg4[%c6_202, %c0_203, %c0_204] : memref<9x128x256xbf16, #tpu.memory_space<vmem>>, vector<1x128x256xbf16>
    %269 = vector.shape_cast %268 : vector<1x128x256xbf16> to vector<128x256xbf16>
    %cst_205 = arith.constant dense<0.000000e+00> : vector<54x256xf32>
    %270 = tpu.matmul %267, %269, %cst_205 {dimension_numbers = #tpu.dot_dimension_numbers<[1], [0], [0], [1], [0, 0, 1, 1], [], []>} : vector<54x128xbf16>, vector<128x256xbf16>, vector<54x256xf32> -> vector<54x256xf32>
    %271 = arith.addf %265, %270 : vector<54x256xf32>
    %c19_206 = arith.constant 19 : index
    %c0_207 = arith.constant 0 : index
    %272 = vector.load %arg9[%c19_206, %c0_207] : memref<80x128xf32, #tpu.memory_space<vmem>>, vector<54x128xf32>
    %273 = arith.truncf %272 : vector<54x128xf32> to vector<54x128xbf16>
    %c7_208 = arith.constant 7 : index
    %c0_209 = arith.constant 0 : index
    %c0_210 = arith.constant 0 : index
    %274 = vector.load %arg4[%c7_208, %c0_209, %c0_210] : memref<9x128x256xbf16, #tpu.memory_space<vmem>>, vector<1x128x256xbf16>
    %275 = vector.shape_cast %274 : vector<1x128x256xbf16> to vector<128x256xbf16>
    %cst_211 = arith.constant dense<0.000000e+00> : vector<54x256xf32>
    %276 = tpu.matmul %273, %275, %cst_211 {dimension_numbers = #tpu.dot_dimension_numbers<[1], [0], [0], [1], [0, 0, 1, 1], [], []>} : vector<54x128xbf16>, vector<128x256xbf16>, vector<54x256xf32> -> vector<54x256xf32>
    %277 = arith.addf %271, %276 : vector<54x256xf32>
    %c20 = arith.constant 20 : index
    %c0_212 = arith.constant 0 : index
    %278 = vector.load %arg9[%c20, %c0_212] : memref<80x128xf32, #tpu.memory_space<vmem>>, vector<54x128xf32>
    %279 = arith.truncf %278 : vector<54x128xf32> to vector<54x128xbf16>
    %c8_213 = arith.constant 8 : index
    %c0_214 = arith.constant 0 : index
    %c0_215 = arith.constant 0 : index
    %280 = vector.load %arg4[%c8_213, %c0_214, %c0_215] : memref<9x128x256xbf16, #tpu.memory_space<vmem>>, vector<1x128x256xbf16>
    %281 = vector.shape_cast %280 : vector<1x128x256xbf16> to vector<128x256xbf16>
    %cst_216 = arith.constant dense<0.000000e+00> : vector<54x256xf32>
    %282 = tpu.matmul %279, %281, %cst_216 {dimension_numbers = #tpu.dot_dimension_numbers<[1], [0], [0], [1], [0, 0, 1, 1], [], []>} : vector<54x128xbf16>, vector<128x256xbf16>, vector<54x256xf32> -> vector<54x256xf32>
    %283 = arith.addf %277, %282 : vector<54x256xf32>
    %c4_217 = arith.constant 4 : index
    %c0_218 = arith.constant 0 : index
    %284 = vector.load %arg6[%c4_217, %c0_218] : memref<8x256xf32, #tpu.memory_space<vmem>>, vector<1x256xf32>
    %285 = vector.broadcast %284 : vector<1x256xf32> to vector<54x256xf32>
    %286 = arith.addf %283, %285 : vector<54x256xf32>
    %cst_219 = arith.constant 0.000000e+00 : f32
    %287 = vector.broadcast %cst_219 : f32 to vector<54x256xf32>
    %288 = arith.cmpf oge, %286, %287 : vector<54x256xf32>
    %cst_220 = arith.constant 0.00999999977 : f32
    %289 = vector.broadcast %cst_220 : f32 to vector<54x256xf32>
    %290 = arith.mulf %289, %286 : vector<54x256xf32>
    %291 = arith.select %288, %286, %290 : vector<54x256xi1>, vector<54x256xf32>
    %c5_221 = arith.constant 5 : index
    %c0_222 = arith.constant 0 : index
    %292 = vector.load %arg6[%c5_221, %c0_222] : memref<8x256xf32, #tpu.memory_space<vmem>>, vector<1x256xf32>
    %293 = vector.broadcast %292 : vector<1x256xf32> to vector<54x256xf32>
    %294 = arith.mulf %291, %293 : vector<54x256xf32>
    %c6_223 = arith.constant 6 : index
    %c0_224 = arith.constant 0 : index
    %295 = vector.load %arg6[%c6_223, %c0_224] : memref<8x256xf32, #tpu.memory_space<vmem>>, vector<1x256xf32>
    %296 = vector.broadcast %295 : vector<1x256xf32> to vector<54x256xf32>
    %297 = arith.addf %294, %296 : vector<54x256xf32>
    %c0_225 = arith.constant 0 : index
    %c0_226 = arith.constant 0 : index
    %298 = vector.load %arg10[%c0_225, %c0_226] : memref<56x256xf32, #tpu.memory_space<vmem>>, vector<54x256xf32>
    tpu.vector_store %arg10[%c0_225, %c0_226], %297 {strides = array<i32>} : memref<56x256xf32, #tpu.memory_space<vmem>>, vector<54x256xf32>,
    %cst_227 = arith.constant 0.000000e+00 : f32
    %299 = vector.broadcast %cst_227 : f32 to vector<36x256xf32>
    %c0_228 = arith.constant 0 : index
    %c0_229 = arith.constant 0 : index
    %300 = vector.load %arg10[%c0_228, %c0_229] : memref<56x256xf32, #tpu.memory_space<vmem>>, vector<36x256xf32>
    %c0_230 = arith.constant 0 : index
    %c0_231 = arith.constant 0 : index
    %301 = vector.load %arg5[%c0_230, %c0_231] : memref<9x256xf32, #tpu.memory_space<vmem>>, vector<1x256xf32>
    %302 = vector.broadcast %301 : vector<1x256xf32> to vector<36x256xf32>
    %303 = arith.mulf %300, %302 : vector<36x256xf32>
    %304 = arith.addf %299, %303 : vector<36x256xf32>
    %c1_232 = arith.constant 1 : index
    %c0_233 = arith.constant 0 : index
    %305 = vector.load %arg10[%c1_232, %c0_233] : memref<56x256xf32, #tpu.memory_space<vmem>>, vector<36x256xf32>
    %c1_234 = arith.constant 1 : index
    %c0_235 = arith.constant 0 : index
    %306 = vector.load %arg5[%c1_234, %c0_235] : memref<9x256xf32, #tpu.memory_space<vmem>>, vector<1x256xf32>
    %307 = vector.broadcast %306 : vector<1x256xf32> to vector<36x256xf32>
    %308 = arith.mulf %305, %307 : vector<36x256xf32>
    %309 = arith.addf %304, %308 : vector<36x256xf32>
    %c2_236 = arith.constant 2 : index
    %c0_237 = arith.constant 0 : index
    %310 = vector.load %arg10[%c2_236, %c0_237] : memref<56x256xf32, #tpu.memory_space<vmem>>, vector<36x256xf32>
    %c2_238 = arith.constant 2 : index
    %c0_239 = arith.constant 0 : index
    %311 = vector.load %arg5[%c2_238, %c0_239] : memref<9x256xf32, #tpu.memory_space<vmem>>, vector<1x256xf32>
    %312 = vector.broadcast %311 : vector<1x256xf32> to vector<36x256xf32>
    %313 = arith.mulf %310, %312 : vector<36x256xf32>
    %314 = arith.addf %309, %313 : vector<36x256xf32>
    %c9_240 = arith.constant 9 : index
    %c0_241 = arith.constant 0 : index
    %315 = vector.load %arg10[%c9_240, %c0_241] : memref<56x256xf32, #tpu.memory_space<vmem>>, vector<36x256xf32>
    %c3_242 = arith.constant 3 : index
    %c0_243 = arith.constant 0 : index
    %316 = vector.load %arg5[%c3_242, %c0_243] : memref<9x256xf32, #tpu.memory_space<vmem>>, vector<1x256xf32>
    %317 = vector.broadcast %316 : vector<1x256xf32> to vector<36x256xf32>
    %318 = arith.mulf %315, %317 : vector<36x256xf32>
    %319 = arith.addf %314, %318 : vector<36x256xf32>
    %c10_244 = arith.constant 10 : index
    %c0_245 = arith.constant 0 : index
    %320 = vector.load %arg10[%c10_244, %c0_245] : memref<56x256xf32, #tpu.memory_space<vmem>>, vector<36x256xf32>
    %c4_246 = arith.constant 4 : index
    %c0_247 = arith.constant 0 : index
    %321 = vector.load %arg5[%c4_246, %c0_247] : memref<9x256xf32, #tpu.memory_space<vmem>>, vector<1x256xf32>
    %322 = vector.broadcast %321 : vector<1x256xf32> to vector<36x256xf32>
    %323 = arith.mulf %320, %322 : vector<36x256xf32>
    %324 = arith.addf %319, %323 : vector<36x256xf32>
    %c11_248 = arith.constant 11 : index
    %c0_249 = arith.constant 0 : index
    %325 = vector.load %arg10[%c11_248, %c0_249] : memref<56x256xf32, #tpu.memory_space<vmem>>, vector<36x256xf32>
    %c5_250 = arith.constant 5 : index
    %c0_251 = arith.constant 0 : index
    %326 = vector.load %arg5[%c5_250, %c0_251] : memref<9x256xf32, #tpu.memory_space<vmem>>, vector<1x256xf32>
    %327 = vector.broadcast %326 : vector<1x256xf32> to vector<36x256xf32>
    %328 = arith.mulf %325, %327 : vector<36x256xf32>
    %329 = arith.addf %324, %328 : vector<36x256xf32>
    %c18_252 = arith.constant 18 : index
    %c0_253 = arith.constant 0 : index
    %330 = vector.load %arg10[%c18_252, %c0_253] : memref<56x256xf32, #tpu.memory_space<vmem>>, vector<36x256xf32>
    %c6_254 = arith.constant 6 : index
    %c0_255 = arith.constant 0 : index
    %331 = vector.load %arg5[%c6_254, %c0_255] : memref<9x256xf32, #tpu.memory_space<vmem>>, vector<1x256xf32>
    %332 = vector.broadcast %331 : vector<1x256xf32> to vector<36x256xf32>
    %333 = arith.mulf %330, %332 : vector<36x256xf32>
    %334 = arith.addf %329, %333 : vector<36x256xf32>
    %c19_256 = arith.constant 19 : index
    %c0_257 = arith.constant 0 : index
    %335 = vector.load %arg10[%c19_256, %c0_257] : memref<56x256xf32, #tpu.memory_space<vmem>>, vector<36x256xf32>
    %c7_258 = arith.constant 7 : index
    %c0_259 = arith.constant 0 : index
    %336 = vector.load %arg5[%c7_258, %c0_259] : memref<9x256xf32, #tpu.memory_space<vmem>>, vector<1x256xf32>
    %337 = vector.broadcast %336 : vector<1x256xf32> to vector<36x256xf32>
    %338 = arith.mulf %335, %337 : vector<36x256xf32>
    %339 = arith.addf %334, %338 : vector<36x256xf32>
    %c20_260 = arith.constant 20 : index
    %c0_261 = arith.constant 0 : index
    %340 = vector.load %arg10[%c20_260, %c0_261] : memref<56x256xf32, #tpu.memory_space<vmem>>, vector<36x256xf32>
    %c8_262 = arith.constant 8 : index
    %c0_263 = arith.constant 0 : index
    %341 = vector.load %arg5[%c8_262, %c0_263] : memref<9x256xf32, #tpu.memory_space<vmem>>, vector<1x256xf32>
    %342 = vector.broadcast %341 : vector<1x256xf32> to vector<36x256xf32>
    %343 = arith.mulf %340, %342 : vector<36x256xf32>
    %344 = arith.addf %339, %343 : vector<36x256xf32>
    %cst_264 = arith.constant dense<0.000000e+00> : vector<36xf32>
    %345 = vector.multi_reduction <add>, %344, %cst_264 [1] : vector<36x256xf32> to vector<36xf32>
    %346 = vector.shape_cast %345 : vector<36xf32> to vector<36x1xf32>
    %c7_265 = arith.constant 7 : index
    %c0_266 = arith.constant 0 : index
    %347 = vector.load %arg6[%c7_265, %c0_266] : memref<8x256xf32, #tpu.memory_space<vmem>>, vector<1x1xf32>
    %348 = vector.broadcast %347 : vector<1x1xf32> to vector<36x1xf32>
    %349 = arith.addf %346, %348 : vector<36x1xf32>
    %cst_267 = arith.constant 0.000000e+00 : f32
    %350 = vector.broadcast %cst_267 : f32 to vector<36x1xf32>
    %351 = arith.subf %350, %349 : vector<36x1xf32>
    %352 = math.exp %351 : vector<36x1xf32>
    %cst_268 = arith.constant 1.000000e+00 : f32
    %353 = vector.broadcast %cst_268 : f32 to vector<36x1xf32>
    %354 = arith.addf %353, %352 : vector<36x1xf32>
    %355 = tpu.reciprocal %354 : vector<36x1xf32> -> vector<36x1xf32>
    %356 = vector.extract_strided_slice %355 {offsets = [0, 0], sizes = [4, 1], strides = [1, 1]} : vector<36x1xf32> to vector<4x1xf32>
    %c0_269 = arith.constant 0 : index
    %c0_270 = arith.constant 0 : index
    %c0_271 = arith.constant 0 : index
    %357 = vector.load %arg7[%c0_269, %c0_270, %c0_271] : memref<1x16x1xf32, #tpu.memory_space<vmem>>, vector<1x4x1xf32>
    %358 = vector.shape_cast %357 : vector<1x4x1xf32> to vector<4x1xf32>
    %359 = vector.shape_cast %356 : vector<4x1xf32> to vector<1x4x1xf32>
    tpu.vector_store %arg7[%c0_269, %c0_270, %c0_271], %359 {strides = array<i32>} : memref<1x16x1xf32, #tpu.memory_space<vmem>>, vector<1x4x1xf32>,
    %360 = vector.extract_strided_slice %355 {offsets = [9, 0], sizes = [4, 1], strides = [1, 1]} : vector<36x1xf32> to vector<4x1xf32>
    %c0_272 = arith.constant 0 : index
    %c4_273 = arith.constant 4 : index
    %c0_274 = arith.constant 0 : index
    %361 = vector.load %arg7[%c0_272, %c4_273, %c0_274] : memref<1x16x1xf32, #tpu.memory_space<vmem>>, vector<1x4x1xf32>
    %362 = vector.shape_cast %361 : vector<1x4x1xf32> to vector<4x1xf32>
    %363 = vector.shape_cast %360 : vector<4x1xf32> to vector<1x4x1xf32>
    tpu.vector_store %arg7[%c0_272, %c4_273, %c0_274], %363 {strides = array<i32>} : memref<1x16x1xf32, #tpu.memory_space<vmem>>, vector<1x4x1xf32>,
    %364 = vector.extract_strided_slice %355 {offsets = [18, 0], sizes = [4, 1], strides = [1, 1]} : vector<36x1xf32> to vector<4x1xf32>
    %c0_275 = arith.constant 0 : index
    %c8_276 = arith.constant 8 : index
    %c0_277 = arith.constant 0 : index
    %365 = vector.load %arg7[%c0_275, %c8_276, %c0_277] : memref<1x16x1xf32, #tpu.memory_space<vmem>>, vector<1x4x1xf32>
    %366 = vector.shape_cast %365 : vector<1x4x1xf32> to vector<4x1xf32>
    %367 = vector.shape_cast %364 : vector<4x1xf32> to vector<1x4x1xf32>
    tpu.vector_store %arg7[%c0_275, %c8_276, %c0_277], %367 {strides = array<i32>} : memref<1x16x1xf32, #tpu.memory_space<vmem>>, vector<1x4x1xf32>,
    %368 = vector.extract_strided_slice %355 {offsets = [27, 0], sizes = [4, 1], strides = [1, 1]} : vector<36x1xf32> to vector<4x1xf32>
    %c0_278 = arith.constant 0 : index
    %c12 = arith.constant 12 : index
    %c0_279 = arith.constant 0 : index
    %369 = vector.load %arg7[%c0_278, %c12, %c0_279] : memref<1x16x1xf32, #tpu.memory_space<vmem>>, vector<1x4x1xf32>
    %370 = vector.shape_cast %369 : vector<1x4x1xf32> to vector<4x1xf32>
    %371 = vector.shape_cast %368 : vector<4x1xf32> to vector<1x4x1xf32>
    tpu.vector_store %arg7[%c0_278, %c12, %c0_279], %371 {strides = array<i32>} : memref<1x16x1xf32, #tpu.memory_space<vmem>>, vector<1x4x1xf32>,
    return
  }
  func.func @transform_0(%arg0: i32) -> (i32, i32, i32) {
    %c0_i32 = arith.constant 0 : i32
    %c0_i32_0 = arith.constant 0 : i32
    %c0_i32_1 = arith.constant 0 : i32
    return %arg0, %c0_i32, %c0_i32_0 : i32, i32, i32
  }
  func.func @transform_1(%arg0: i32) -> (i32, i32) {
    %c0_i32 = arith.constant 0 : i32
    %c0_i32_0 = arith.constant 0 : i32
    %c0_i32_1 = arith.constant 0 : i32
    return %c0_i32, %c0_i32_0 : i32, i32
  }
  func.func @transform_2(%arg0: i32) -> (i32, i32, i32) {
    %c0_i32 = arith.constant 0 : i32
    %c0_i32_0 = arith.constant 0 : i32
    %c0_i32_1 = arith.constant 0 : i32
    %c0_i32_2 = arith.constant 0 : i32
    return %c0_i32, %c0_i32_0, %c0_i32_1 : i32, i32, i32
  }
  func.func @transform_3(%arg0: i32) -> (i32, i32, i32) {
    %c0_i32 = arith.constant 0 : i32
    %c0_i32_0 = arith.constant 0 : i32
    %c0_i32_1 = arith.constant 0 : i32
    %c0_i32_2 = arith.constant 0 : i32
    return %c0_i32, %c0_i32_0, %c0_i32_1 : i32, i32, i32
  }
  func.func @transform_4(%arg0: i32) -> (i32, i32) {
    %c0_i32 = arith.constant 0 : i32
    %c0_i32_0 = arith.constant 0 : i32
    %c0_i32_1 = arith.constant 0 : i32
    return %c0_i32, %c0_i32_0 : i32, i32
  }
  func.func @transform_5(%arg0: i32) -> (i32, i32) {
    %c0_i32 = arith.constant 0 : i32
    %c0_i32_0 = arith.constant 0 : i32
    %c0_i32_1 = arith.constant 0 : i32
    return %c0_i32, %c0_i32_0 : i32, i32
  }
  func.func @transform_6(%arg0: i32) -> (i32, i32, i32) {
    %c0_i32 = arith.constant 0 : i32
    %c0_i32_0 = arith.constant 0 : i32
    %c0_i32_1 = arith.constant 0 : i32
    return %arg0, %c0_i32, %c0_i32_0 : i32, i32, i32
  }
}

</mosaic_0001>

<llo_original>
// kernel: discriminator_forward.1
$region0: #{discriminator_forward.1}
  #allocation0 [shape = 'u32[]', space=smem, size = 0x4, offset = 0x4, fixed_abs, tag = 'smem constant byte address 0x4 - core index']
  #allocation1 [shape = 'u32[144,128]{1,0:T(1,128)}', space=vmem, size = 0x12000, scoped, tag = 'internal scratch']
  #allocation2 [shape = 'f32[4,88,64]{2,1,0:T(8,128)}', space=vmem, size = 0x2c000, scoped, tag = 'scratch operand']
  #allocation3 [shape = 'f32[80,128]{1,0:T(8,128)}', space=vmem, size = 0xa000, scoped, tag = 'scratch operand']
  #allocation4 [shape = 'f32[56,256]{1,0:T(8,128)}', space=vmem, size = 0xe000, scoped, tag = 'scratch operand']
  %s0 = inlined_call_operand.vmem [shape: bf16[2,256,64], index: 0, kind: input, shape index: {}]
  %s1 = inlined_call_operand.vmem [shape: bf16[64,64], index: 1, kind: input, shape index: {}]
  %s2 = inlined_call_operand.vmem [shape: bf16[9,64,128], index: 2, kind: input, shape index: {}]
  %s3 = inlined_call_operand.vmem [shape: bf16[9,128,256], index: 3, kind: input, shape index: {}]
  %s4 = inlined_call_operand.vmem [shape: f32[9,256], index: 4, kind: input, shape index: {}]
  %s5 = inlined_call_operand.vmem [shape: f32[8,256], index: 5, kind: input, shape index: {}]
  %s6 = inlined_call_operand.vmem [shape: f32[2,16,1], index: 6, kind: output, shape index: {}]
  %s7 = sld [smem:[#allocation0]]
  $region57: #{discriminator_forward.1} parent=0
    _
  %s9 = ssub.s32 1, %s7
  %s10 = scalar_select 0, %s9, %s7
  loop: start=0, step=1, limit=4
  $region2: #{discriminator_forward.1} parent=0 // loop_pre_header
    _
  $region3: #{discriminator_forward.1} parent=0 // loop_header
    %s12 = sphi 0, %s16
    %p13 = scmp.ge.s32.totalorder %s12, 4
    %s22 = sphi 0, %s24
    %s25 = sphi 0, %s22
    %s26 = sphi 0, %s25
    %s42 = sphi 0, %s26
    %s46 = sphi 0, %s46
    %s48 = sphi 0, %s46
    %s49 = sphi 0, %s48
    %s63 = sphi 0, %s49
    %s67 = sphi 0, %s67
    %s69 = sphi 0, %s67
    %s70 = sphi 0, %s69
    %s84 = sphi 0, %s70
    %s88 = sphi 0, %s88
    %s90 = sphi 0, %s88
    %s91 = sphi 0, %s90
    %s105 = sphi 0, %s91
    %s109 = sphi 0, %s109
    %s111 = sphi 0, %s109
    %s112 = sphi 0, %s111
    %s126 = sphi 0, %s112
    %s130 = sphi 0, %s130
    %s132 = sphi 0, %s130
    %s133 = sphi 0, %s132
    %s147 = sphi 0, %s133
    %s153 = sphi 0, %s155
    %s156 = sphi 0, %s153
    %s157 = sphi 0, %s156
    %s173 = sphi 0, %s157
  $region4: #{discriminator_forward.1} parent=0 // loop_header_branch
    %15 = sbr.rel (%p13) target = $region8
  $region5: #{discriminator_forward.1} parent=0 // loop_body
    %s17 = ssub.s32 %s12, 1
    %s18 = ssub.s32 %s12, 2
    %s19 = sadd.s32 %s12, 1
    %s20 = ssub.s32 %s12, %s19
    %p21 = scmp.eq.s32.totalorder %s20, 0
    %s23 = sadd.s32 %s22, 1
    %s24 = scalar_select %p21, %s22, %s23
    %p27 = pneg %p21
    %p28 = scmp.eq.s32.totalorder %s12, 1
    %p29 = por %p27, %p28
    %p30 = scmp.ne.s32.totalorder %s22, %s25
    %p31 = scmp.eq.s32.totalorder %s12, 0
    %p32 = por %p30, %p31
    %p33 = scmp.ne.s32.totalorder %s22, %s25
    %p34 = scmp.eq.s32.totalorder %s17, 1
    %p35 = por %p33, %p34
    %p36 = scmp.ne.s32.totalorder %s25, %s26
    %p37 = scmp.eq.s32.totalorder %s17, 0
    %p38 = por %p36, %p37
    %p39 = scmp.ne.s32.totalorder %s25, %s26
    %p40 = scmp.eq.s32.totalorder %s18, 1
    %p41 = por %p39, %p40
    %p43 = scmp.ne.s32.totalorder %s26, %s42
    %p44 = scmp.eq.s32.totalorder %s18, 0
    %p45 = por %p43, %p44
    %s47 = sadd.s32 %s46, 1
    %p50 = scmp.eq.s32.totalorder %s12, 1
    %p51 = scmp.ne.s32.totalorder %s46, %s48
    %p52 = scmp.eq.s32.totalorder %s12, 0
    %p53 = por %p51, %p52
    %p54 = scmp.ne.s32.totalorder %s46, %s48
    %p55 = scmp.eq.s32.totalorder %s17, 1
    %p56 = por %p54, %p55
    %p57 = scmp.ne.s32.totalorder %s48, %s49
    %p58 = scmp.eq.s32.totalorder %s17, 0
    %p59 = por %p57, %p58
    %p60 = scmp.ne.s32.totalorder %s48, %s49
    %p61 = scmp.eq.s32.totalorder %s18, 1
    %p62 = por %p60, %p61
    %p64 = scmp.ne.s32.totalorder %s49, %s63
    %p65 = scmp.eq.s32.totalorder %s18, 0
    %p66 = por %p64, %p65
    %s68 = sadd.s32 %s67, 1
    %p71 = scmp.eq.s32.totalorder %s12, 1
    %p72 = scmp.ne.s32.totalorder %s67, %s69
    %p73 = scmp.eq.s32.totalorder %s12, 0
    %p74 = por %p72, %p73
    %p75 = scmp.ne.s32.totalorder %s67, %s69
    %p76 = scmp.eq.s32.totalorder %s17, 1
    %p77 = por %p75, %p76
    %p78 = scmp.ne.s32.totalorder %s69, %s70
    %p79 = scmp.eq.s32.totalorder %s17, 0
    %p80 = por %p78, %p79
    %p81 = scmp.ne.s32.totalorder %s69, %s70
    %p82 = scmp.eq.s32.totalorder %s18, 1
    %p83 = por %p81, %p82
    %p85 = scmp.ne.s32.totalorder %s70, %s84
    %p86 = scmp.eq.s32.totalorder %s18, 0
    %p87 = por %p85, %p86
    %s89 = sadd.s32 %s88, 1
    %p92 = scmp.eq.s32.totalorder %s12, 1
    %p93 = scmp.ne.s32.totalorder %s88, %s90
    %p94 = scmp.eq.s32.totalorder %s12, 0
    %p95 = por %p93, %p94
    %p96 = scmp.ne.s32.totalorder %s88, %s90
    %p97 = scmp.eq.s32.totalorder %s17, 1
    %p98 = por %p96, %p97
    %p99 = scmp.ne.s32.totalorder %s90, %s91
    %p100 = scmp.eq.s32.totalorder %s17, 0
    %p101 = por %p99, %p100
    %p102 = scmp.ne.s32.totalorder %s90, %s91
    %p103 = scmp.eq.s32.totalorder %s18, 1
    %p104 = por %p102, %p103
    %p106 = scmp.ne.s32.totalorder %s91, %s105
    %p107 = scmp.eq.s32.totalorder %s18, 0
    %p108 = por %p106, %p107
    %s110 = sadd.s32 %s109, 1
    %p113 = scmp.eq.s32.totalorder %s12, 1
    %p114 = scmp.ne.s32.totalorder %s109, %s111
    %p115 = scmp.eq.s32.totalorder %s12, 0
    %p116 = por %p114, %p115
    %p117 = scmp.ne.s32.totalorder %s109, %s111
    %p118 = scmp.eq.s32.totalorder %s17, 1
    %p119 = por %p117, %p118
    %p120 = scmp.ne.s32.totalorder %s111, %s112
    %p121 = scmp.eq.s32.totalorder %s17, 0
    %p122 = por %p120, %p121
    %p123 = scmp.ne.s32.totalorder %s111, %s112
    %p124 = scmp.eq.s32.totalorder %s18, 1
    %p125 = por %p123, %p124
    %p127 = scmp.ne.s32.totalorder %s112, %s126
    %p128 = scmp.eq.s32.totalorder %s18, 0
    %p129 = por %p127, %p128
    %s131 = sadd.s32 %s130, 1
    %p134 = scmp.eq.s32.totalorder %s12, 1
    %p135 = scmp.ne.s32.totalorder %s130, %s132
    %p136 = scmp.eq.s32.totalorder %s12, 0
    %p137 = por %p135, %p136
    %p138 = scmp.ne.s32.totalorder %s130, %s132
    %p139 = scmp.eq.s32.totalorder %s17, 1
    %p140 = por %p138, %p139
    %p141 = scmp.ne.s32.totalorder %s132, %s133
    %p142 = scmp.eq.s32.totalorder %s17, 0
    %p143 = por %p141, %p142
    %p144 = scmp.ne.s32.totalorder %s132, %s133
    %p145 = scmp.eq.s32.totalorder %s18, 1
    %p146 = por %p144, %p145
    %p148 = scmp.ne.s32.totalorder %s133, %s147
    %p149 = scmp.eq.s32.totalorder %s18, 0
    %p150 = por %p148, %p149
    %s151 = ssub.s32 %s12, %s19
    %p152 = scmp.eq.s32.totalorder %s151, 0
    %s154 = sadd.s32 %s153, 1
    %s155 = scalar_select %p152, %s153, %s154
    %p158 = pneg %p152
    %p159 = scmp.eq.s32.totalorder %s12, 1
    %p160 = por %p158, %p159
    %p161 = scmp.ne.s32.totalorder %s153, %s156
    %p162 = scmp.eq.s32.totalorder %s12, 0
    %p163 = por %p161, %p162
    %p164 = scmp.ne.s32.totalorder %s153, %s156
    %p165 = scmp.eq.s32.totalorder %s17, 1
    %p166 = por %p164, %p165
    %p167 = scmp.ne.s32.totalorder %s156, %s157
    %p168 = scmp.eq.s32.totalorder %s17, 0
    %p169 = por %p167, %p168
    %p170 = scmp.ne.s32.totalorder %s156, %s157
    %p171 = scmp.eq.s32.totalorder %s18, 1
    %p172 = por %p170, %p171
    %p174 = scmp.ne.s32.totalorder %s157, %s173
    %p175 = scmp.eq.s32.totalorder %s18, 0
    %p176 = por %p174, %p175
    %p177 = scmp.le.s32.totalorder 1, %s12
    %p178 = scmp.lt.s32.totalorder %s12, 3
    %p179 = pnand %p177, %p178
    %p180 = pneg %p179
    // Predicated region
    $region9: #{discriminator_forward.1} parent=5 // pred_check
      _
    $region10: #{discriminator_forward.1} parent=5 // pred_check_branch
      %182 = sbr.rel (%p179) target = $region12
    $region11: #{discriminator_forward.1} parent=5 // pred_region
      %s183 = ssub.s32 %s12, 1
      // Predicated region
      $region13: #{discriminator_forward.1} parent=11 // pred_check
        %p184 = pneg %p59
      $region14: #{discriminator_forward.1} parent=11 // pred_check_branch
        %186 = sbr.rel (%p184) target = $region16
      $region15: #{discriminator_forward.1} parent=11 // pred_region
        _
      $region16: #{discriminator_forward.1} parent=11 // pred_fallthru
        _
      // Predicated region
      $region17: #{discriminator_forward.1} parent=11 // pred_check
        %p187 = pneg %p80
      $region18: #{discriminator_forward.1} parent=11 // pred_check_branch
        %189 = sbr.rel (%p187) target = $region20
      $region19: #{discriminator_forward.1} parent=11 // pred_region
        _
      $region20: #{discriminator_forward.1} parent=11 // pred_fallthru
        _
      // Predicated region
      $region21: #{discriminator_forward.1} parent=11 // pred_check
        %p190 = pneg %p101
      $region22: #{discriminator_forward.1} parent=11 // pred_check_branch
        %192 = sbr.rel (%p190) target = $region24
      $region23: #{discriminator_forward.1} parent=11 // pred_region
        _
      $region24: #{discriminator_forward.1} parent=11 // pred_fallthru
        _
      // Predicated region
      $region25: #{discriminator_forward.1} parent=11 // pred_check
        %p193 = pneg %p122
      $region26: #{discriminator_forward.1} parent=11 // pred_check_branch
        %195 = sbr.rel (%p193) target = $region28
      $region27: #{discriminator_forward.1} parent=11 // pred_region
        _
      $region28: #{discriminator_forward.1} parent=11 // pred_fallthru
        _
      // Predicated region
      $region29: #{discriminator_forward.1} parent=11 // pred_check
        %p196 = pneg %p143
      $region30: #{discriminator_forward.1} parent=11 // pred_check_branch
        %198 = sbr.rel (%p196) target = $region32
      $region31: #{discriminator_forward.1} parent=11 // pred_region
        _
      $region32: #{discriminator_forward.1} parent=11 // pred_fallthru
        _
    $region12: #{discriminator_forward.1} parent=5 // pred_fallthru
      _
    %p199 = scmp.lt.s32.totalorder %s12, 2
    // Predicated region
    $region33: #{discriminator_forward.1} parent=5 // pred_check
      %p200 = pneg %p199
    $region34: #{discriminator_forward.1} parent=5 // pred_check_branch
      %202 = sbr.rel (%p200) target = $region36
    $region35: #{discriminator_forward.1} parent=5 // pred_region
      // Predicated region
      $region37: #{discriminator_forward.1} parent=35 // pred_check
        %p203 = pneg %p32
      $region38: #{discriminator_forward.1} parent=35 // pred_check_branch
        %205 = sbr.rel (%p203) target = $region40
      $region39: #{discriminator_forward.1} parent=35 // pred_region
        %p206 = scmp.lt.s32.totalorder %s12, 1
        %s207 = scalar_select %p206, %s12, 1
        %s208 = smul.addr %s207, 32
        %s209 = smul.addr %s208, 4
        %s210 = scalar_lea.vmem %s0, %s209
      $region40: #{discriminator_forward.1} parent=35 // pred_fallthru
        _
    $region36: #{discriminator_forward.1} parent=5 // pred_fallthru
      _
    %p211 = scmp.le.s32.totalorder 1, %s12
    %p212 = scmp.lt.s32.totalorder %s12, 3
    %p213 = pnand %p211, %p212
    %p214 = pneg %p213
    // Predicated region
    $region41: #{discriminator_forward.1} parent=5 // pred_check
      _
    $region42: #{discriminator_forward.1} parent=5 // pred_check_branch
      %216 = sbr.rel (%p213) target = $region44
    $region43: #{discriminator_forward.1} parent=5 // pred_region
      %s217 = ssub.s32 %s12, 1
      %p218 = scmp.lt.s32.totalorder %s17, 1
      %s219 = scalar_select %p218, %s17, 1
      %s220 = smul.addr %s219, 32
      %s221 = smul.addr %s220, 4
      %s222 = scalar_lea.vmem %s0, %s221
      %p223 = pneg %p38
      %p224 = pneg %p35
      %p225 = pneg %p59
      %p226 = pneg %p56
      %p227 = pneg %p80
      %p228 = pneg %p77
      %p229 = pneg %p101
      %p230 = pneg %p98
      %p231 = pneg %p122
      %p232 = pneg %p119
      %p233 = pneg %p143
      %p234 = pneg %p140
      %p235 = pneg %p169
      %p236 = pneg %p166
      %p237 = scmp.lt.s32.totalorder %s17, 1
      %s238 = scalar_select %p237, %s17, 1
      %s239 = smul.addr %s238, 2
      %s240 = smul.addr %s239, 8
      %s241 = scalar_lea.vmem %s6, %s240
      %p242 = scmp.lt.s32.totalorder %s17, 1
      %s243 = scalar_select %p242, %s17, 1
      %s244 = smul.addr %s243, 32
      %s245 = smul.addr %s244, 4
      %s246 = scalar_lea.vmem %s0, %s245
      %p247 = scmp.lt.s32.totalorder %s17, 1
      %s248 = scalar_select %p247, %s17, 1
      %s249 = smul.addr %s248, 2
      %s250 = smul.addr %s249, 8
      %s251 = scalar_lea.vmem %s6, %s250
      %vm253 = vcmask 523264
      %254 = vst.msk [vmem:[#allocation2] sm:$0xff] %vm253, 0.0
      %255 = vst.msk [vmem:[#allocation2 + $0x8] sm:$0xff] %vm253, 0.0
      %256 = vst.msk [vmem:[#allocation2 + $0x10] sm:$0xff] %vm253, 0.0
      %257 = vst.msk [vmem:[#allocation2 + $0x18] sm:$0xff] %vm253, 0.0
      %258 = vst.msk [vmem:[#allocation2 + $0x20] sm:$0xff] %vm253, 0.0
      %259 = vst.msk [vmem:[#allocation2 + $0x28] sm:$0xff] %vm253, 0.0
      %260 = vst.msk [vmem:[#allocation2 + $0x30] sm:$0xff] %vm253, 0.0
      %261 = vst.msk [vmem:[#allocation2 + $0x38] sm:$0xff] %vm253, 0.0
      %262 = vst.msk [vmem:[#allocation2 + $0x40] sm:$0xff] %vm253, 0.0
      %263 = vst.msk [vmem:[#allocation2 + $0x48] sm:$0xff] %vm253, 0.0
      %264 = vst.msk [vmem:[#allocation2 + $0x50] sm:$0xff] %vm253, 0.0
      %265 = vst.msk [vmem:[#allocation2 + $0x58] sm:$0xff] %vm253, 0.0
      %266 = vst.msk [vmem:[#allocation2 + $0x60] sm:$0xff] %vm253, 0.0
      %267 = vst.msk [vmem:[#allocation2 + $0x68] sm:$0xff] %vm253, 0.0
      %268 = vst.msk [vmem:[#allocation2 + $0x70] sm:$0xff] %vm253, 0.0
      %269 = vst.msk [vmem:[#allocation2 + $0x78] sm:$0xff] %vm253, 0.0
      %270 = vst.msk [vmem:[#allocation2 + $0x80] sm:$0xff] %vm253, 0.0
      %271 = vst.msk [vmem:[#allocation2 + $0x88] sm:$0xff] %vm253, 0.0
      %272 = vst.msk [vmem:[#allocation2 + $0x90] sm:$0xff] %vm253, 0.0
      %273 = vst.msk [vmem:[#allocation2 + $0x98] sm:$0xff] %vm253, 0.0
      %274 = vst.msk [vmem:[#allocation2 + $0xa0] sm:$0xff] %vm253, 0.0
      %275 = vst.msk [vmem:[#allocation2 + $0xa8] sm:$0xff] %vm253, 0.0
      %276 = vst.msk [vmem:[#allocation2 + $0xb0] sm:$0xff] %vm253, 0.0
      %277 = vst.msk [vmem:[#allocation2 + $0xb8] sm:$0xff] %vm253, 0.0
      %278 = vst.msk [vmem:[#allocation2 + $0xc0] sm:$0xff] %vm253, 0.0
      %279 = vst.msk [vmem:[#allocation2 + $0xc8] sm:$0xff] %vm253, 0.0
      %280 = vst.msk [vmem:[#allocation2 + $0xd0] sm:$0xff] %vm253, 0.0
      %281 = vst.msk [vmem:[#allocation2 + $0xd8] sm:$0xff] %vm253, 0.0
      %282 = vst.msk [vmem:[#allocation2 + $0xe0] sm:$0xff] %vm253, 0.0
      %283 = vst.msk [vmem:[#allocation2 + $0xe8] sm:$0xff] %vm253, 0.0
      %284 = vst.msk [vmem:[#allocation2 + $0xf0] sm:$0xff] %vm253, 0.0
      %285 = vst.msk [vmem:[#allocation2 + $0xf8] sm:$0xff] %vm253, 0.0
      %286 = vst.msk [vmem:[#allocation2 + $0x100] sm:$0xff] %vm253, 0.0
      %287 = vst.msk [vmem:[#allocation2 + $0x108] sm:$0xff] %vm253, 0.0
      %288 = vst.msk [vmem:[#allocation2 + $0x110] sm:$0xff] %vm253, 0.0
      %289 = vst.msk [vmem:[#allocation2 + $0x118] sm:$0xff] %vm253, 0.0
      %290 = vst.msk [vmem:[#allocation2 + $0x120] sm:$0xff] %vm253, 0.0
      %291 = vst.msk [vmem:[#allocation2 + $0x128] sm:$0xff] %vm253, 0.0
      %292 = vst.msk [vmem:[#allocation2 + $0x130] sm:$0xff] %vm253, 0.0
      %293 = vst.msk [vmem:[#allocation2 + $0x138] sm:$0xff] %vm253, 0.0
      %294 = vst.msk [vmem:[#allocation2 + $0x140] sm:$0xff] %vm253, 0.0
      %295 = vst.msk [vmem:[#allocation2 + $0x148] sm:$0xff] %vm253, 0.0
      %296 = vst.msk [vmem:[#allocation2 + $0x150] sm:$0xff] %vm253, 0.0
      %297 = vst.msk [vmem:[#allocation2 + $0x158] sm:$0xff] %vm253, 0.0
      %298 = vst [vmem:[#allocation3] sm:$0xff] 0.0
      %299 = vst [vmem:[#allocation3 + $0x8] sm:$0xff] 0.0
      %300 = vst [vmem:[#allocation3 + $0x10] sm:$0xff] 0.0
      %301 = vst [vmem:[#allocation3 + $0x18] sm:$0xff] 0.0
      %302 = vst [vmem:[#allocation3 + $0x20] sm:$0xff] 0.0
      %303 = vst [vmem:[#allocation3 + $0x28] sm:$0xff] 0.0
      %304 = vst [vmem:[#allocation3 + $0x30] sm:$0xff] 0.0
      %305 = vst [vmem:[#allocation3 + $0x38] sm:$0xff] 0.0
      %306 = vst [vmem:[#allocation3 + $0x40] sm:$0xff] 0.0
      %307 = vst [vmem:[#allocation3 + $0x48] sm:$0xff] 0.0
      %308 = vst [vmem:[#allocation4] sm:$0xff] 0.0
      %309 = vst [vmem:[#allocation4 + $0x8] sm:$0xff] 0.0
      %310 = vst [vmem:[#allocation4 + $0x10] sm:$0xff] 0.0
      %311 = vst [vmem:[#allocation4 + $0x18] sm:$0xff] 0.0
      %312 = vst [vmem:[#allocation4 + $0x20] sm:$0xff] 0.0
      %313 = vst [vmem:[#allocation4 + $0x28] sm:$0xff] 0.0
      %314 = vst [vmem:[#allocation4 + $0x30] sm:$0xff] 0.0
      %315 = vst [vmem:[#allocation4 + $0x38] sm:$0xff] 0.0
      %316 = vst [vmem:[#allocation4 + $0x40] sm:$0xff] 0.0
      %317 = vst [vmem:[#allocation4 + $0x48] sm:$0xff] 0.0
      %318 = vst [vmem:[#allocation4 + $0x50] sm:$0xff] 0.0
      %319 = vst [vmem:[#allocation4 + $0x58] sm:$0xff] 0.0
      %320 = vst [vmem:[#allocation4 + $0x60] sm:$0xff] 0.0
      %321 = vst [vmem:[#allocation4 + $0x68] sm:$0xff] 0.0
      %v322 = vld [vmem:[%s246] sm:$0xf]
      %v323 = vld [vmem:[%s246 + $0x4] sm:$0xf]
      %v324 = vld [vmem:[%s246 + $0x8] sm:$0xf]
      %v325 = vld [vmem:[%s246 + $0xc] sm:$0xf]
      %v326 = vld [vmem:[%s246 + $0x10] sm:$0xf]
      %v327 = vld [vmem:[%s246 + $0x14] sm:$0xf]
      %v328 = vld [vmem:[%s246 + $0x18] sm:$0xf]
      %v329 = vld [vmem:[%s246 + $0x1c] sm:$0xf]
      %v330 = vld [vmem:[%s246 + $0x20] sm:$0xf]
      %v331 = vld [vmem:[%s246 + $0x24] sm:$0xf]
      %v332 = vld [vmem:[%s246 + $0x28] sm:$0xf]
      %v333 = vld [vmem:[%s246 + $0x2c] sm:$0xf]
      %v334 = vld [vmem:[%s246 + $0x30] sm:$0xf]
      %v335 = vld [vmem:[%s246 + $0x34] sm:$0xf]
      %v336 = vld [vmem:[%s246 + $0x38] sm:$0xf]
      %v337 = vld [vmem:[%s246 + $0x3c] sm:$0xf]
      %v338 = vld [vmem:[%s246 + $0x40] sm:$0xf]
      %v339 = vld [vmem:[%s246 + $0x44] sm:$0xf]
      %v340 = vld [vmem:[%s246 + $0x48] sm:$0xf]
      %v341 = vld [vmem:[%s246 + $0x4c] sm:$0xf]
      %v342 = vld [vmem:[%s246 + $0x50] sm:$0xf]
      %v343 = vld [vmem:[%s246 + $0x54] sm:$0xf]
      %v344 = vld [vmem:[%s246 + $0x58] sm:$0xf]
      %v345 = vld [vmem:[%s246 + $0x5c] sm:$0xf]
      %v346 = vld [vmem:[%s246 + $0x60] sm:$0xf]
      %v347 = vld [vmem:[%s246 + $0x64] sm:$0xf]
      %v348 = vld [vmem:[%s246 + $0x68] sm:$0xf]
      %v349 = vld [vmem:[%s246 + $0x6c] sm:$0xf]
      %v350 = vld [vmem:[%s246 + $0x70] sm:$0xf]
      %v351 = vld [vmem:[%s246 + $0x74] sm:$0xf]
      %v352 = vld [vmem:[%s246 + $0x78] sm:$0xf]
      %v353 = vld [vmem:[%s246 + $0x7c] sm:$0xf]
      %v354 = vld [vmem:[%s1] sm:$0xf]
      %v355 = vld [vmem:[%s1 + $0x4] sm:$0xf]
      %v356 = vld [vmem:[%s1 + $0x8] sm:$0xf]
      %v357 = vld [vmem:[%s1 + $0xc] sm:$0xf]
      %v358 = vld [vmem:[%s1 + $0x10] sm:$0xf]
      %v359 = vld [vmem:[%s1 + $0x14] sm:$0xf]
      %v360 = vld [vmem:[%s1 + $0x18] sm:$0xf]
      %v361 = vld [vmem:[%s1 + $0x1c] sm:$0xf]
      %v362 = vld [vmem:[%s5] ss:$0 sm:$0xff]
      %v395 = vunpack.c.l.b16 %v322
      %v396 = vunpack.c.l.b16 %v323
      %v397 = vunpack.c.l.b16 %v324
      %v398 = vunpack.c.l.b16 %v325
      %v399 = vunpack.c.l.b16 %v326
      %v400 = vunpack.c.l.b16 %v327
      %v401 = vunpack.c.l.b16 %v328
      %v402 = vunpack.c.l.b16 %v329
      %v403 = vunpack.c.l.b16 %v330
      %v404 = vunpack.c.l.b16 %v331
      %v405 = vunpack.c.l.b16 %v332
      %v406 = vunpack.c.l.b16 %v333
      %v407 = vunpack.c.l.b16 %v334
      %v408 = vunpack.c.l.b16 %v335
      %v409 = vunpack.c.l.b16 %v336
      %v410 = vunpack.c.l.b16 %v337
      %v411 = vunpack.c.l.b16 %v338
      %v412 = vunpack.c.l.b16 %v339
      %v413 = vunpack.c.l.b16 %v340
      %v414 = vunpack.c.l.b16 %v341
      %v415 = vunpack.c.l.b16 %v342
      %v416 = vunpack.c.l.b16 %v343
      %v417 = vunpack.c.l.b16 %v344
      %v418 = vunpack.c.l.b16 %v345
      %v419 = vunpack.c.l.b16 %v346
      %v420 = vunpack.c.l.b16 %v347
      %v421 = vunpack.c.l.b16 %v348
      %v422 = vunpack.c.l.b16 %v349
      %v423 = vunpack.c.l.b16 %v350
      %v424 = vunpack.c.l.b16 %v351
      %v425 = vunpack.c.l.b16 %v352
      %v426 = vunpack.c.l.b16 %v353
      %v427 = vpack.c.b16 %v396, %v395
      %v428 = vpack.c.b16 %v398, %v397
      %v429 = vpack.c.b16 %v400, %v399
      %v430 = vpack.c.b16 %v402, %v401
      %v431 = vpack.c.b16 %v404, %v403
      %v432 = vpack.c.b16 %v406, %v405
      %v433 = vpack.c.b16 %v408, %v407
      %v434 = vpack.c.b16 %v410, %v409
      %v435 = vpack.c.b16 %v412, %v411
      %v436 = vpack.c.b16 %v414, %v413
      %v437 = vpack.c.b16 %v416, %v415
      %v438 = vpack.c.b16 %v418, %v417
      %v439 = vpack.c.b16 %v420, %v419
      %v440 = vpack.c.b16 %v422, %v421
      %v441 = vpack.c.b16 %v424, %v423
      %v442 = vpack.c.b16 %v426, %v425
      %v451 = vunpack.c.l.b16 %v354
      %v452 = vunpack.c.l.b16 %v355
      %v453 = vunpack.c.l.b16 %v356
      %v454 = vunpack.c.l.b16 %v357
      %v455 = vunpack.c.l.b16 %v358
      %v456 = vunpack.c.l.b16 %v359
      %v457 = vunpack.c.l.b16 %v360
      %v458 = vunpack.c.l.b16 %v361
      %v459 = vpack.c.b16 %v452, %v451
      %v460 = vpack.c.b16 %v454, %v453
      %v461 = vpack.c.b16 %v456, %v455
      %v462 = vpack.c.b16 %v458, %v457
      %v468 = vsel %vm253, %v427, 0
      %v471 = vsel %vm253, %v428, 0
      %v474 = vsel %vm253, %v429, 0
      %v477 = vsel %vm253, %v430, 0
      %v480 = vsel %vm253, %v431, 0
      %v483 = vsel %vm253, %v432, 0
      %v486 = vsel %vm253, %v433, 0
      %v489 = vsel %vm253, %v434, 0
      %v492 = vsel %vm253, %v435, 0
      %v495 = vsel %vm253, %v436, 0
      %v498 = vsel %vm253, %v437, 0
      %v501 = vsel %vm253, %v438, 0
      %v504 = vsel %vm253, %v439, 0
      %v507 = vsel %vm253, %v440, 0
      %v510 = vsel %vm253, %v441, 0
      %v513 = vsel %vm253, %v442, 0
      %515 = vmatprep.subr.bf16.mxu0 0
      %516 = vmatpush1.bf16.msra.mxu0 %v459
      %517 = vmatprep.subr.bf16.mxu0 0
      %518 = vmatpush1.bf16.msra.mxu0 %v460
      %519 = vmatprep.subr.bf16.mxu0 0
      %520 = vmatpush1.bf16.msra.mxu0 %v461
      %521 = vmatprep.subr.bf16.mxu0 0
      %522 = vmatpush1.bf16.msra.mxu0 %v462
      %523 = vmatprep.subr.bf16.mxu0 0
      %524 = vmatpush1.bf16.msra.mxu0 0
      %525 = vmatprep.subr.bf16.mxu0 0
      %526 = vmatpush1.bf16.msra.mxu0 0
      %527 = vmatprep.subr.bf16.mxu0 0
      %528 = vmatpush1.bf16.msra.mxu0 0
      %529 = vmatprep.subr.bf16.mxu0 0
      %530 = vmatpush1.bf16.msra.mxu0 0
      %531 = vmatprep.subr.bf16.mxu0 0
      %532 = vmatpush1.bf16.msra.mxu0 0
      %533 = vmatprep.subr.bf16.mxu0 0
      %534 = vmatpush1.bf16.msra.mxu0 0
      %535 = vmatprep.subr.bf16.mxu0 0
      %536 = vmatpush1.bf16.msra.mxu0 0
      %537 = vmatprep.subr.bf16.mxu0 0
      %538 = vmatpush1.bf16.msra.mxu0 0
      %539 = vmatprep.subr.bf16.mxu0 0
      %540 = vmatpush1.bf16.msra.mxu0 0
      %541 = vmatprep.subr.bf16.mxu0 0
      %542 = vmatpush1.bf16.msra.mxu0 0
      %543 = vmatprep.subr.bf16.mxu0 0
      %544 = vmatpush1.bf16.msra.mxu0 0
      %545 = vmatprep.subr.bf16.mxu0 0
      %546 = vmatpush1.bf16.msra.mxu0 0
      %547 = vmatprep.mubr.bf16.mxu0 0
      %548 = vmatmul.mubr.bf16.gmra.mrb[0].mxu0 %v468
      %v549 = vpop.f32.mrb[0].mxu0
      %v550 = vadd.f32 %v362, %v549
      %v551 = vpop.f32.mrb[0].mxu0
      %v552 = vpop.f32.mrb[0].mxu0
      %v553 = vadd.f32 %v362, %v552
      %v554 = vpop.f32.mrb[0].mxu0
      %555 = vmatprep.mubr.bf16.mxu0 0
      %556 = vmatmul.mubr.bf16.gmra.mrb[0].mxu0 %v471
      %v557 = vpop.f32.mrb[0].mxu0
      %v558 = vadd.f32 %v362, %v557
      %v559 = vpop.f32.mrb[0].mxu0
      %v560 = vpop.f32.mrb[0].mxu0
      %v561 = vadd.f32 %v362, %v560
      %v562 = vpop.f32.mrb[0].mxu0
      %563 = vmatprep.mubr.bf16.mxu0 0
      %564 = vmatmul.mubr.bf16.gmra.mrb[0].mxu0 %v474
      %v565 = vpop.f32.mrb[0].mxu0
      %v566 = vadd.f32 %v362, %v565
      %v567 = vpop.f32.mrb[0].mxu0
      %v568 = vpop.f32.mrb[0].mxu0
      %v569 = vadd.f32 %v362, %v568
      %v570 = vpop.f32.mrb[0].mxu0
      %571 = vmatprep.mubr.bf16.mxu0 0
      %572 = vmatmul.mubr.bf16.gmra.mrb[0].mxu0 %v477
      %v573 = vpop.f32.mrb[0].mxu0
      %v574 = vadd.f32 %v362, %v573
      %v575 = vpop.f32.mrb[0].mxu0
      %v576 = vpop.f32.mrb[0].mxu0
      %v577 = vadd.f32 %v362, %v576
      %v578 = vpop.f32.mrb[0].mxu0
      %579 = vmatprep.mubr.bf16.mxu0 0
      %580 = vmatmul.mubr.bf16.gmra.mrb[0].mxu0 %v480
      %v581 = vpop.f32.mrb[0].mxu0
      %v582 = vadd.f32 %v362, %v581
      %v583 = vpop.f32.mrb[0].mxu0
      %v584 = vpop.f32.mrb[0].mxu0
      %v585 = vadd.f32 %v362, %v584
      %v586 = vpop.f32.mrb[0].mxu0
      %587 = vmatprep.mubr.bf16.mxu0 0
      %588 = vmatmul.mubr.bf16.gmra.mrb[0].mxu0 %v483
      %v589 = vpop.f32.mrb[0].mxu0
      %v590 = vadd.f32 %v362, %v589
      %v591 = vpop.f32.mrb[0].mxu0
      %v592 = vpop.f32.mrb[0].mxu0
      %v593 = vadd.f32 %v362, %v592
      %v594 = vpop.f32.mrb[0].mxu0
      %595 = vmatprep.mubr.bf16.mxu0 0
      %596 = vmatmul.mubr.bf16.gmra.mrb[0].mxu0 %v486
      %v597 = vpop.f32.mrb[0].mxu0
      %v598 = vadd.f32 %v362, %v597
      %v599 = vpop.f32.mrb[0].mxu0
      %v600 = vpop.f32.mrb[0].mxu0
      %v601 = vadd.f32 %v362, %v600
      %v602 = vpop.f32.mrb[0].mxu0
      %603 = vmatprep.mubr.bf16.mxu0 0
      %604 = vmatmul.mubr.bf16.gmra.mrb[0].mxu0 %v489
      %v605 = vpop.f32.mrb[0].mxu0
      %v606 = vadd.f32 %v362, %v605
      %v607 = vpop.f32.mrb[0].mxu0
      %v608 = vpop.f32.mrb[0].mxu0
      %v609 = vadd.f32 %v362, %v608
      %v610 = vpop.f32.mrb[0].mxu0
      %611 = vmatprep.mubr.bf16.mxu0 0
      %612 = vmatmul.mubr.bf16.gmra.mrb[0].mxu0 %v492
      %v613 = vpop.f32.mrb[0].mxu0
      %v614 = vadd.f32 %v362, %v613
      %v615 = vpop.f32.mrb[0].mxu0
      %v616 = vpop.f32.mrb[0].mxu0
      %v617 = vadd.f32 %v362, %v616
      %v618 = vpop.f32.mrb[0].mxu0
      %619 = vmatprep.mubr.bf16.mxu0 0
      %620 = vmatmul.mubr.bf16.gmra.mrb[0].mxu0 %v495
      %v621 = vpop.f32.mrb[0].mxu0
      %v622 = vadd.f32 %v362, %v621
      %v623 = vpop.f32.mrb[0].mxu0
      %v624 = vpop.f32.mrb[0].mxu0
      %v625 = vadd.f32 %v362, %v624
      %v626 = vpop.f32.mrb[0].mxu0
      %627 = vmatprep.mubr.bf16.mxu0 0
      %628 = vmatmul.mubr.bf16.gmra.mrb[0].mxu0 %v498
      %v629 = vpop.f32.mrb[0].mxu0
      %v630 = vadd.f32 %v362, %v629
      %v631 = vpop.f32.mrb[0].mxu0
      %v632 = vpop.f32.mrb[0].mxu0
      %v633 = vadd.f32 %v362, %v632
      %v634 = vpop.f32.mrb[0].mxu0
      %635 = vmatprep.mubr.bf16.mxu0 0
      %636 = vmatmul.mubr.bf16.gmra.mrb[0].mxu0 %v501
      %v637 = vpop.f32.mrb[0].mxu0
      %v638 = vadd.f32 %v362, %v637
      %v639 = vpop.f32.mrb[0].mxu0
      %v640 = vpop.f32.mrb[0].mxu0
      %v641 = vadd.f32 %v362, %v640
      %v642 = vpop.f32.mrb[0].mxu0
      %643 = vmatprep.mubr.bf16.mxu0 0
      %644 = vmatmul.mubr.bf16.gmra.mrb[0].mxu0 %v504
      %v645 = vpop.f32.mrb[0].mxu0
      %v646 = vadd.f32 %v362, %v645
      %v647 = vpop.f32.mrb[0].mxu0
      %v648 = vpop.f32.mrb[0].mxu0
      %v649 = vadd.f32 %v362, %v648
      %v650 = vpop.f32.mrb[0].mxu0
      %651 = vmatprep.mubr.bf16.mxu0 0
      %652 = vmatmul.mubr.bf16.gmra.mrb[0].mxu0 %v507
      %v653 = vpop.f32.mrb[0].mxu0
      %v654 = vadd.f32 %v362, %v653
      %v655 = vpop.f32.mrb[0].mxu0
      %v656 = vpop.f32.mrb[0].mxu0
      %v657 = vadd.f32 %v362, %v656
      %v658 = vpop.f32.mrb[0].mxu0
      %659 = vmatprep.mubr.bf16.mxu0 0
      %660 = vmatmul.mubr.bf16.gmra.mrb[0].mxu0 %v510
      %v661 = vpop.f32.mrb[0].mxu0
      %v662 = vadd.f32 %v362, %v661
      %v663 = vpop.f32.mrb[0].mxu0
      %v664 = vpop.f32.mrb[0].mxu0
      %v665 = vadd.f32 %v362, %v664
      %v666 = vpop.f32.mrb[0].mxu0
      %667 = vmatprep.mubr.bf16.mxu0 0
      %668 = vmatmul.mubr.bf16.gmra.mrb[0].mxu0 %v513
      %v669 = vpop.f32.mrb[0].mxu0
      %v670 = vadd.f32 %v362, %v669
      %v671 = vpop.f32.mrb[0].mxu0
      %v672 = vpop.f32.mrb[0].mxu0
      %v673 = vadd.f32 %v362, %v672
      %v674 = vpop.f32.mrb[0].mxu0
      %675 = vdwg.mxu0
      %vm676 = vcmp.ge.f32.partialorder %v550, 0.0
      %vm677 = vcmp.ge.f32.partialorder %v553, 0.0
      %vm678 = vcmp.ge.f32.partialorder %v558, 0.0
      %vm679 = vcmp.ge.f32.partialorder %v561, 0.0
      %vm680 = vcmp.ge.f32.partialorder %v566, 0.0
      %vm681 = vcmp.ge.f32.partialorder %v569, 0.0
      %vm682 = vcmp.ge.f32.partialorder %v574, 0.0
      %vm683 = vcmp.ge.f32.partialorder %v577, 0.0
      %vm684 = vcmp.ge.f32.partialorder %v582, 0.0
      %vm685 = vcmp.ge.f32.partialorder %v585, 0.0
      %vm686 = vcmp.ge.f32.partialorder %v590, 0.0
      %vm687 = vcmp.ge.f32.partialorder %v593, 0.0
      %vm688 = vcmp.ge.f32.partialorder %v598, 0.0
      %vm689 = vcmp.ge.f32.partialorder %v601, 0.0
      %vm690 = vcmp.ge.f32.partialorder %v606, 0.0
      %vm691 = vcmp.ge.f32.partialorder %v609, 0.0
      %vm692 = vcmp.ge.f32.partialorder %v614, 0.0
      %vm693 = vcmp.ge.f32.partialorder %v617, 0.0
      %vm694 = vcmp.ge.f32.partialorder %v622, 0.0
      %vm695 = vcmp.ge.f32.partialorder %v625, 0.0
      %vm696 = vcmp.ge.f32.partialorder %v630, 0.0
      %vm697 = vcmp.ge.f32.partialorder %v633, 0.0
      %vm698 = vcmp.ge.f32.partialorder %v638, 0.0
      %vm699 = vcmp.ge.f32.partialorder %v641, 0.0
      %vm700 = vcmp.ge.f32.partialorder %v646, 0.0
      %vm701 = vcmp.ge.f32.partialorder %v649, 0.0
      %vm702 = vcmp.ge.f32.partialorder %v654, 0.0
      %vm703 = vcmp.ge.f32.partialorder %v657, 0.0
      %vm704 = vcmp.ge.f32.partialorder %v662, 0.0
      %vm705 = vcmp.ge.f32.partialorder %v665, 0.0
      %vm706 = vcmp.ge.f32.partialorder %v670, 0.0
      %vm707 = vcmp.ge.f32.partialorder %v673, 0.0
      %v708 = vmul.f32 %v550, 0.01
      %v709 = vmul.f32 %v553, 0.01
      %v710 = vmul.f32 %v558, 0.01
      %v711 = vmul.f32 %v561, 0.01
      %v712 = vmul.f32 %v566, 0.01
      %v713 = vmul.f32 %v569, 0.01
      %v714 = vmul.f32 %v574, 0.01
      %v715 = vmul.f32 %v577, 0.01
      %v716 = vmul.f32 %v582, 0.01
      %v717 = vmul.f32 %v585, 0.01
      %v718 = vmul.f32 %v590, 0.01
      %v719 = vmul.f32 %v593, 0.01
      %v720 = vmul.f32 %v598, 0.01
      %v721 = vmul.f32 %v601, 0.01
      %v722 = vmul.f32 %v606, 0.01
      %v723 = vmul.f32 %v609, 0.01
      %v724 = vmul.f32 %v614, 0.01
      %v725 = vmul.f32 %v617, 0.01
      %v726 = vmul.f32 %v622, 0.01
      %v727 = vmul.f32 %v625, 0.01
      %v728 = vmul.f32 %v630, 0.01
      %v729 = vmul.f32 %v633, 0.01
      %v730 = vmul.f32 %v638, 0.01
      %v731 = vmul.f32 %v641, 0.01
      %v732 = vmul.f32 %v646, 0.01
      %v733 = vmul.f32 %v649, 0.01
      %v734 = vmul.f32 %v654, 0.01
      %v735 = vmul.f32 %v657, 0.01
      %v736 = vmul.f32 %v662, 0.01
      %v737 = vmul.f32 %v665, 0.01
      %v738 = vmul.f32 %v670, 0.01
      %v739 = vmul.f32 %v673, 0.01
      %v740 = vsel %vm676, %v550, %v708
      %v741 = vsel %vm677, %v553, %v709
      %v742 = vsel %vm678, %v558, %v710
      %v743 = vsel %vm679, %v561, %v711
      %v744 = vsel %vm680, %v566, %v712
      %v745 = vsel %vm681, %v569, %v713
      %v746 = vsel %vm682, %v574, %v714
      %v747 = vsel %vm683, %v577, %v715
      %v748 = vsel %vm684, %v582, %v716
      %v749 = vsel %vm685, %v585, %v717
      %v750 = vsel %vm686, %v590, %v718
      %v751 = vsel %vm687, %v593, %v719
      %v752 = vsel %vm688, %v598, %v720
      %v753 = vsel %vm689, %v601, %v721
      %v754 = vsel %vm690, %v606, %v722
      %v755 = vsel %vm691, %v609, %v723
      %v756 = vsel %vm692, %v614, %v724
      %v757 = vsel %vm693, %v617, %v725
      %v758 = vsel %vm694, %v622, %v726
      %v759 = vsel %vm695, %v625, %v727
      %v760 = vsel %vm696, %v630, %v728
      %v761 = vsel %vm697, %v633, %v729
      %v762 = vsel %vm698, %v638, %v730
      %v763 = vsel %vm699, %v641, %v731
      %v764 = vsel %vm700, %v646, %v732
      %v765 = vsel %vm701, %v649, %v733
      %v766 = vsel %vm702, %v654, %v734
      %v767 = vsel %vm703, %v657, %v735
      %v768 = vsel %vm704, %v662, %v736
      %v769 = vsel %vm705, %v665, %v737
      %v770 = vsel %vm706, %v670, %v738
      %v771 = vsel %vm707, %v673, %v739
      %772 = vst.msk [vmem:[#allocation2 + $0xa] sm:$0xff] %vm253, %v740
      %773 = vst.msk [vmem:[#allocation2 + $0x13] sm:$0xff] %vm253, %v741
      %774 = vst.msk [vmem:[#allocation2 + $0x1c] sm:$0xff] %vm253, %v742
      %775 = vst.msk [vmem:[#allocation2 + $0x25] sm:$0xff] %vm253, %v743
      %776 = vst.msk [vmem:[#allocation2 + $0x2e] sm:$0xff] %vm253, %v744
      %777 = vst.msk [vmem:[#allocation2 + $0x37] sm:$0xff] %vm253, %v745
      %778 = vst.msk [vmem:[#allocation2 + $0x40] sm:$0xff] %vm253, %v746
      %779 = vst.msk [vmem:[#allocation2 + $0x49] sm:$0xff] %vm253, %v747
      %s780 = scalar_lea.vmem [#allocation2], 88
      %781 = vst.msk [vmem:[%s780 + $0x9] sm:$0xff] %vm253, %v748
      %782 = vst.msk [vmem:[%s780 + $0x12] sm:$0xff] %vm253, %v749
      %783 = vst.msk [vmem:[%s780 + $0x1b] sm:$0xff] %vm253, %v750
      %784 = vst.msk [vmem:[%s780 + $0x24] sm:$0xff] %vm253, %v751
      %785 = vst.msk [vmem:[%s780 + $0x2d] sm:$0xff] %vm253, %v752
      %786 = vst.msk [vmem:[%s780 + $0x36] sm:$0xff] %vm253, %v753
      %787 = vst.msk [vmem:[%s780 + $0x3f] sm:$0xff] %vm253, %v754
      %788 = vst.msk [vmem:[%s780 + $0x48] sm:$0xff] %vm253, %v755
      %s789 = scalar_lea.vmem [#allocation2], 176
      %790 = vst.msk [vmem:[%s789 + $0x1] sm:$0xff] %vm253, %v756
      %791 = vst.msk [vmem:[%s789 + $0xa] sm:$0xff] %vm253, %v757
      %792 = vst.msk [vmem:[%s789 + $0x13] sm:$0xff] %vm253, %v758
      %793 = vst.msk [vmem:[%s789 + $0x1c] sm:$0xff] %vm253, %v759
      %794 = vst.msk [vmem:[%s789 + $0x25] sm:$0xff] %vm253, %v760
      %795 = vst.msk [vmem:[%s789 + $0x2e] sm:$0xff] %vm253, %v761
      %796 = vst.msk [vmem:[%s789 + $0x37] sm:$0xff] %vm253, %v762
      %797 = vst.msk [vmem:[%s789 + $0x40] sm:$0xff] %vm253, %v763
      %s798 = scalar_lea.vmem [#allocation2], 264
      %799 = vst.msk [vmem:[%s798] sm:$0xff] %vm253, %v764
      %800 = vst.msk [vmem:[%s798 + $0x9] sm:$0xff] %vm253, %v765
      %801 = vst.msk [vmem:[%s798 + $0x12] sm:$0xff] %vm253, %v766
      %802 = vst.msk [vmem:[%s798 + $0x1b] sm:$0xff] %vm253, %v767
      %803 = vst.msk [vmem:[%s798 + $0x24] sm:$0xff] %vm253, %v768
      %804 = vst.msk [vmem:[%s798 + $0x2d] sm:$0xff] %vm253, %v769
      %805 = vst.msk [vmem:[%s798 + $0x36] sm:$0xff] %vm253, %v770
      %806 = vst.msk [vmem:[%s798 + $0x3f] sm:$0xff] %vm253, %v771
      %v807 = vld [vmem:[#allocation2] sm:$0xff]
      %v808 = vld [vmem:[#allocation2 + $0x8] sm:$0xff]
      %v809 = vld [vmem:[#allocation2 + $0x10] sm:$0xff]
      %v810 = vld [vmem:[#allocation2 + $0x18] sm:$0xff]
      %v811 = vld [vmem:[#allocation2 + $0x20] sm:$0xff]
      %v812 = vld [vmem:[#allocation2 + $0x28] sm:$0xff]
      %v813 = vld [vmem:[#allocation2 + $0x30] sm:$0xff]
      %v814 = vld [vmem:[#allocation2 + $0x38] sm:$0xff]
      %v815 = vld [vmem:[#allocation2 + $0x40] sm:$0xff]
      %v816 = vpack.c.bf16 %v808, %v807
      %v817 = vpack.c.bf16 %v810, %v809
      %v818 = vpack.c.bf16 %v812, %v811
      %v819 = vpack.c.bf16 %v814, %v813
      %v820 = vpack.c.bf16 %v815, %v815
      %v821 = vld [vmem:[%s2] sm:$0xf]
      %v822 = vld [vmem:[%s2 + $0x4] sm:$0xf]
      %v823 = vld [vmem:[%s2 + $0x8] sm:$0xf]
      %v824 = vld [vmem:[%s2 + $0xc] sm:$0xf]
      %v825 = vld [vmem:[%s2 + $0x10] sm:$0xf]
      %v826 = vld [vmem:[%s2 + $0x14] sm:$0xf]
      %v827 = vld [vmem:[%s2 + $0x18] sm:$0xf]
      %v828 = vld [vmem:[%s2 + $0x1c] sm:$0xf]
      %v829 = vld [vmem:[%s780] sm:$0xff]
      %v830 = vld [vmem:[%s780 + $0x8] sm:$0xff]
      %v831 = vld [vmem:[%s780 + $0x10] sm:$0xff]
      %v832 = vld [vmem:[%s780 + $0x18] sm:$0xff]
      %v833 = vld [vmem:[%s780 + $0x20] sm:$0xff]
      %v834 = vld [vmem:[%s780 + $0x28] sm:$0xff]
      %v835 = vld [vmem:[%s780 + $0x30] sm:$0xff]
      %v836 = vld [vmem:[%s780 + $0x38] sm:$0xff]
      %v837 = vld [vmem:[%s780 + $0x40] sm:$0xff]
      %v838 = vpack.c.bf16 %v830, %v829
      %v839 = vpack.c.bf16 %v832, %v831
      %v840 = vpack.c.bf16 %v834, %v833
      %v841 = vpack.c.bf16 %v836, %v835
      %v842 = vpack.c.bf16 %v837, %v837
      %s843 = scalar_lea.vmem %s2, 32
      %v844 = vld [vmem:[%s843] sm:$0xf]
      %v845 = vld [vmem:[%s843 + $0x4] sm:$0xf]
      %v846 = vld [vmem:[%s843 + $0x8] sm:$0xf]
      %v847 = vld [vmem:[%s843 + $0xc] sm:$0xf]
      %v848 = vld [vmem:[%s843 + $0x10] sm:$0xf]
      %v849 = vld [vmem:[%s843 + $0x14] sm:$0xf]
      %v850 = vld [vmem:[%s843 + $0x18] sm:$0xf]
      %v851 = vld [vmem:[%s843 + $0x1c] sm:$0xf]
      %v860 = vunpack.c.l.b16 %v844
      %v861 = vunpack.c.l.b16 %v845
      %v862 = vunpack.c.l.b16 %v846
      %v863 = vunpack.c.l.b16 %v847
      %v864 = vunpack.c.l.b16 %v848
      %v865 = vunpack.c.l.b16 %v849
      %v866 = vunpack.c.l.b16 %v850
      %v867 = vunpack.c.l.b16 %v851
      %v868 = vpack.c.b16 %v861, %v860
      %v869 = vpack.c.b16 %v863, %v862
      %v870 = vpack.c.b16 %v865, %v864
      %v871 = vpack.c.b16 %v867, %v866
      %v877 = vsel %vm253, %v838, 0
      %v880 = vsel %vm253, %v839, 0
      %v883 = vsel %vm253, %v840, 0
      %v886 = vsel %vm253, %v841, 0
      %v889 = vsel %vm253, %v842, 0
      %891 = vmatprep.subr.bf16.mxu0 0
      %892 = vmatpush1.bf16.msra.mxu0 %v868
      %893 = vmatprep.subr.bf16.mxu0 0
      %894 = vmatpush1.bf16.msra.mxu0 %v869
      %895 = vmatprep.subr.bf16.mxu0 0
      %896 = vmatpush1.bf16.msra.mxu0 %v870
      %897 = vmatprep.subr.bf16.mxu0 0
      %898 = vmatpush1.bf16.msra.mxu0 %v871
      %899 = vmatprep.subr.bf16.mxu0 0
      %900 = vmatpush1.bf16.msra.mxu0 0
      %901 = vmatprep.subr.bf16.mxu0 0
      %902 = vmatpush1.bf16.msra.mxu0 0
      %903 = vmatprep.subr.bf16.mxu0 0
      %904 = vmatpush1.bf16.msra.mxu0 0
      %905 = vmatprep.subr.bf16.mxu0 0
      %906 = vmatpush1.bf16.msra.mxu0 0
      %907 = vmatprep.subr.bf16.mxu0 0
      %908 = vmatpush1.bf16.msra.mxu0 0
      %909 = vmatprep.subr.bf16.mxu0 0
      %910 = vmatpush1.bf16.msra.mxu0 0
      %911 = vmatprep.subr.bf16.mxu0 0
      %912 = vmatpush1.bf16.msra.mxu0 0
      %913 = vmatprep.subr.bf16.mxu0 0
      %914 = vmatpush1.bf16.msra.mxu0 0
      %915 = vmatprep.subr.bf16.mxu0 0
      %916 = vmatpush1.bf16.msra.mxu0 0
      %917 = vmatprep.subr.bf16.mxu0 0
      %918 = vmatpush1.bf16.msra.mxu0 0
      %919 = vmatprep.subr.bf16.mxu0 0
      %920 = vmatpush1.bf16.msra.mxu0 0
      %921 = vmatprep.subr.bf16.mxu0 0
      %922 = vmatpush1.bf16.msra.mxu0 0
      %923 = vmatprep.mubr.bf16.mxu0 0
      %924 = vmatmul.mubr.bf16.gmra.mrb[0].mxu0 %v877
      %v925 = vpop.f32.mrb[0].mxu0
      %v926 = vadd.f32 0.0, %v925
      %v927 = vpop.f32.mrb[0].mxu0
      %v928 = vpop.f32.mrb[0].mxu0
      %v929 = vadd.f32 0.0, %v928
      %v930 = vpop.f32.mrb[0].mxu0
      %931 = vmatprep.mubr.bf16.mxu0 0
      %932 = vmatmul.mubr.bf16.gmra.mrb[0].mxu0 %v880
      %v933 = vpop.f32.mrb[0].mxu0
      %v934 = vadd.f32 0.0, %v933
      %v935 = vpop.f32.mrb[0].mxu0
      %v936 = vpop.f32.mrb[0].mxu0
      %v937 = vadd.f32 0.0, %v936
      %v938 = vpop.f32.mrb[0].mxu0
      %939 = vmatprep.mubr.bf16.mxu0 0
      %940 = vmatmul.mubr.bf16.gmra.mrb[0].mxu0 %v883
      %v941 = vpop.f32.mrb[0].mxu0
      %v942 = vadd.f32 0.0, %v941
      %v943 = vpop.f32.mrb[0].mxu0
      %v944 = vpop.f32.mrb[0].mxu0
      %v945 = vadd.f32 0.0, %v944
      %v946 = vpop.f32.mrb[0].mxu0
      %947 = vmatprep.mubr.bf16.mxu0 0
      %948 = vmatmul.mubr.bf16.gmra.mrb[0].mxu0 %v886
      %v949 = vpop.f32.mrb[0].mxu0
      %v950 = vadd.f32 0.0, %v949
      %v951 = vpop.f32.mrb[0].mxu0
      %v952 = vpop.f32.mrb[0].mxu0
      %v953 = vadd.f32 0.0, %v952
      %v954 = vpop.f32.mrb[0].mxu0
      %955 = vmatprep.mubr.bf16.mxu0 0
      %956 = vmatmul.mubr.bf16.gmra.mrb[0].mxu0 %v889
      %v957 = vpop.f32.mrb[0].mxu0
      %v958 = vadd.f32 0.0, %v957
      %v959 = vpop.f32.mrb[0].mxu0
      %v960 = vpop.f32.mrb[0].mxu0
      %v961 = vpop.f32.mrb[0].mxu0
      %962 = vdwg.mxu0
      %v971 = vunpack.c.l.b16 %v821
      %v972 = vunpack.c.l.b16 %v822
      %v973 = vunpack.c.l.b16 %v823
      %v974 = vunpack.c.l.b16 %v824
      %v975 = vunpack.c.l.b16 %v825
      %v976 = vunpack.c.l.b16 %v826
      %v977 = vunpack.c.l.b16 %v827
      %v978 = vunpack.c.l.b16 %v828
      %v979 = vpack.c.b16 %v972, %v971
      %v980 = vpack.c.b16 %v974, %v973
      %v981 = vpack.c.b16 %v976, %v975
      %v982 = vpack.c.b16 %v978, %v977
      %v988 = vsel %vm253, %v816, 0
      %v991 = vsel %vm253, %v817, 0
      %v994 = vsel %vm253, %v818, 0
      %v997 = vsel %vm253, %v819, 0
      %v1000 = vsel %vm253, %v820, 0
      %1002 = vmatprep.subr.bf16.mxu0 0
      %1003 = vmatpush1.bf16.msra.mxu0 %v979
      %1004 = vmatprep.subr.bf16.mxu0 0
      %1005 = vmatpush1.bf16.msra.mxu0 %v980
      %1006 = vmatprep.subr.bf16.mxu0 0
      %1007 = vmatpush1.bf16.msra.mxu0 %v981
      %1008 = vmatprep.subr.bf16.mxu0 0
      %1009 = vmatpush1.bf16.msra.mxu0 %v982
      %1010 = vmatprep.subr.bf16.mxu0 0
      %1011 = vmatpush1.bf16.msra.mxu0 0
      %1012 = vmatprep.subr.bf16.mxu0 0
      %1013 = vmatpush1.bf16.msra.mxu0 0
      %1014 = vmatprep.subr.bf16.mxu0 0
      %1015 = vmatpush1.bf16.msra.mxu0 0
      %1016 = vmatprep.subr.bf16.mxu0 0
      %1017 = vmatpush1.bf16.msra.mxu0 0
      %1018 = vmatprep.subr.bf16.mxu0 0
      %1019 = vmatpush1.bf16.msra.mxu0 0
      %1020 = vmatprep.subr.bf16.mxu0 0
      %1021 = vmatpush1.bf16.msra.mxu0 0
      %1022 = vmatprep.subr.bf16.mxu0 0
      %1023 = vmatpush1.bf16.msra.mxu0 0
      %1024 = vmatprep.subr.bf16.mxu0 0
      %1025 = vmatpush1.bf16.msra.mxu0 0
      %1026 = vmatprep.subr.bf16.mxu0 0
      %1027 = vmatpush1.bf16.msra.mxu0 0
      %1028 = vmatprep.subr.bf16.mxu0 0
      %1029 = vmatpush1.bf16.msra.mxu0 0
      %1030 = vmatprep.subr.bf16.mxu0 0
      %1031 = vmatpush1.bf16.msra.mxu0 0
      %1032 = vmatprep.subr.bf16.mxu0 0
      %1033 = vmatpush1.bf16.msra.mxu0 0
      %1034 = vmatprep.mubr.bf16.mxu0 0
      %1035 = vmatmul.mubr.bf16.gmra.mrb[0].mxu0 %v988
      %v1036 = vpop.f32.mrb[0].mxu0
      %v1037 = vadd.f32 %v926, %v1036
      %v1038 = vpop.f32.mrb[0].mxu0
      %v1039 = vpop.f32.mrb[0].mxu0
      %v1040 = vadd.f32 %v929, %v1039
      %v1041 = vpop.f32.mrb[0].mxu0
      %1042 = vmatprep.mubr.bf16.mxu0 0
      %1043 = vmatmul.mubr.bf16.gmra.mrb[0].mxu0 %v991
      %v1044 = vpop.f32.mrb[0].mxu0
      %v1045 = vadd.f32 %v934, %v1044
      %v1046 = vpop.f32.mrb[0].mxu0
      %v1047 = vpop.f32.mrb[0].mxu0
      %v1048 = vadd.f32 %v937, %v1047
      %v1049 = vpop.f32.mrb[0].mxu0
      %1050 = vmatprep.mubr.bf16.mxu0 0
      %1051 = vmatmul.mubr.bf16.gmra.mrb[0].mxu0 %v994
      %v1052 = vpop.f32.mrb[0].mxu0
      %v1053 = vadd.f32 %v942, %v1052
      %v1054 = vpop.f32.mrb[0].mxu0
      %v1055 = vpop.f32.mrb[0].mxu0
      %v1056 = vadd.f32 %v945, %v1055
      %v1057 = vpop.f32.mrb[0].mxu0
      %1058 = vmatprep.mubr.bf16.mxu0 0
      %1059 = vmatmul.mubr.bf16.gmra.mrb[0].mxu0 %v997
      %v1060 = vpop.f32.mrb[0].mxu0
      %v1061 = vadd.f32 %v950, %v1060
      %v1062 = vpop.f32.mrb[0].mxu0
      %v1063 = vpop.f32.mrb[0].mxu0
      %v1064 = vadd.f32 %v953, %v1063
      %v1065 = vpop.f32.mrb[0].mxu0
      %1066 = vmatprep.mubr.bf16.mxu0 0
      %1067 = vmatmul.mubr.bf16.gmra.mrb[0].mxu0 %v1000
      %v1068 = vpop.f32.mrb[0].mxu0
      %v1069 = vadd.f32 %v958, %v1068
      %v1070 = vpop.f32.mrb[0].mxu0
      %v1071 = vpop.f32.mrb[0].mxu0
      %v1072 = vpop.f32.mrb[0].mxu0
      %1073 = vdwg.mxu0
      %v1074 = vld [vmem:[#allocation2 + $0x1] sm:$0xff]
      %v1075 = vld [vmem:[#allocation2 + $0x9] sm:$0xff]
      %v1076 = vld [vmem:[#allocation2 + $0x11] sm:$0xff]
      %v1077 = vld [vmem:[#allocation2 + $0x19] sm:$0xff]
      %v1078 = vld [vmem:[#allocation2 + $0x21] sm:$0xff]
      %v1079 = vld [vmem:[#allocation2 + $0x29] sm:$0xff]
      %v1080 = vld [vmem:[#allocation2 + $0x31] sm:$0xff]
      %v1081 = vld [vmem:[#allocation2 + $0x39] sm:$0xff]
      %v1082 = vld [vmem:[#allocation2 + $0x41] sm:$0xff]
      %v1083 = vpack.c.bf16 %v1075, %v1074
      %v1084 = vpack.c.bf16 %v1077, %v1076
      %v1085 = vpack.c.bf16 %v1079, %v1078
      %v1086 = vpack.c.bf16 %v1081, %v1080
      %v1087 = vpack.c.bf16 %v1082, %v1082
      %s1088 = scalar_lea.vmem %s2, 64
      %v1089 = vld [vmem:[%s1088] sm:$0xf]
      %v1090 = vld [vmem:[%s1088 + $0x4] sm:$0xf]
      %v1091 = vld [vmem:[%s1088 + $0x8] sm:$0xf]
      %v1092 = vld [vmem:[%s1088 + $0xc] sm:$0xf]
      %v1093 = vld [vmem:[%s1088 + $0x10] sm:$0xf]
      %v1094 = vld [vmem:[%s1088 + $0x14] sm:$0xf]
      %v1095 = vld [vmem:[%s1088 + $0x18] sm:$0xf]
      %v1096 = vld [vmem:[%s1088 + $0x1c] sm:$0xf]
      %v1105 = vunpack.c.l.b16 %v1089
      %v1106 = vunpack.c.l.b16 %v1090
      %v1107 = vunpack.c.l.b16 %v1091
      %v1108 = vunpack.c.l.b16 %v1092
      %v1109 = vunpack.c.l.b16 %v1093
      %v1110 = vunpack.c.l.b16 %v1094
      %v1111 = vunpack.c.l.b16 %v1095
      %v1112 = vunpack.c.l.b16 %v1096
      %v1113 = vpack.c.b16 %v1106, %v1105
      %v1114 = vpack.c.b16 %v1108, %v1107
      %v1115 = vpack.c.b16 %v1110, %v1109
      %v1116 = vpack.c.b16 %v1112, %v1111
      %v1122 = vsel %vm253, %v1083, 0
      %v1125 = vsel %vm253, %v1084, 0
      %v1128 = vsel %vm253, %v1085, 0
      %v1131 = vsel %vm253, %v1086, 0
      %v1134 = vsel %vm253, %v1087, 0
      %1136 = vmatprep.subr.bf16.mxu0 0
      %1137 = vmatpush1.bf16.msra.mxu0 %v1113
      %1138 = vmatprep.subr.bf16.mxu0 0
      %1139 = vmatpush1.bf16.msra.mxu0 %v1114
      %1140 = vmatprep.subr.bf16.mxu0 0
      %1141 = vmatpush1.bf16.msra.mxu0 %v1115
      %1142 = vmatprep.subr.bf16.mxu0 0
      %1143 = vmatpush1.bf16.msra.mxu0 %v1116
      %1144 = vmatprep.subr.bf16.mxu0 0
      %1145 = vmatpush1.bf16.msra.mxu0 0
      %1146 = vmatprep.subr.bf16.mxu0 0
      %1147 = vmatpush1.bf16.msra.mxu0 0
      %1148 = vmatprep.subr.bf16.mxu0 0
      %1149 = vmatpush1.bf16.msra.mxu0 0
      %1150 = vmatprep.subr.bf16.mxu0 0
      %1151 = vmatpush1.bf16.msra.mxu0 0
      %1152 = vmatprep.subr.bf16.mxu0 0
      %1153 = vmatpush1.bf16.msra.mxu0 0
      %1154 = vmatprep.subr.bf16.mxu0 0
      %1155 = vmatpush1.bf16.msra.mxu0 0
      %1156 = vmatprep.subr.bf16.mxu0 0
      %1157 = vmatpush1.bf16.msra.mxu0 0
      %1158 = vmatprep.subr.bf16.mxu0 0
      %1159 = vmatpush1.bf16.msra.mxu0 0
      %1160 = vmatprep.subr.bf16.mxu0 0
      %1161 = vmatpush1.bf16.msra.mxu0 0
      %1162 = vmatprep.subr.bf16.mxu0 0
      %1163 = vmatpush1.bf16.msra.mxu0 0
      %1164 = vmatprep.subr.bf16.mxu0 0
      %1165 = vmatpush1.bf16.msra.mxu0 0
      %1166 = vmatprep.subr.bf16.mxu0 0
      %1167 = vmatpush1.bf16.msra.mxu0 0
      %1168 = vmatprep.mubr.bf16.mxu0 0
      %1169 = vmatmul.mubr.bf16.gmra.mrb[0].mxu0 %v1122
      %v1170 = vpop.f32.mrb[0].mxu0
      %v1171 = vadd.f32 0.0, %v1170
      %v1172 = vpop.f32.mrb[0].mxu0
      %v1173 = vpop.f32.mrb[0].mxu0
      %v1174 = vadd.f32 0.0, %v1173
      %v1175 = vpop.f32.mrb[0].mxu0
      %1176 = vmatprep.mubr.bf16.mxu0 0
      %1177 = vmatmul.mubr.bf16.gmra.mrb[0].mxu0 %v1125
      %v1178 = vpop.f32.mrb[0].mxu0
      %v1179 = vadd.f32 0.0, %v1178
      %v1180 = vpop.f32.mrb[0].mxu0
      %v1181 = vpop.f32.mrb[0].mxu0
      %v1182 = vadd.f32 0.0, %v1181
      %v1183 = vpop.f32.mrb[0].mxu0
      %1184 = vmatprep.mubr.bf16.mxu0 0
      %1185 = vmatmul.mubr.bf16.gmra.mrb[0].mxu0 %v1128
      %v1186 = vpop.f32.mrb[0].mxu0
      %v1187 = vadd.f32 0.0, %v1186
      %v1188 = vpop.f32.mrb[0].mxu0
      %v1189 = vpop.f32.mrb[0].mxu0
      %v1190 = vadd.f32 0.0, %v1189
      %v1191 = vpop.f32.mrb[0].mxu0
      %1192 = vmatprep.mubr.bf16.mxu0 0
      %1193 = vmatmul.mubr.bf16.gmra.mrb[0].mxu0 %v1131
      %v1194 = vpop.f32.mrb[0].mxu0
      %v1195 = vadd.f32 0.0, %v1194
      %v1196 = vpop.f32.mrb[0].mxu0
      %v1197 = vpop.f32.mrb[0].mxu0
      %v1198 = vadd.f32 0.0, %v1197
      %v1199 = vpop.f32.mrb[0].mxu0
      %1200 = vmatprep.mubr.bf16.mxu0 0
      %1201 = vmatmul.mubr.bf16.gmra.mrb[0].mxu0 %v1134
      %v1202 = vpop.f32.mrb[0].mxu0
      %v1203 = vadd.f32 0.0, %v1202
      %v1204 = vpop.f32.mrb[0].mxu0
      %v1205 = vpop.f32.mrb[0].mxu0
      %v1206 = vpop.f32.mrb[0].mxu0
      %1207 = vdwg.mxu0
      %v1208 = vadd.f32 %v1037, %v1171
      %v1209 = vadd.f32 %v1040, %v1174
      %v1210 = vadd.f32 %v1045, %v1179
      %v1211 = vadd.f32 %v1048, %v1182
      %v1212 = vadd.f32 %v1053, %v1187
      %v1213 = vadd.f32 %v1056, %v1190
      %v1214 = vadd.f32 %v1061, %v1195
      %v1215 = vadd.f32 %v1064, %v1198
      %v1216 = vadd.f32 %v1069, %v1203
      %v1217 = vld [vmem:[%s789] sm:$0xff]
      %v1218 = vld [vmem:[%s789 + $0x8] sm:$0xff]
      %v1219 = vld [vmem:[%s789 + $0x10] sm:$0xff]
      %v1220 = vld [vmem:[%s789 + $0x18] sm:$0xff]
      %v1221 = vld [vmem:[%s789 + $0x20] sm:$0xff]
      %v1222 = vld [vmem:[%s789 + $0x28] sm:$0xff]
      %v1223 = vld [vmem:[%s789 + $0x30] sm:$0xff]
      %v1224 = vld [vmem:[%s789 + $0x38] sm:$0xff]
      %v1225 = vld [vmem:[%s789 + $0x40] sm:$0xff]
      %v1226 = vpack.c.bf16 %v1218, %v1217
      %v1227 = vpack.c.bf16 %v1220, %v1219
      %v1228 = vpack.c.bf16 %v1222, %v1221
      %v1229 = vpack.c.bf16 %v1224, %v1223
      %v1230 = vpack.c.bf16 %v1225, %v1225
      %s1231 = scalar_lea.vmem %s2, 96
      %v1232 = vld [vmem:[%s1231] sm:$0xf]
      %v1233 = vld [vmem:[%s1231 + $0x4] sm:$0xf]
      %v1234 = vld [vmem:[%s1231 + $0x8] sm:$0xf]
      %v1235 = vld [vmem:[%s1231 + $0xc] sm:$0xf]
      %v1236 = vld [vmem:[%s1231 + $0x10] sm:$0xf]
      %v1237 = vld [vmem:[%s1231 + $0x14] sm:$0xf]
      %v1238 = vld [vmem:[%s1231 + $0x18] sm:$0xf]
      %v1239 = vld [vmem:[%s1231 + $0x1c] sm:$0xf]
      %v1248 = vunpack.c.l.b16 %v1232
      %v1249 = vunpack.c.l.b16 %v1233
      %v1250 = vunpack.c.l.b16 %v1234
      %v1251 = vunpack.c.l.b16 %v1235
      %v1252 = vunpack.c.l.b16 %v1236
      %v1253 = vunpack.c.l.b16 %v1237
      %v1254 = vunpack.c.l.b16 %v1238
      %v1255 = vunpack.c.l.b16 %v1239
      %v1256 = vpack.c.b16 %v1249, %v1248
      %v1257 = vpack.c.b16 %v1251, %v1250
      %v1258 = vpack.c.b16 %v1253, %v1252
      %v1259 = vpack.c.b16 %v1255, %v1254
      %v1265 = vsel %vm253, %v1226, 0
      %v1268 = vsel %vm253, %v1227, 0
      %v1271 = vsel %vm253, %v1228, 0
      %v1274 = vsel %vm253, %v1229, 0
      %v1277 = vsel %vm253, %v1230, 0
      %1279 = vmatprep.subr.bf16.mxu0 0
      %1280 = vmatpush1.bf16.msra.mxu0 %v1256
      %1281 = vmatprep.subr.bf16.mxu0 0
      %1282 = vmatpush1.bf16.msra.mxu0 %v1257
      %1283 = vmatprep.subr.bf16.mxu0 0
      %1284 = vmatpush1.bf16.msra.mxu0 %v1258
      %1285 = vmatprep.subr.bf16.mxu0 0
      %1286 = vmatpush1.bf16.msra.mxu0 %v1259
      %1287 = vmatprep.subr.bf16.mxu0 0
      %1288 = vmatpush1.bf16.msra.mxu0 0
      %1289 = vmatprep.subr.bf16.mxu0 0
      %1290 = vmatpush1.bf16.msra.mxu0 0
      %1291 = vmatprep.subr.bf16.mxu0 0
      %1292 = vmatpush1.bf16.msra.mxu0 0
      %1293 = vmatprep.subr.bf16.mxu0 0
      %1294 = vmatpush1.bf16.msra.mxu0 0
      %1295 = vmatprep.subr.bf16.mxu0 0
      %1296 = vmatpush1.bf16.msra.mxu0 0
      %1297 = vmatprep.subr.bf16.mxu0 0
      %1298 = vmatpush1.bf16.msra.mxu0 0
      %1299 = vmatprep.subr.bf16.mxu0 0
      %1300 = vmatpush1.bf16.msra.mxu0 0
      %1301 = vmatprep.subr.bf16.mxu0 0
      %1302 = vmatpush1.bf16.msra.mxu0 0
      %1303 = vmatprep.subr.bf16.mxu0 0
      %1304 = vmatpush1.bf16.msra.mxu0 0
      %1305 = vmatprep.subr.bf16.mxu0 0
      %1306 = vmatpush1.bf16.msra.mxu0 0
      %1307 = vmatprep.subr.bf16.mxu0 0
      %1308 = vmatpush1.bf16.msra.mxu0 0
      %1309 = vmatprep.subr.bf16.mxu0 0
      %1310 = vmatpush1.bf16.msra.mxu0 0
      %1311 = vmatprep.mubr.bf16.mxu0 0
      %1312 = vmatmul.mubr.bf16.gmra.mrb[0].mxu0 %v1265
      %v1313 = vpop.f32.mrb[0].mxu0
      %v1314 = vadd.f32 0.0, %v1313
      %v1315 = vpop.f32.mrb[0].mxu0
      %v1316 = vpop.f32.mrb[0].mxu0
      %v1317 = vadd.f32 0.0, %v1316
      %v1318 = vpop.f32.mrb[0].mxu0
      %1319 = vmatprep.mubr.bf16.mxu0 0
      %1320 = vmatmul.mubr.bf16.gmra.mrb[0].mxu0 %v1268
      %v1321 = vpop.f32.mrb[0].mxu0
      %v1322 = vadd.f32 0.0, %v1321
      %v1323 = vpop.f32.mrb[0].mxu0
      %v1324 = vpop.f32.mrb[0].mxu0
      %v1325 = vadd.f32 0.0, %v1324
      %v1326 = vpop.f32.mrb[0].mxu0
      %1327 = vmatprep.mubr.bf16.mxu0 0
      %1328 = vmatmul.mubr.bf16.gmra.mrb[0].mxu0 %v1271
      %v1329 = vpop.f32.mrb[0].mxu0
      %v1330 = vadd.f32 0.0, %v1329
      %v1331 = vpop.f32.mrb[0].mxu0
      %v1332 = vpop.f32.mrb[0].mxu0
      %v1333 = vadd.f32 0.0, %v1332
      %v1334 = vpop.f32.mrb[0].mxu0
      %1335 = vmatprep.mubr.bf16.mxu0 0
      %1336 = vmatmul.mubr.bf16.gmra.mrb[0].mxu0 %v1274
      %v1337 = vpop.f32.mrb[0].mxu0
      %v1338 = vadd.f32 0.0, %v1337
      %v1339 = vpop.f32.mrb[0].mxu0
      %v1340 = vpop.f32.mrb[0].mxu0
      %v1341 = vadd.f32 0.0, %v1340
      %v1342 = vpop.f32.mrb[0].mxu0
      %1343 = vmatprep.mubr.bf16.mxu0 0
      %1344 = vmatmul.mubr.bf16.gmra.mrb[0].mxu0 %v1277
      %v1345 = vpop.f32.mrb[0].mxu0
      %v1346 = vadd.f32 0.0, %v1345
      %v1347 = vpop.f32.mrb[0].mxu0
      %v1348 = vpop.f32.mrb[0].mxu0
      %v1349 = vpop.f32.mrb[0].mxu0
      %1350 = vdwg.mxu0
      %v1351 = vadd.f32 %v1208, %v1314
      %v1352 = vadd.f32 %v1209, %v1317
      %v1353 = vadd.f32 %v1210, %v1322
      %v1354 = vadd.f32 %v1211, %v1325
      %v1355 = vadd.f32 %v1212, %v1330
      %v1356 = vadd.f32 %v1213, %v1333
      %v1357 = vadd.f32 %v1214, %v1338
      %v1358 = vadd.f32 %v1215, %v1341
      %v1359 = vadd.f32 %v1216, %v1346
      %v1360 = vld [vmem:[%s798] sm:$0xff]
      %v1361 = vld [vmem:[%s798 + $0x8] sm:$0xff]
      %v1362 = vld [vmem:[%s798 + $0x10] sm:$0xff]
      %v1363 = vld [vmem:[%s798 + $0x18] sm:$0xff]
      %v1364 = vld [vmem:[%s798 + $0x20] sm:$0xff]
      %v1365 = vld [vmem:[%s798 + $0x28] sm:$0xff]
      %v1366 = vld [vmem:[%s798 + $0x30] sm:$0xff]
      %v1367 = vld [vmem:[%s798 + $0x38] sm:$0xff]
      %v1368 = vld [vmem:[%s798 + $0x40] sm:$0xff]
      %v1369 = vpack.c.bf16 %v1361, %v1360
      %v1370 = vpack.c.bf16 %v1363, %v1362
      %v1371 = vpack.c.bf16 %v1365, %v1364
      %v1372 = vpack.c.bf16 %v1367, %v1366
      %v1373 = vpack.c.bf16 %v1368, %v1368
      %s1374 = scalar_lea.vmem %s2, 128
      %v1375 = vld [vmem:[%s1374] sm:$0xf]
      %v1376 = vld [vmem:[%s1374 + $0x4] sm:$0xf]
      %v1377 = vld [vmem:[%s1374 + $0x8] sm:$0xf]
      %v1378 = vld [vmem:[%s1374 + $0xc] sm:$0xf]
      %v1379 = vld [vmem:[%s1374 + $0x10] sm:$0xf]
      %v1380 = vld [vmem:[%s1374 + $0x14] sm:$0xf]
      %v1381 = vld [vmem:[%s1374 + $0x18] sm:$0xf]
      %v1382 = vld [vmem:[%s1374 + $0x1c] sm:$0xf]
      %v1391 = vunpack.c.l.b16 %v1375
      %v1392 = vunpack.c.l.b16 %v1376
      %v1393 = vunpack.c.l.b16 %v1377
      %v1394 = vunpack.c.l.b16 %v1378
      %v1395 = vunpack.c.l.b16 %v1379
      %v1396 = vunpack.c.l.b16 %v1380
      %v1397 = vunpack.c.l.b16 %v1381
      %v1398 = vunpack.c.l.b16 %v1382
      %v1399 = vpack.c.b16 %v1392, %v1391
      %v1400 = vpack.c.b16 %v1394, %v1393
      %v1401 = vpack.c.b16 %v1396, %v1395
      %v1402 = vpack.c.b16 %v1398, %v1397
      %v1408 = vsel %vm253, %v1369, 0
      %v1411 = vsel %vm253, %v1370, 0
      %v1414 = vsel %vm253, %v1371, 0
      %v1417 = vsel %vm253, %v1372, 0
      %v1420 = vsel %vm253, %v1373, 0
      %1422 = vmatprep.subr.bf16.mxu0 0
      %1423 = vmatpush1.bf16.msra.mxu0 %v1399
      %1424 = vmatprep.subr.bf16.mxu0 0
      %1425 = vmatpush1.bf16.msra.mxu0 %v1400
      %1426 = vmatprep.subr.bf16.mxu0 0
      %1427 = vmatpush1.bf16.msra.mxu0 %v1401
      %1428 = vmatprep.subr.bf16.mxu0 0
      %1429 = vmatpush1.bf16.msra.mxu0 %v1402
      %1430 = vmatprep.subr.bf16.mxu0 0
      %1431 = vmatpush1.bf16.msra.mxu0 0
      %1432 = vmatprep.subr.bf16.mxu0 0
      %1433 = vmatpush1.bf16.msra.mxu0 0
      %1434 = vmatprep.subr.bf16.mxu0 0
      %1435 = vmatpush1.bf16.msra.mxu0 0
      %1436 = vmatprep.subr.bf16.mxu0 0
      %1437 = vmatpush1.bf16.msra.mxu0 0
      %1438 = vmatprep.subr.bf16.mxu0 0
      %1439 = vmatpush1.bf16.msra.mxu0 0
      %1440 = vmatprep.subr.bf16.mxu0 0
      %1441 = vmatpush1.bf16.msra.mxu0 0
      %1442 = vmatprep.subr.bf16.mxu0 0
      %1443 = vmatpush1.bf16.msra.mxu0 0
      %1444 = vmatprep.subr.bf16.mxu0 0
      %1445 = vmatpush1.bf16.msra.mxu0 0
      %1446 = vmatprep.subr.bf16.mxu0 0
      %1447 = vmatpush1.bf16.msra.mxu0 0
      %1448 = vmatprep.subr.bf16.mxu0 0
      %1449 = vmatpush1.bf16.msra.mxu0 0
      %1450 = vmatprep.subr.bf16.mxu0 0
      %1451 = vmatpush1.bf16.msra.mxu0 0
      %1452 = vmatprep.subr.bf16.mxu0 0
      %1453 = vmatpush1.bf16.msra.mxu0 0
      %1454 = vmatprep.mubr.bf16.mxu0 0
      %1455 = vmatmul.mubr.bf16.gmra.mrb[0].mxu0 %v1408
      %v1456 = vpop.f32.mrb[0].mxu0
      %v1457 = vadd.f32 0.0, %v1456
      %v1458 = vpop.f32.mrb[0].mxu0
      %v1459 = vpop.f32.mrb[0].mxu0
      %v1460 = vadd.f32 0.0, %v1459
      %v1461 = vpop.f32.mrb[0].mxu0
      %1462 = vmatprep.mubr.bf16.mxu0 0
      %1463 = vmatmul.mubr.bf16.gmra.mrb[0].mxu0 %v1411
      %v1464 = vpop.f32.mrb[0].mxu0
      %v1465 = vadd.f32 0.0, %v1464
      %v1466 = vpop.f32.mrb[0].mxu0
      %v1467 = vpop.f32.mrb[0].mxu0
      %v1468 = vadd.f32 0.0, %v1467
      %v1469 = vpop.f32.mrb[0].mxu0
      %1470 = vmatprep.mubr.bf16.mxu0 0
      %1471 = vmatmul.mubr.bf16.gmra.mrb[0].mxu0 %v1414
      %v1472 = vpop.f32.mrb[0].mxu0
      %v1473 = vadd.f32 0.0, %v1472
      %v1474 = vpop.f32.mrb[0].mxu0
      %v1475 = vpop.f32.mrb[0].mxu0
      %v1476 = vadd.f32 0.0, %v1475
      %v1477 = vpop.f32.mrb[0].mxu0
      %1478 = vmatprep.mubr.bf16.mxu0 0
      %1479 = vmatmul.mubr.bf16.gmra.mrb[0].mxu0 %v1417
      %v1480 = vpop.f32.mrb[0].mxu0
      %v1481 = vadd.f32 0.0, %v1480
      %v1482 = vpop.f32.mrb[0].mxu0
      %v1483 = vpop.f32.mrb[0].mxu0
      %v1484 = vadd.f32 0.0, %v1483
      %v1485 = vpop.f32.mrb[0].mxu0
      %1486 = vmatprep.mubr.bf16.mxu0 0
      %1487 = vmatmul.mubr.bf16.gmra.mrb[0].mxu0 %v1420
      %v1488 = vpop.f32.mrb[0].mxu0
      %v1489 = vadd.f32 0.0, %v1488
      %v1490 = vpop.f32.mrb[0].mxu0
      %v1491 = vpop.f32.mrb[0].mxu0
      %v1492 = vpop.f32.mrb[0].mxu0
      %1493 = vdwg.mxu0
      %v1494 = vadd.f32 %v1351, %v1457
      %v1495 = vadd.f32 %v1352, %v1460
      %v1496 = vadd.f32 %v1353, %v1465
      %v1497 = vadd.f32 %v1354, %v1468
      %v1498 = vadd.f32 %v1355, %v1473
      %v1499 = vadd.f32 %v1356, %v1476
      %v1500 = vadd.f32 %v1357, %v1481
      %v1501 = vadd.f32 %v1358, %v1484
      %v1502 = vadd.f32 %v1359, %v1489
      %v1503 = vld [vmem:[%s789 + $0x1] sm:$0xff]
      %v1504 = vld [vmem:[%s789 + $0x9] sm:$0xff]
      %v1505 = vld [vmem:[%s789 + $0x11] sm:$0xff]
      %v1506 = vld [vmem:[%s789 + $0x19] sm:$0xff]
      %v1507 = vld [vmem:[%s789 + $0x21] sm:$0xff]
      %v1508 = vld [vmem:[%s789 + $0x29] sm:$0xff]
      %v1509 = vld [vmem:[%s789 + $0x31] sm:$0xff]
      %v1510 = vld [vmem:[%s789 + $0x39] sm:$0xff]
      %v1511 = vld [vmem:[%s789 + $0x41] sm:$0xff]
      %v1512 = vpack.c.bf16 %v1504, %v1503
      %v1513 = vpack.c.bf16 %v1506, %v1505
      %v1514 = vpack.c.bf16 %v1508, %v1507
      %v1515 = vpack.c.bf16 %v1510, %v1509
      %v1516 = vpack.c.bf16 %v1511, %v1511
      %s1517 = scalar_lea.vmem %s2, 160
      %v1518 = vld [vmem:[%s1517] sm:$0xf]
      %v1519 = vld [vmem:[%s1517 + $0x4] sm:$0xf]
      %v1520 = vld [vmem:[%s1517 + $0x8] sm:$0xf]
      %v1521 = vld [vmem:[%s1517 + $0xc] sm:$0xf]
      %v1522 = vld [vmem:[%s1517 + $0x10] sm:$0xf]
      %v1523 = vld [vmem:[%s1517 + $0x14] sm:$0xf]
      %v1524 = vld [vmem:[%s1517 + $0x18] sm:$0xf]
      %v1525 = vld [vmem:[%s1517 + $0x1c] sm:$0xf]
      %v1534 = vunpack.c.l.b16 %v1518
      %v1535 = vunpack.c.l.b16 %v1519
      %v1536 = vunpack.c.l.b16 %v1520
      %v1537 = vunpack.c.l.b16 %v1521
      %v1538 = vunpack.c.l.b16 %v1522
      %v1539 = vunpack.c.l.b16 %v1523
      %v1540 = vunpack.c.l.b16 %v1524
      %v1541 = vunpack.c.l.b16 %v1525
      %v1542 = vpack.c.b16 %v1535, %v1534
      %v1543 = vpack.c.b16 %v1537, %v1536
      %v1544 = vpack.c.b16 %v1539, %v1538
      %v1545 = vpack.c.b16 %v1541, %v1540
      %v1551 = vsel %vm253, %v1512, 0
      %v1554 = vsel %vm253, %v1513, 0
      %v1557 = vsel %vm253, %v1514, 0
      %v1560 = vsel %vm253, %v1515, 0
      %v1563 = vsel %vm253, %v1516, 0
      %1565 = vmatprep.subr.bf16.mxu0 0
      %1566 = vmatpush1.bf16.msra.mxu0 %v1542
      %1567 = vmatprep.subr.bf16.mxu0 0
      %1568 = vmatpush1.bf16.msra.mxu0 %v1543
      %1569 = vmatprep.subr.bf16.mxu0 0
      %1570 = vmatpush1.bf16.msra.mxu0 %v1544
      %1571 = vmatprep.subr.bf16.mxu0 0
      %1572 = vmatpush1.bf16.msra.mxu0 %v1545
      %1573 = vmatprep.subr.bf16.mxu0 0
      %1574 = vmatpush1.bf16.msra.mxu0 0
      %1575 = vmatprep.subr.bf16.mxu0 0
      %1576 = vmatpush1.bf16.msra.mxu0 0
      %1577 = vmatprep.subr.bf16.mxu0 0
      %1578 = vmatpush1.bf16.msra.mxu0 0
      %1579 = vmatprep.subr.bf16.mxu0 0
      %1580 = vmatpush1.bf16.msra.mxu0 0
      %1581 = vmatprep.subr.bf16.mxu0 0
      %1582 = vmatpush1.bf16.msra.mxu0 0
      %1583 = vmatprep.subr.bf16.mxu0 0
      %1584 = vmatpush1.bf16.msra.mxu0 0
      %1585 = vmatprep.subr.bf16.mxu0 0
      %1586 = vmatpush1.bf16.msra.mxu0 0
      %1587 = vmatprep.subr.bf16.mxu0 0
      %1588 = vmatpush1.bf16.msra.mxu0 0
      %1589 = vmatprep.subr.bf16.mxu0 0
      %1590 = vmatpush1.bf16.msra.mxu0 0
      %1591 = vmatprep.subr.bf16.mxu0 0
      %1592 = vmatpush1.bf16.msra.mxu0 0
      %1593 = vmatprep.subr.bf16.mxu0 0
      %1594 = vmatpush1.bf16.msra.mxu0 0
      %1595 = vmatprep.subr.bf16.mxu0 0
      %1596 = vmatpush1.bf16.msra.mxu0 0
      %1597 = vmatprep.mubr.bf16.mxu0 0
      %1598 = vmatmul.mubr.bf16.gmra.mrb[0].mxu0 %v1551
      %v1599 = vpop.f32.mrb[0].mxu0
      %v1600 = vadd.f32 0.0, %v1599
      %v1601 = vpop.f32.mrb[0].mxu0
      %v1602 = vpop.f32.mrb[0].mxu0
      %v1603 = vadd.f32 0.0, %v1602
      %v1604 = vpop.f32.mrb[0].mxu0
      %1605 = vmatprep.mubr.bf16.mxu0 0
      %1606 = vmatmul.mubr.bf16.gmra.mrb[0].mxu0 %v1554
      %v1607 = vpop.f32.mrb[0].mxu0
      %v1608 = vadd.f32 0.0, %v1607
      %v1609 = vpop.f32.mrb[0].mxu0
      %v1610 = vpop.f32.mrb[0].mxu0
      %v1611 = vadd.f32 0.0, %v1610
      %v1612 = vpop.f32.mrb[0].mxu0
      %1613 = vmatprep.mubr.bf16.mxu0 0
      %1614 = vmatmul.mubr.bf16.gmra.mrb[0].mxu0 %v1557
      %v1615 = vpop.f32.mrb[0].mxu0
      %v1616 = vadd.f32 0.0, %v1615
      %v1617 = vpop.f32.mrb[0].mxu0
      %v1618 = vpop.f32.mrb[0].mxu0
      %v1619 = vadd.f32 0.0, %v1618
      %v1620 = vpop.f32.mrb[0].mxu0
      %1621 = vmatprep.mubr.bf16.mxu0 0
      %1622 = vmatmul.mubr.bf16.gmra.mrb[0].mxu0 %v1560
      %v1623 = vpop.f32.mrb[0].mxu0
      %v1624 = vadd.f32 0.0, %v1623
      %v1625 = vpop.f32.mrb[0].mxu0
      %v1626 = vpop.f32.mrb[0].mxu0
      %v1627 = vadd.f32 0.0, %v1626
      %v1628 = vpop.f32.mrb[0].mxu0
      %1629 = vmatprep.mubr.bf16.mxu0 0
      %1630 = vmatmul.mubr.bf16.gmra.mrb[0].mxu0 %v1563
      %v1631 = vpop.f32.mrb[0].mxu0
      %v1632 = vadd.f32 0.0, %v1631
      %v1633 = vpop.f32.mrb[0].mxu0
      %v1634 = vpop.f32.mrb[0].mxu0
      %v1635 = vpop.f32.mrb[0].mxu0
      %1636 = vdwg.mxu0
      %v1637 = vadd.f32 %v1494, %v1600
      %v1638 = vadd.f32 %v1495, %v1603
      %v1639 = vadd.f32 %v1496, %v1608
      %v1640 = vadd.f32 %v1497, %v1611
      %v1641 = vadd.f32 %v1498, %v1616
      %v1642 = vadd.f32 %v1499, %v1619
      %v1643 = vadd.f32 %v1500, %v1624
      %v1644 = vadd.f32 %v1501, %v1627
      %v1645 = vadd.f32 %v1502, %v1632
      %v1646 = vld [vmem:[#allocation2 + $0x9] sm:$0xff]
      %v1647 = vld [vmem:[#allocation2 + $0x11] sm:$0xff]
      %v1648 = vld [vmem:[#allocation2 + $0x19] sm:$0xff]
      %v1649 = vld [vmem:[#allocation2 + $0x21] sm:$0xff]
      %v1650 = vld [vmem:[#allocation2 + $0x29] sm:$0xff]
      %v1651 = vld [vmem:[#allocation2 + $0x31] sm:$0xff]
      %v1652 = vld [vmem:[#allocation2 + $0x39] sm:$0xff]
      %v1653 = vld [vmem:[#allocation2 + $0x41] sm:$0xff]
      %v1654 = vld [vmem:[#allocation2 + $0x49] sm:$0xff]
      %v1655 = vpack.c.bf16 %v1647, %v1646
      %v1656 = vpack.c.bf16 %v1649, %v1648
      %v1657 = vpack.c.bf16 %v1651, %v1650
      %v1658 = vpack.c.bf16 %v1653, %v1652
      %v1659 = vpack.c.bf16 %v1654, %v1654
      %s1660 = scalar_lea.vmem %s2, 192
      %v1661 = vld [vmem:[%s1660] sm:$0xf]
      %v1662 = vld [vmem:[%s1660 + $0x4] sm:$0xf]
      %v1663 = vld [vmem:[%s1660 + $0x8] sm:$0xf]
      %v1664 = vld [vmem:[%s1660 + $0xc] sm:$0xf]
      %v1665 = vld [vmem:[%s1660 + $0x10] sm:$0xf]
      %v1666 = vld [vmem:[%s1660 + $0x14] sm:$0xf]
      %v1667 = vld [vmem:[%s1660 + $0x18] sm:$0xf]
      %v1668 = vld [vmem:[%s1660 + $0x1c] sm:$0xf]
      %v1677 = vunpack.c.l.b16 %v1661
      %v1678 = vunpack.c.l.b16 %v1662
      %v1679 = vunpack.c.l.b16 %v1663
      %v1680 = vunpack.c.l.b16 %v1664
      %v1681 = vunpack.c.l.b16 %v1665
      %v1682 = vunpack.c.l.b16 %v1666
      %v1683 = vunpack.c.l.b16 %v1667
      %v1684 = vunpack.c.l.b16 %v1668
      %v1685 = vpack.c.b16 %v1678, %v1677
      %v1686 = vpack.c.b16 %v1680, %v1679
      %v1687 = vpack.c.b16 %v1682, %v1681
      %v1688 = vpack.c.b16 %v1684, %v1683
      %v1694 = vsel %vm253, %v1655, 0
      %v1697 = vsel %vm253, %v1656, 0
      %v1700 = vsel %vm253, %v1657, 0
      %v1703 = vsel %vm253, %v1658, 0
      %v1706 = vsel %vm253, %v1659, 0
      %1708 = vmatprep.subr.bf16.mxu0 0
      %1709 = vmatpush1.bf16.msra.mxu0 %v1685
      %1710 = vmatprep.subr.bf16.mxu0 0
      %1711 = vmatpush1.bf16.msra.mxu0 %v1686
      %1712 = vmatprep.subr.bf16.mxu0 0
      %1713 = vmatpush1.bf16.msra.mxu0 %v1687
      %1714 = vmatprep.subr.bf16.mxu0 0
      %1715 = vmatpush1.bf16.msra.mxu0 %v1688
      %1716 = vmatprep.subr.bf16.mxu0 0
      %1717 = vmatpush1.bf16.msra.mxu0 0
      %1718 = vmatprep.subr.bf16.mxu0 0
      %1719 = vmatpush1.bf16.msra.mxu0 0
      %1720 = vmatprep.subr.bf16.mxu0 0
      %1721 = vmatpush1.bf16.msra.mxu0 0
      %1722 = vmatprep.subr.bf16.mxu0 0
      %1723 = vmatpush1.bf16.msra.mxu0 0
      %1724 = vmatprep.subr.bf16.mxu0 0
      %1725 = vmatpush1.bf16.msra.mxu0 0
      %1726 = vmatprep.subr.bf16.mxu0 0
      %1727 = vmatpush1.bf16.msra.mxu0 0
      %1728 = vmatprep.subr.bf16.mxu0 0
      %1729 = vmatpush1.bf16.msra.mxu0 0
      %1730 = vmatprep.subr.bf16.mxu0 0
      %1731 = vmatpush1.bf16.msra.mxu0 0
      %1732 = vmatprep.subr.bf16.mxu0 0
      %1733 = vmatpush1.bf16.msra.mxu0 0
      %1734 = vmatprep.subr.bf16.mxu0 0
      %1735 = vmatpush1.bf16.msra.mxu0 0
      %1736 = vmatprep.subr.bf16.mxu0 0
      %1737 = vmatpush1.bf16.msra.mxu0 0
      %1738 = vmatprep.subr.bf16.mxu0 0
      %1739 = vmatpush1.bf16.msra.mxu0 0
      %1740 = vmatprep.mubr.bf16.mxu0 0
      %1741 = vmatmul.mubr.bf16.gmra.mrb[0].mxu0 %v1694
      %v1742 = vpop.f32.mrb[0].mxu0
      %v1743 = vadd.f32 0.0, %v1742
      %v1744 = vpop.f32.mrb[0].mxu0
      %v1745 = vpop.f32.mrb[0].mxu0
      %v1746 = vadd.f32 0.0, %v1745
      %v1747 = vpop.f32.mrb[0].mxu0
      %1748 = vmatprep.mubr.bf16.mxu0 0
      %1749 = vmatmul.mubr.bf16.gmra.mrb[0].mxu0 %v1697
      %v1750 = vpop.f32.mrb[0].mxu0
      %v1751 = vadd.f32 0.0, %v1750
      %v1752 = vpop.f32.mrb[0].mxu0
      %v1753 = vpop.f32.mrb[0].mxu0
      %v1754 = vadd.f32 0.0, %v1753
      %v1755 = vpop.f32.mrb[0].mxu0
      %1756 = vmatprep.mubr.bf16.mxu0 0
      %1757 = vmatmul.mubr.bf16.gmra.mrb[0].mxu0 %v1700
      %v1758 = vpop.f32.mrb[0].mxu0
      %v1759 = vadd.f32 0.0, %v1758
      %v1760 = vpop.f32.mrb[0].mxu0
      %v1761 = vpop.f32.mrb[0].mxu0
      %v1762 = vadd.f32 0.0, %v1761
      %v1763 = vpop.f32.mrb[0].mxu0
      %1764 = vmatprep.mubr.bf16.mxu0 0
      %1765 = vmatmul.mubr.bf16.gmra.mrb[0].mxu0 %v1703
      %v1766 = vpop.f32.mrb[0].mxu0
      %v1767 = vadd.f32 0.0, %v1766
      %v1768 = vpop.f32.mrb[0].mxu0
      %v1769 = vpop.f32.mrb[0].mxu0
      %v1770 = vadd.f32 0.0, %v1769
      %v1771 = vpop.f32.mrb[0].mxu0
      %1772 = vmatprep.mubr.bf16.mxu0 0
      %1773 = vmatmul.mubr.bf16.gmra.mrb[0].mxu0 %v1706
      %v1774 = vpop.f32.mrb[0].mxu0
      %v1775 = vadd.f32 0.0, %v1774
      %v1776 = vpop.f32.mrb[0].mxu0
      %v1777 = vpop.f32.mrb[0].mxu0
      %v1778 = vpop.f32.mrb[0].mxu0
      %1779 = vdwg.mxu0
      %v1780 = vadd.f32 %v1637, %v1743
      %v1781 = vadd.f32 %v1638, %v1746
      %v1782 = vadd.f32 %v1639, %v1751
      %v1783 = vadd.f32 %v1640, %v1754
      %v1784 = vadd.f32 %v1641, %v1759
      %v1785 = vadd.f32 %v1642, %v1762
      %v1786 = vadd.f32 %v1643, %v1767
      %v1787 = vadd.f32 %v1644, %v1770
      %v1788 = vadd.f32 %v1645, %v1775
      %v1789 = vld [vmem:[%s780 + $0x9] sm:$0xff]
      %v1790 = vld [vmem:[%s780 + $0x11] sm:$0xff]
      %v1791 = vld [vmem:[%s780 + $0x19] sm:$0xff]
      %v1792 = vld [vmem:[%s780 + $0x21] sm:$0xff]
      %v1793 = vld [vmem:[%s780 + $0x29] sm:$0xff]
      %v1794 = vld [vmem:[%s780 + $0x31] sm:$0xff]
      %v1795 = vld [vmem:[%s780 + $0x39] sm:$0xff]
      %v1796 = vld [vmem:[%s780 + $0x41] sm:$0xff]
      %v1797 = vld [vmem:[%s780 + $0x49] sm:$0xff]
      %v1798 = vpack.c.bf16 %v1790, %v1789
      %v1799 = vpack.c.bf16 %v1792, %v1791
      %v1800 = vpack.c.bf16 %v1794, %v1793
      %v1801 = vpack.c.bf16 %v1796, %v1795
      %v1802 = vpack.c.bf16 %v1797, %v1797
      %s1803 = scalar_lea.vmem %s2, 224
      %v1804 = vld [vmem:[%s1803] sm:$0xf]
      %v1805 = vld [vmem:[%s1803 + $0x4] sm:$0xf]
      %v1806 = vld [vmem:[%s1803 + $0x8] sm:$0xf]
      %v1807 = vld [vmem:[%s1803 + $0xc] sm:$0xf]
      %v1808 = vld [vmem:[%s1803 + $0x10] sm:$0xf]
      %v1809 = vld [vmem:[%s1803 + $0x14] sm:$0xf]
      %v1810 = vld [vmem:[%s1803 + $0x18] sm:$0xf]
      %v1811 = vld [vmem:[%s1803 + $0x1c] sm:$0xf]
      %v1820 = vunpack.c.l.b16 %v1804
      %v1821 = vunpack.c.l.b16 %v1805
      %v1822 = vunpack.c.l.b16 %v1806
      %v1823 = vunpack.c.l.b16 %v1807
      %v1824 = vunpack.c.l.b16 %v1808
      %v1825 = vunpack.c.l.b16 %v1809
      %v1826 = vunpack.c.l.b16 %v1810
      %v1827 = vunpack.c.l.b16 %v1811
      %v1828 = vpack.c.b16 %v1821, %v1820
      %v1829 = vpack.c.b16 %v1823, %v1822
      %v1830 = vpack.c.b16 %v1825, %v1824
      %v1831 = vpack.c.b16 %v1827, %v1826
      %v1837 = vsel %vm253, %v1798, 0
      %v1840 = vsel %vm253, %v1799, 0
      %v1843 = vsel %vm253, %v1800, 0
      %v1846 = vsel %vm253, %v1801, 0
      %v1849 = vsel %vm253, %v1802, 0
      %1851 = vmatprep.subr.bf16.mxu0 0
      %1852 = vmatpush1.bf16.msra.mxu0 %v1828
      %1853 = vmatprep.subr.bf16.mxu0 0
      %1854 = vmatpush1.bf16.msra.mxu0 %v1829
      %1855 = vmatprep.subr.bf16.mxu0 0
      %1856 = vmatpush1.bf16.msra.mxu0 %v1830
      %1857 = vmatprep.subr.bf16.mxu0 0
      %1858 = vmatpush1.bf16.msra.mxu0 %v1831
      %1859 = vmatprep.subr.bf16.mxu0 0
      %1860 = vmatpush1.bf16.msra.mxu0 0
      %1861 = vmatprep.subr.bf16.mxu0 0
      %1862 = vmatpush1.bf16.msra.mxu0 0
      %1863 = vmatprep.subr.bf16.mxu0 0
      %1864 = vmatpush1.bf16.msra.mxu0 0
      %1865 = vmatprep.subr.bf16.mxu0 0
      %1866 = vmatpush1.bf16.msra.mxu0 0
      %1867 = vmatprep.subr.bf16.mxu0 0
      %1868 = vmatpush1.bf16.msra.mxu0 0
      %1869 = vmatprep.subr.bf16.mxu0 0
      %1870 = vmatpush1.bf16.msra.mxu0 0
      %1871 = vmatprep.subr.bf16.mxu0 0
      %1872 = vmatpush1.bf16.msra.mxu0 0
      %1873 = vmatprep.subr.bf16.mxu0 0
      %1874 = vmatpush1.bf16.msra.mxu0 0
      %1875 = vmatprep.subr.bf16.mxu0 0
      %1876 = vmatpush1.bf16.msra.mxu0 0
      %1877 = vmatprep.subr.bf16.mxu0 0
      %1878 = vmatpush1.bf16.msra.mxu0 0
      %1879 = vmatprep.subr.bf16.mxu0 0
      %1880 = vmatpush1.bf16.msra.mxu0 0
      %1881 = vmatprep.subr.bf16.mxu0 0
      %1882 = vmatpush1.bf16.msra.mxu0 0
      %1883 = vmatprep.mubr.bf16.mxu0 0
      %1884 = vmatmul.mubr.bf16.gmra.mrb[0].mxu0 %v1837
      %v1885 = vpop.f32.mrb[0].mxu0
      %v1886 = vadd.f32 0.0, %v1885
      %v1887 = vpop.f32.mrb[0].mxu0
      %v1888 = vpop.f32.mrb[0].mxu0
      %v1889 = vadd.f32 0.0, %v1888
      %v1890 = vpop.f32.mrb[0].mxu0
      %1891 = vmatprep.mubr.bf16.mxu0 0
      %1892 = vmatmul.mubr.bf16.gmra.mrb[0].mxu0 %v1840
      %v1893 = vpop.f32.mrb[0].mxu0
      %v1894 = vadd.f32 0.0, %v1893
      %v1895 = vpop.f32.mrb[0].mxu0
      %v1896 = vpop.f32.mrb[0].mxu0
      %v1897 = vadd.f32 0.0, %v1896
      %v1898 = vpop.f32.mrb[0].mxu0
      %1899 = vmatprep.mubr.bf16.mxu0 0
      %1900 = vmatmul.mubr.bf16.gmra.mrb[0].mxu0 %v1843
      %v1901 = vpop.f32.mrb[0].mxu0
      %v1902 = vadd.f32 0.0, %v1901
      %v1903 = vpop.f32.mrb[0].mxu0
      %v1904 = vpop.f32.mrb[0].mxu0
      %v1905 = vadd.f32 0.0, %v1904
      %v1906 = vpop.f32.mrb[0].mxu0
      %1907 = vmatprep.mubr.bf16.mxu0 0
      %1908 = vmatmul.mubr.bf16.gmra.mrb[0].mxu0 %v1846
      %v1909 = vpop.f32.mrb[0].mxu0
      %v1910 = vadd.f32 0.0, %v1909
      %v1911 = vpop.f32.mrb[0].mxu0
      %v1912 = vpop.f32.mrb[0].mxu0
      %v1913 = vadd.f32 0.0, %v1912
      %v1914 = vpop.f32.mrb[0].mxu0
      %1915 = vmatprep.mubr.bf16.mxu0 0
      %1916 = vmatmul.mubr.bf16.gmra.mrb[0].mxu0 %v1849
      %v1917 = vpop.f32.mrb[0].mxu0
      %v1918 = vadd.f32 0.0, %v1917
      %v1919 = vpop.f32.mrb[0].mxu0
      %v1920 = vpop.f32.mrb[0].mxu0
      %v1921 = vpop.f32.mrb[0].mxu0
      %1922 = vdwg.mxu0
      %v1923 = vadd.f32 %v1780, %v1886
      %v1924 = vadd.f32 %v1781, %v1889
      %v1925 = vadd.f32 %v1782, %v1894
      %v1926 = vadd.f32 %v1783, %v1897
      %v1927 = vadd.f32 %v1784, %v1902
      %v1928 = vadd.f32 %v1785, %v1905
      %v1929 = vadd.f32 %v1786, %v1910
      %v1930 = vadd.f32 %v1787, %v1913
      %v1931 = vadd.f32 %v1788, %v1918
      %v1932 = vld [vmem:[#allocation2 + $0xa] sm:$0xff]
      %v1933 = vld [vmem:[#allocation2 + $0x12] sm:$0xff]
      %v1934 = vld [vmem:[#allocation2 + $0x1a] sm:$0xff]
      %v1935 = vld [vmem:[#allocation2 + $0x22] sm:$0xff]
      %v1936 = vld [vmem:[#allocation2 + $0x2a] sm:$0xff]
      %v1937 = vld [vmem:[#allocation2 + $0x32] sm:$0xff]
      %v1938 = vld [vmem:[#allocation2 + $0x3a] sm:$0xff]
      %v1939 = vld [vmem:[#allocation2 + $0x42] sm:$0xff]
      %v1940 = vld [vmem:[#allocation2 + $0x4a] sm:$0xff]
      %v1941 = vpack.c.bf16 %v1933, %v1932
      %v1942 = vpack.c.bf16 %v1935, %v1934
      %v1943 = vpack.c.bf16 %v1937, %v1936
      %v1944 = vpack.c.bf16 %v1939, %v1938
      %v1945 = vpack.c.bf16 %v1940, %v1940
      %s1946 = scalar_lea.vmem %s2, 256
      %v1947 = vld [vmem:[%s1946] sm:$0xf]
      %v1948 = vld [vmem:[%s1946 + $0x4] sm:$0xf]
      %v1949 = vld [vmem:[%s1946 + $0x8] sm:$0xf]
      %v1950 = vld [vmem:[%s1946 + $0xc] sm:$0xf]
      %v1951 = vld [vmem:[%s1946 + $0x10] sm:$0xf]
      %v1952 = vld [vmem:[%s1946 + $0x14] sm:$0xf]
      %v1953 = vld [vmem:[%s1946 + $0x18] sm:$0xf]
      %v1954 = vld [vmem:[%s1946 + $0x1c] sm:$0xf]
      %v1963 = vunpack.c.l.b16 %v1947
      %v1964 = vunpack.c.l.b16 %v1948
      %v1965 = vunpack.c.l.b16 %v1949
      %v1966 = vunpack.c.l.b16 %v1950
      %v1967 = vunpack.c.l.b16 %v1951
      %v1968 = vunpack.c.l.b16 %v1952
      %v1969 = vunpack.c.l.b16 %v1953
      %v1970 = vunpack.c.l.b16 %v1954
      %v1971 = vpack.c.b16 %v1964, %v1963
      %v1972 = vpack.c.b16 %v1966, %v1965
      %v1973 = vpack.c.b16 %v1968, %v1967
      %v1974 = vpack.c.b16 %v1970, %v1969
      %v1980 = vsel %vm253, %v1941, 0
      %v1983 = vsel %vm253, %v1942, 0
      %v1986 = vsel %vm253, %v1943, 0
      %v1989 = vsel %vm253, %v1944, 0
      %v1992 = vsel %vm253, %v1945, 0
      %1994 = vmatprep.subr.bf16.mxu0 0
      %1995 = vmatpush1.bf16.msra.mxu0 %v1971
      %1996 = vmatprep.subr.bf16.mxu0 0
      %1997 = vmatpush1.bf16.msra.mxu0 %v1972
      %1998 = vmatprep.subr.bf16.mxu0 0
      %1999 = vmatpush1.bf16.msra.mxu0 %v1973
      %2000 = vmatprep.subr.bf16.mxu0 0
      %2001 = vmatpush1.bf16.msra.mxu0 %v1974
      %2002 = vmatprep.subr.bf16.mxu0 0
      %2003 = vmatpush1.bf16.msra.mxu0 0
      %2004 = vmatprep.subr.bf16.mxu0 0
      %2005 = vmatpush1.bf16.msra.mxu0 0
      %2006 = vmatprep.subr.bf16.mxu0 0
      %2007 = vmatpush1.bf16.msra.mxu0 0
      %2008 = vmatprep.subr.bf16.mxu0 0
      %2009 = vmatpush1.bf16.msra.mxu0 0
      %2010 = vmatprep.subr.bf16.mxu0 0
      %2011 = vmatpush1.bf16.msra.mxu0 0
      %2012 = vmatprep.subr.bf16.mxu0 0
      %2013 = vmatpush1.bf16.msra.mxu0 0
      %2014 = vmatprep.subr.bf16.mxu0 0
      %2015 = vmatpush1.bf16.msra.mxu0 0
      %2016 = vmatprep.subr.bf16.mxu0 0
      %2017 = vmatpush1.bf16.msra.mxu0 0
      %2018 = vmatprep.subr.bf16.mxu0 0
      %2019 = vmatpush1.bf16.msra.mxu0 0
      %2020 = vmatprep.subr.bf16.mxu0 0
      %2021 = vmatpush1.bf16.msra.mxu0 0
      %2022 = vmatprep.subr.bf16.mxu0 0
      %2023 = vmatpush1.bf16.msra.mxu0 0
      %2024 = vmatprep.subr.bf16.mxu0 0
      %2025 = vmatpush1.bf16.msra.mxu0 0
      %2026 = vmatprep.mubr.bf16.mxu0 0
      %2027 = vmatmul.mubr.bf16.gmra.mrb[0].mxu0 %v1980
      %v2028 = vpop.f32.mrb[0].mxu0
      %v2029 = vadd.f32 0.0, %v2028
      %v2030 = vpop.f32.mrb[0].mxu0
      %v2031 = vpop.f32.mrb[0].mxu0
      %v2032 = vadd.f32 0.0, %v2031
      %v2033 = vpop.f32.mrb[0].mxu0
      %2034 = vmatprep.mubr.bf16.mxu0 0
      %2035 = vmatmul.mubr.bf16.gmra.mrb[0].mxu0 %v1983
      %v2036 = vpop.f32.mrb[0].mxu0
      %v2037 = vadd.f32 0.0, %v2036
      %v2038 = vpop.f32.mrb[0].mxu0
      %v2039 = vpop.f32.mrb[0].mxu0
      %v2040 = vadd.f32 0.0, %v2039
      %v2041 = vpop.f32.mrb[0].mxu0
      %2042 = vmatprep.mubr.bf16.mxu0 0
      %2043 = vmatmul.mubr.bf16.gmra.mrb[0].mxu0 %v1986
      %v2044 = vpop.f32.mrb[0].mxu0
      %v2045 = vadd.f32 0.0, %v2044
      %v2046 = vpop.f32.mrb[0].mxu0
      %v2047 = vpop.f32.mrb[0].mxu0
      %v2048 = vadd.f32 0.0, %v2047
      %v2049 = vpop.f32.mrb[0].mxu0
      %2050 = vmatprep.mubr.bf16.mxu0 0
      %2051 = vmatmul.mubr.bf16.gmra.mrb[0].mxu0 %v1989
      %v2052 = vpop.f32.mrb[0].mxu0
      %v2053 = vadd.f32 0.0, %v2052
      %v2054 = vpop.f32.mrb[0].mxu0
      %v2055 = vpop.f32.mrb[0].mxu0
      %v2056 = vadd.f32 0.0, %v2055
      %v2057 = vpop.f32.mrb[0].mxu0
      %2058 = vmatprep.mubr.bf16.mxu0 0
      %2059 = vmatmul.mubr.bf16.gmra.mrb[0].mxu0 %v1992
      %v2060 = vpop.f32.mrb[0].mxu0
      %v2061 = vadd.f32 0.0, %v2060
      %v2062 = vpop.f32.mrb[0].mxu0
      %v2063 = vpop.f32.mrb[0].mxu0
      %v2064 = vpop.f32.mrb[0].mxu0
      %2065 = vdwg.mxu0
      %v2066 = vadd.f32 %v1923, %v2029
      %v2067 = vadd.f32 %v1924, %v2032
      %v2068 = vadd.f32 %v1925, %v2037
      %v2069 = vadd.f32 %v1926, %v2040
      %v2070 = vadd.f32 %v1927, %v2045
      %v2071 = vadd.f32 %v1928, %v2048
      %v2072 = vadd.f32 %v1929, %v2053
      %v2073 = vadd.f32 %v1930, %v2056
      %v2074 = vadd.f32 %v1931, %v2061
      %v2075 = vld [vmem:[%s5 + $0x1] ss:$0 sm:$0xff]
      %v2076 = vadd.f32 %v2066, %v2075
      %v2077 = vadd.f32 %v2067, %v2075
      %v2078 = vadd.f32 %v2068, %v2075
      %v2079 = vadd.f32 %v2069, %v2075
      %v2080 = vadd.f32 %v2070, %v2075
      %v2081 = vadd.f32 %v2071, %v2075
      %v2082 = vadd.f32 %v2072, %v2075
      %v2083 = vadd.f32 %v2073, %v2075
      %v2084 = vadd.f32 %v2074, %v2075
      %vm2085 = vcmp.ge.f32.partialorder %v2076, 0.0
      %vm2086 = vcmp.ge.f32.partialorder %v2077, 0.0
      %vm2087 = vcmp.ge.f32.partialorder %v2078, 0.0
      %vm2088 = vcmp.ge.f32.partialorder %v2079, 0.0
      %vm2089 = vcmp.ge.f32.partialorder %v2080, 0.0
      %vm2090 = vcmp.ge.f32.partialorder %v2081, 0.0
      %vm2091 = vcmp.ge.f32.partialorder %v2082, 0.0
      %vm2092 = vcmp.ge.f32.partialorder %v2083, 0.0
      %vm2093 = vcmp.ge.f32.partialorder %v2084, 0.0
      %v2094 = vmul.f32 %v2076, 0.01
      %v2095 = vmul.f32 %v2077, 0.01
      %v2096 = vmul.f32 %v2078, 0.01
      %v2097 = vmul.f32 %v2079, 0.01
      %v2098 = vmul.f32 %v2080, 0.01
      %v2099 = vmul.f32 %v2081, 0.01
      %v2100 = vmul.f32 %v2082, 0.01
      %v2101 = vmul.f32 %v2083, 0.01
      %v2102 = vmul.f32 %v2084, 0.01
      %v2103 = vsel %vm2085, %v2076, %v2094
      %v2104 = vsel %vm2086, %v2077, %v2095
      %v2105 = vsel %vm2087, %v2078, %v2096
      %v2106 = vsel %vm2088, %v2079, %v2097
      %v2107 = vsel %vm2089, %v2080, %v2098
      %v2108 = vsel %vm2090, %v2081, %v2099
      %v2109 = vsel %vm2091, %v2082, %v2100
      %v2110 = vsel %vm2092, %v2083, %v2101
      %v2111 = vsel %vm2093, %v2084, %v2102
      %v2112 = vld [vmem:[%s5 + $0x2] ss:$0 sm:$0xff]
      %v2113 = vmul.f32 %v2103, %v2112
      %v2114 = vmul.f32 %v2104, %v2112
      %v2115 = vmul.f32 %v2105, %v2112
      %v2116 = vmul.f32 %v2106, %v2112
      %v2117 = vmul.f32 %v2107, %v2112
      %v2118 = vmul.f32 %v2108, %v2112
      %v2119 = vmul.f32 %v2109, %v2112
      %v2120 = vmul.f32 %v2110, %v2112
      %v2121 = vmul.f32 %v2111, %v2112
      %v2122 = vld [vmem:[%s5 + $0x3] ss:$0 sm:$0xff]
      %v2123 = vadd.f32 %v2113, %v2122
      %v2124 = vadd.f32 %v2114, %v2122
      %v2125 = vadd.f32 %v2115, %v2122
      %v2126 = vadd.f32 %v2116, %v2122
      %v2127 = vadd.f32 %v2117, %v2122
      %v2128 = vadd.f32 %v2118, %v2122
      %v2129 = vadd.f32 %v2119, %v2122
      %v2130 = vadd.f32 %v2120, %v2122
      %v2131 = vadd.f32 %v2121, %v2122
      %2132 = vst [vmem:[#allocation3] sm:$0xff] %v2123
      %2133 = vst [vmem:[#allocation3 + $0x8] sm:$0xff] %v2124
      %2134 = vst [vmem:[#allocation3 + $0x10] sm:$0xff] %v2125
      %2135 = vst [vmem:[#allocation3 + $0x18] sm:$0xff] %v2126
      %2136 = vst [vmem:[#allocation3 + $0x20] sm:$0xff] %v2127
      %2137 = vst [vmem:[#allocation3 + $0x28] sm:$0xff] %v2128
      %2138 = vst [vmem:[#allocation3 + $0x30] sm:$0xff] %v2129
      %2139 = vst [vmem:[#allocation3 + $0x38] sm:$0xff] %v2130
      %2140 = vst [vmem:[#allocation3 + $0x40] sm:$0xff] %v2131
      %v2141 = vld [vmem:[#allocation3] sm:$0xff]
      %v2142 = vld [vmem:[#allocation3 + $0x8] sm:$0xff]
      %v2143 = vld [vmem:[#allocation3 + $0x10] sm:$0xff]
      %v2144 = vld [vmem:[#allocation3 + $0x18] sm:$0xff]
      %v2145 = vld [vmem:[#allocation3 + $0x20] sm:$0xff]
      %v2146 = vld [vmem:[#allocation3 + $0x28] sm:$0xff]
      %v2147 = vld [vmem:[#allocation3 + $0x30] sm:$0x3f]
      %v2148 = vpack.c.bf16 %v2142, %v2141
      %v2149 = vpack.c.bf16 %v2144, %v2143
      %v2150 = vpack.c.bf16 %v2146, %v2145
      %v2151 = vpack.c.bf16 %v2147, %v2147
      %v2152 = vld [vmem:[%s3] sm:$0xff]
      %v2153 = vld [vmem:[%s3 + $0x8] sm:$0xff]
      %v2154 = vld [vmem:[%s3 + $0x10] sm:$0xff]
      %v2155 = vld [vmem:[%s3 + $0x18] sm:$0xff]
      %v2156 = vld [vmem:[%s3 + $0x20] sm:$0xff]
      %v2157 = vld [vmem:[%s3 + $0x28] sm:$0xff]
      %v2158 = vld [vmem:[%s3 + $0x30] sm:$0xff]
      %v2159 = vld [vmem:[%s3 + $0x38] sm:$0xff]
      %v2160 = vld [vmem:[%s3 + $0x40] sm:$0xff]
      %v2161 = vld [vmem:[%s3 + $0x48] sm:$0xff]
      %v2162 = vld [vmem:[%s3 + $0x50] sm:$0xff]
      %v2163 = vld [vmem:[%s3 + $0x58] sm:$0xff]
      %v2164 = vld [vmem:[%s3 + $0x60] sm:$0xff]
      %v2165 = vld [vmem:[%s3 + $0x68] sm:$0xff]
      %v2166 = vld [vmem:[%s3 + $0x70] sm:$0xff]
      %v2167 = vld [vmem:[%s3 + $0x78] sm:$0xff]
      %v2168 = vld [vmem:[#allocation3 + $0x1] sm:$0xff]
      %v2169 = vld [vmem:[#allocation3 + $0x9] sm:$0xff]
      %v2170 = vld [vmem:[#allocation3 + $0x11] sm:$0xff]
      %v2171 = vld [vmem:[#allocation3 + $0x19] sm:$0xff]
      %v2172 = vld [vmem:[#allocation3 + $0x21] sm:$0xff]
      %v2173 = vld [vmem:[#allocation3 + $0x29] sm:$0xff]
      %v2174 = vld [vmem:[#allocation3 + $0x31] sm:$0x3f]
      %v2175 = vpack.c.bf16 %v2169, %v2168
      %v2176 = vpack.c.bf16 %v2171, %v2170
      %v2177 = vpack.c.bf16 %v2173, %v2172
      %v2178 = vpack.c.bf16 %v2174, %v2174
      %s2179 = scalar_lea.vmem %s3, 128
      %v2180 = vld [vmem:[%s2179] sm:$0xff]
      %v2181 = vld [vmem:[%s2179 + $0x8] sm:$0xff]
      %v2182 = vld [vmem:[%s2179 + $0x10] sm:$0xff]
      %v2183 = vld [vmem:[%s2179 + $0x18] sm:$0xff]
      %v2184 = vld [vmem:[%s2179 + $0x20] sm:$0xff]
      %v2185 = vld [vmem:[%s2179 + $0x28] sm:$0xff]
      %v2186 = vld [vmem:[%s2179 + $0x30] sm:$0xff]
      %v2187 = vld [vmem:[%s2179 + $0x38] sm:$0xff]
      %v2188 = vld [vmem:[%s2179 + $0x40] sm:$0xff]
      %v2189 = vld [vmem:[%s2179 + $0x48] sm:$0xff]
      %v2190 = vld [vmem:[%s2179 + $0x50] sm:$0xff]
      %v2191 = vld [vmem:[%s2179 + $0x58] sm:$0xff]
      %v2192 = vld [vmem:[%s2179 + $0x60] sm:$0xff]
      %v2193 = vld [vmem:[%s2179 + $0x68] sm:$0xff]
      %v2194 = vld [vmem:[%s2179 + $0x70] sm:$0xff]
      %v2195 = vld [vmem:[%s2179 + $0x78] sm:$0xff]
      %v2212 = vunpack.c.l.b16 %v2180
      %v2213 = vunpack.c.h.b16 %v2180
      %v2214 = vunpack.c.l.b16 %v2181
      %v2215 = vunpack.c.h.b16 %v2181
      %v2216 = vunpack.c.l.b16 %v2182
      %v2217 = vunpack.c.h.b16 %v2182
      %v2218 = vunpack.c.l.b16 %v2183
      %v2219 = vunpack.c.h.b16 %v2183
      %v2220 = vunpack.c.l.b16 %v2184
      %v2221 = vunpack.c.h.b16 %v2184
      %v2222 = vunpack.c.l.b16 %v2185
      %v2223 = vunpack.c.h.b16 %v2185
      %v2224 = vunpack.c.l.b16 %v2186
      %v2225 = vunpack.c.h.b16 %v2186
      %v2226 = vunpack.c.l.b16 %v2187
      %v2227 = vunpack.c.h.b16 %v2187
      %v2228 = vunpack.c.l.b16 %v2188
      %v2229 = vunpack.c.h.b16 %v2188
      %v2230 = vunpack.c.l.b16 %v2189
      %v2231 = vunpack.c.h.b16 %v2189
      %v2232 = vunpack.c.l.b16 %v2190
      %v2233 = vunpack.c.h.b16 %v2190
      %v2234 = vunpack.c.l.b16 %v2191
      %v2235 = vunpack.c.h.b16 %v2191
      %v2236 = vunpack.c.l.b16 %v2192
      %v2237 = vunpack.c.h.b16 %v2192
      %v2238 = vunpack.c.l.b16 %v2193
      %v2239 = vunpack.c.h.b16 %v2193
      %v2240 = vunpack.c.l.b16 %v2194
      %v2241 = vunpack.c.h.b16 %v2194
      %v2242 = vunpack.c.l.b16 %v2195
      %v2243 = vunpack.c.h.b16 %v2195
      %v2244 = vpack.c.b16 %v2214, %v2212
      %v2245 = vpack.c.b16 %v2215, %v2213
      %v2246 = vpack.c.b16 %v2218, %v2216
      %v2247 = vpack.c.b16 %v2219, %v2217
      %v2248 = vpack.c.b16 %v2222, %v2220
      %v2249 = vpack.c.b16 %v2223, %v2221
      %v2250 = vpack.c.b16 %v2226, %v2224
      %v2251 = vpack.c.b16 %v2227, %v2225
      %v2252 = vpack.c.b16 %v2230, %v2228
      %v2253 = vpack.c.b16 %v2231, %v2229
      %v2254 = vpack.c.b16 %v2234, %v2232
      %v2255 = vpack.c.b16 %v2235, %v2233
      %v2256 = vpack.c.b16 %v2238, %v2236
      %v2257 = vpack.c.b16 %v2239, %v2237
      %v2258 = vpack.c.b16 %v2242, %v2240
      %v2259 = vpack.c.b16 %v2243, %v2241
      %2276 = vmatprep.subr.bf16.mxu0 %v2245
      %2277 = vmatpush1.bf16.msra.mxu0 %v2244
      %2278 = vmatprep.subr.bf16.mxu0 %v2247
      %2279 = vmatpush1.bf16.msra.mxu0 %v2246
      %2280 = vmatprep.subr.bf16.mxu0 %v2249
      %2281 = vmatpush1.bf16.msra.mxu0 %v2248
      %2282 = vmatprep.subr.bf16.mxu0 %v2251
      %2283 = vmatpush1.bf16.msra.mxu0 %v2250
      %2284 = vmatprep.subr.bf16.mxu0 %v2253
      %2285 = vmatpush1.bf16.msra.mxu0 %v2252
      %2286 = vmatprep.subr.bf16.mxu0 %v2255
      %2287 = vmatpush1.bf16.msra.mxu0 %v2254
      %2288 = vmatprep.subr.bf16.mxu0 %v2257
      %2289 = vmatpush1.bf16.msra.mxu0 %v2256
      %2290 = vmatprep.subr.bf16.mxu0 %v2259
      %2291 = vmatpush1.bf16.msra.mxu0 %v2258
      %2292 = vmatprep.subr.bf16.mxu0 0
      %2293 = vmatpush1.bf16.msra.mxu0 0
      %2294 = vmatprep.subr.bf16.mxu0 0
      %2295 = vmatpush1.bf16.msra.mxu0 0
      %2296 = vmatprep.subr.bf16.mxu0 0
      %2297 = vmatpush1.bf16.msra.mxu0 0
      %2298 = vmatprep.subr.bf16.mxu0 0
      %2299 = vmatpush1.bf16.msra.mxu0 0
      %2300 = vmatprep.subr.bf16.mxu0 0
      %2301 = vmatpush1.bf16.msra.mxu0 0
      %2302 = vmatprep.subr.bf16.mxu0 0
      %2303 = vmatpush1.bf16.msra.mxu0 0
      %2304 = vmatprep.subr.bf16.mxu0 0
      %2305 = vmatpush1.bf16.msra.mxu0 0
      %2306 = vmatprep.subr.bf16.mxu0 0
      %2307 = vmatpush1.bf16.msra.mxu0 0
      %2308 = vmatprep.mubr.bf16.mxu0 0
      %2309 = vmatmul.mubr.bf16.gmra.mrb[0].mxu0 %v2175
      %v2310 = vpop.f32.mrb[0].mxu0
      %v2311 = vadd.f32 0.0, %v2310
      %v2312 = vpop.f32.mrb[0].mxu0
      %v2313 = vadd.f32 0.0, %v2312
      %v2314 = vpop.f32.mrb[0].mxu0
      %v2315 = vadd.f32 0.0, %v2314
      %v2316 = vpop.f32.mrb[0].mxu0
      %v2317 = vadd.f32 0.0, %v2316
      %2318 = vmatprep.mubr.bf16.mxu0 0
      %2319 = vmatmul.mubr.bf16.gmra.mrb[0].mxu0 %v2176
      %v2320 = vpop.f32.mrb[0].mxu0
      %v2321 = vadd.f32 0.0, %v2320
      %v2322 = vpop.f32.mrb[0].mxu0
      %v2323 = vadd.f32 0.0, %v2322
      %v2324 = vpop.f32.mrb[0].mxu0
      %v2325 = vadd.f32 0.0, %v2324
      %v2326 = vpop.f32.mrb[0].mxu0
      %v2327 = vadd.f32 0.0, %v2326
      %2328 = vmatprep.mubr.bf16.mxu0 0
      %2329 = vmatmul.mubr.bf16.gmra.mrb[0].mxu0 %v2177
      %v2330 = vpop.f32.mrb[0].mxu0
      %v2331 = vadd.f32 0.0, %v2330
      %v2332 = vpop.f32.mrb[0].mxu0
      %v2333 = vadd.f32 0.0, %v2332
      %v2334 = vpop.f32.mrb[0].mxu0
      %v2335 = vadd.f32 0.0, %v2334
      %v2336 = vpop.f32.mrb[0].mxu0
      %v2337 = vadd.f32 0.0, %v2336
      %2338 = vmatprep.mubr.bf16.mxu0 0
      %2339 = vmatmul.mubr.bf16.gmra.mrb[0].mxu0 %v2178
      %v2340 = vpop.f32.mrb[0].mxu0
      %v2341 = vadd.f32 0.0, %v2340
      %v2342 = vpop.f32.mrb[0].mxu0
      %v2343 = vadd.f32 0.0, %v2342
      %v2344 = vpop.f32.mrb[0].mxu0
      %v2345 = vpop.f32.mrb[0].mxu0
      %2346 = vdwg.mxu0
      %v2363 = vunpack.c.l.b16 %v2152
      %v2364 = vunpack.c.h.b16 %v2152
      %v2365 = vunpack.c.l.b16 %v2153
      %v2366 = vunpack.c.h.b16 %v2153
      %v2367 = vunpack.c.l.b16 %v2154
      %v2368 = vunpack.c.h.b16 %v2154
      %v2369 = vunpack.c.l.b16 %v2155
      %v2370 = vunpack.c.h.b16 %v2155
      %v2371 = vunpack.c.l.b16 %v2156
      %v2372 = vunpack.c.h.b16 %v2156
      %v2373 = vunpack.c.l.b16 %v2157
      %v2374 = vunpack.c.h.b16 %v2157
      %v2375 = vunpack.c.l.b16 %v2158
      %v2376 = vunpack.c.h.b16 %v2158
      %v2377 = vunpack.c.l.b16 %v2159
      %v2378 = vunpack.c.h.b16 %v2159
      %v2379 = vunpack.c.l.b16 %v2160
      %v2380 = vunpack.c.h.b16 %v2160
      %v2381 = vunpack.c.l.b16 %v2161
      %v2382 = vunpack.c.h.b16 %v2161
      %v2383 = vunpack.c.l.b16 %v2162
      %v2384 = vunpack.c.h.b16 %v2162
      %v2385 = vunpack.c.l.b16 %v2163
      %v2386 = vunpack.c.h.b16 %v2163
      %v2387 = vunpack.c.l.b16 %v2164
      %v2388 = vunpack.c.h.b16 %v2164
      %v2389 = vunpack.c.l.b16 %v2165
      %v2390 = vunpack.c.h.b16 %v2165
      %v2391 = vunpack.c.l.b16 %v2166
      %v2392 = vunpack.c.h.b16 %v2166
      %v2393 = vunpack.c.l.b16 %v2167
      %v2394 = vunpack.c.h.b16 %v2167
      %v2395 = vpack.c.b16 %v2365, %v2363
      %v2396 = vpack.c.b16 %v2366, %v2364
      %v2397 = vpack.c.b16 %v2369, %v2367
      %v2398 = vpack.c.b16 %v2370, %v2368
      %v2399 = vpack.c.b16 %v2373, %v2371
      %v2400 = vpack.c.b16 %v2374, %v2372
      %v2401 = vpack.c.b16 %v2377, %v2375
      %v2402 = vpack.c.b16 %v2378, %v2376
      %v2403 = vpack.c.b16 %v2381, %v2379
      %v2404 = vpack.c.b16 %v2382, %v2380
      %v2405 = vpack.c.b16 %v2385, %v2383
      %v2406 = vpack.c.b16 %v2386, %v2384
      %v2407 = vpack.c.b16 %v2389, %v2387
      %v2408 = vpack.c.b16 %v2390, %v2388
      %v2409 = vpack.c.b16 %v2393, %v2391
      %v2410 = vpack.c.b16 %v2394, %v2392
      %2427 = vmatprep.subr.bf16.mxu0 %v2396
      %2428 = vmatpush1.bf16.msra.mxu0 %v2395
      %2429 = vmatprep.subr.bf16.mxu0 %v2398
      %2430 = vmatpush1.bf16.msra.mxu0 %v2397
      %2431 = vmatprep.subr.bf16.mxu0 %v2400
      %2432 = vmatpush1.bf16.msra.mxu0 %v2399
      %2433 = vmatprep.subr.bf16.mxu0 %v2402
      %2434 = vmatpush1.bf16.msra.mxu0 %v2401
      %2435 = vmatprep.subr.bf16.mxu0 %v2404
      %2436 = vmatpush1.bf16.msra.mxu0 %v2403
      %2437 = vmatprep.subr.bf16.mxu0 %v2406
      %2438 = vmatpush1.bf16.msra.mxu0 %v2405
      %2439 = vmatprep.subr.bf16.mxu0 %v2408
      %2440 = vmatpush1.bf16.msra.mxu0 %v2407
      %2441 = vmatprep.subr.bf16.mxu0 %v2410
      %2442 = vmatpush1.bf16.msra.mxu0 %v2409
      %2443 = vmatprep.subr.bf16.mxu0 0
      %2444 = vmatpush1.bf16.msra.mxu0 0
      %2445 = vmatprep.subr.bf16.mxu0 0
      %2446 = vmatpush1.bf16.msra.mxu0 0
      %2447 = vmatprep.subr.bf16.mxu0 0
      %2448 = vmatpush1.bf16.msra.mxu0 0
      %2449 = vmatprep.subr.bf16.mxu0 0
      %2450 = vmatpush1.bf16.msra.mxu0 0
      %2451 = vmatprep.subr.bf16.mxu0 0
      %2452 = vmatpush1.bf16.msra.mxu0 0
      %2453 = vmatprep.subr.bf16.mxu0 0
      %2454 = vmatpush1.bf16.msra.mxu0 0
      %2455 = vmatprep.subr.bf16.mxu0 0
      %2456 = vmatpush1.bf16.msra.mxu0 0
      %2457 = vmatprep.subr.bf16.mxu0 0
      %2458 = vmatpush1.bf16.msra.mxu0 0
      %2459 = vmatprep.mubr.bf16.mxu0 0
      %2460 = vmatmul.mubr.bf16.gmra.mrb[0].mxu0 %v2148
      %v2461 = vpop.f32.mrb[0].mxu0
      %v2462 = vadd.f32 %v2311, %v2461
      %v2463 = vpop.f32.mrb[0].mxu0
      %v2464 = vadd.f32 %v2313, %v2463
      %v2465 = vpop.f32.mrb[0].mxu0
      %v2466 = vadd.f32 %v2315, %v2465
      %v2467 = vpop.f32.mrb[0].mxu0
      %v2468 = vadd.f32 %v2317, %v2467
      %2469 = vmatprep.mubr.bf16.mxu0 0
      %2470 = vmatmul.mubr.bf16.gmra.mrb[0].mxu0 %v2149
      %v2471 = vpop.f32.mrb[0].mxu0
      %v2472 = vadd.f32 %v2321, %v2471
      %v2473 = vpop.f32.mrb[0].mxu0
      %v2474 = vadd.f32 %v2323, %v2473
      %v2475 = vpop.f32.mrb[0].mxu0
      %v2476 = vadd.f32 %v2325, %v2475
      %v2477 = vpop.f32.mrb[0].mxu0
      %v2478 = vadd.f32 %v2327, %v2477
      %2479 = vmatprep.mubr.bf16.mxu0 0
      %2480 = vmatmul.mubr.bf16.gmra.mrb[0].mxu0 %v2150
      %v2481 = vpop.f32.mrb[0].mxu0
      %v2482 = vadd.f32 %v2331, %v2481
      %v2483 = vpop.f32.mrb[0].mxu0
      %v2484 = vadd.f32 %v2333, %v2483
      %v2485 = vpop.f32.mrb[0].mxu0
      %v2486 = vadd.f32 %v2335, %v2485
      %v2487 = vpop.f32.mrb[0].mxu0
      %v2488 = vadd.f32 %v2337, %v2487
      %2489 = vmatprep.mubr.bf16.mxu0 0
      %2490 = vmatmul.mubr.bf16.gmra.mrb[0].mxu0 %v2151
      %v2491 = vpop.f32.mrb[0].mxu0
      %v2492 = vadd.f32 %v2341, %v2491
      %v2493 = vpop.f32.mrb[0].mxu0
      %v2494 = vadd.f32 %v2343, %v2493
      %v2495 = vpop.f32.mrb[0].mxu0
      %v2496 = vpop.f32.mrb[0].mxu0
      %2497 = vdwg.mxu0
      %v2498 = vld [vmem:[#allocation3 + $0x2] sm:$0xff]
      %v2499 = vld [vmem:[#allocation3 + $0xa] sm:$0xff]
      %v2500 = vld [vmem:[#allocation3 + $0x12] sm:$0xff]
      %v2501 = vld [vmem:[#allocation3 + $0x1a] sm:$0xff]
      %v2502 = vld [vmem:[#allocation3 + $0x22] sm:$0xff]
      %v2503 = vld [vmem:[#allocation3 + $0x2a] sm:$0xff]
      %v2504 = vld [vmem:[#allocation3 + $0x32] sm:$0x3f]
      %v2505 = vpack.c.bf16 %v2499, %v2498
      %v2506 = vpack.c.bf16 %v2501, %v2500
      %v2507 = vpack.c.bf16 %v2503, %v2502
      %v2508 = vpack.c.bf16 %v2504, %v2504
      %s2509 = scalar_lea.vmem %s3, 256
      %v2510 = vld [vmem:[%s2509] sm:$0xff]
      %v2511 = vld [vmem:[%s2509 + $0x8] sm:$0xff]
      %v2512 = vld [vmem:[%s2509 + $0x10] sm:$0xff]
      %v2513 = vld [vmem:[%s2509 + $0x18] sm:$0xff]
      %v2514 = vld [vmem:[%s2509 + $0x20] sm:$0xff]
      %v2515 = vld [vmem:[%s2509 + $0x28] sm:$0xff]
      %v2516 = vld [vmem:[%s2509 + $0x30] sm:$0xff]
      %v2517 = vld [vmem:[%s2509 + $0x38] sm:$0xff]
      %v2518 = vld [vmem:[%s2509 + $0x40] sm:$0xff]
      %v2519 = vld [vmem:[%s2509 + $0x48] sm:$0xff]
      %v2520 = vld [vmem:[%s2509 + $0x50] sm:$0xff]
      %v2521 = vld [vmem:[%s2509 + $0x58] sm:$0xff]
      %v2522 = vld [vmem:[%s2509 + $0x60] sm:$0xff]
      %v2523 = vld [vmem:[%s2509 + $0x68] sm:$0xff]
      %v2524 = vld [vmem:[%s2509 + $0x70] sm:$0xff]
      %v2525 = vld [vmem:[%s2509 + $0x78] sm:$0xff]
      %v2542 = vunpack.c.l.b16 %v2510
      %v2543 = vunpack.c.h.b16 %v2510
      %v2544 = vunpack.c.l.b16 %v2511
      %v2545 = vunpack.c.h.b16 %v2511
      %v2546 = vunpack.c.l.b16 %v2512
      %v2547 = vunpack.c.h.b16 %v2512
      %v2548 = vunpack.c.l.b16 %v2513
      %v2549 = vunpack.c.h.b16 %v2513
      %v2550 = vunpack.c.l.b16 %v2514
      %v2551 = vunpack.c.h.b16 %v2514
      %v2552 = vunpack.c.l.b16 %v2515
      %v2553 = vunpack.c.h.b16 %v2515
      %v2554 = vunpack.c.l.b16 %v2516
      %v2555 = vunpack.c.h.b16 %v2516
      %v2556 = vunpack.c.l.b16 %v2517
      %v2557 = vunpack.c.h.b16 %v2517
      %v2558 = vunpack.c.l.b16 %v2518
      %v2559 = vunpack.c.h.b16 %v2518
      %v2560 = vunpack.c.l.b16 %v2519
      %v2561 = vunpack.c.h.b16 %v2519
      %v2562 = vunpack.c.l.b16 %v2520
      %v2563 = vunpack.c.h.b16 %v2520
      %v2564 = vunpack.c.l.b16 %v2521
      %v2565 = vunpack.c.h.b16 %v2521
      %v2566 = vunpack.c.l.b16 %v2522
      %v2567 = vunpack.c.h.b16 %v2522
      %v2568 = vunpack.c.l.b16 %v2523
      %v2569 = vunpack.c.h.b16 %v2523
      %v2570 = vunpack.c.l.b16 %v2524
      %v2571 = vunpack.c.h.b16 %v2524
      %v2572 = vunpack.c.l.b16 %v2525
      %v2573 = vunpack.c.h.b16 %v2525
      %v2574 = vpack.c.b16 %v2544, %v2542
      %v2575 = vpack.c.b16 %v2545, %v2543
      %v2576 = vpack.c.b16 %v2548, %v2546
      %v2577 = vpack.c.b16 %v2549, %v2547
      %v2578 = vpack.c.b16 %v2552, %v2550
      %v2579 = vpack.c.b16 %v2553, %v2551
      %v2580 = vpack.c.b16 %v2556, %v2554
      %v2581 = vpack.c.b16 %v2557, %v2555
      %v2582 = vpack.c.b16 %v2560, %v2558
      %v2583 = vpack.c.b16 %v2561, %v2559
      %v2584 = vpack.c.b16 %v2564, %v2562
      %v2585 = vpack.c.b16 %v2565, %v2563
      %v2586 = vpack.c.b16 %v2568, %v2566
      %v2587 = vpack.c.b16 %v2569, %v2567
      %v2588 = vpack.c.b16 %v2572, %v2570
      %v2589 = vpack.c.b16 %v2573, %v2571
      %2606 = vmatprep.subr.bf16.mxu0 %v2575
      %2607 = vmatpush1.bf16.msra.mxu0 %v2574
      %2608 = vmatprep.subr.bf16.mxu0 %v2577
      %2609 = vmatpush1.bf16.msra.mxu0 %v2576
      %2610 = vmatprep.subr.bf16.mxu0 %v2579
      %2611 = vmatpush1.bf16.msra.mxu0 %v2578
      %2612 = vmatprep.subr.bf16.mxu0 %v2581
      %2613 = vmatpush1.bf16.msra.mxu0 %v2580
      %2614 = vmatprep.subr.bf16.mxu0 %v2583
      %2615 = vmatpush1.bf16.msra.mxu0 %v2582
      %2616 = vmatprep.subr.bf16.mxu0 %v2585
      %2617 = vmatpush1.bf16.msra.mxu0 %v2584
      %2618 = vmatprep.subr.bf16.mxu0 %v2587
      %2619 = vmatpush1.bf16.msra.mxu0 %v2586
      %2620 = vmatprep.subr.bf16.mxu0 %v2589
      %2621 = vmatpush1.bf16.msra.mxu0 %v2588
      %2622 = vmatprep.subr.bf16.mxu0 0
      %2623 = vmatpush1.bf16.msra.mxu0 0
      %2624 = vmatprep.subr.bf16.mxu0 0
      %2625 = vmatpush1.bf16.msra.mxu0 0
      %2626 = vmatprep.subr.bf16.mxu0 0
      %2627 = vmatpush1.bf16.msra.mxu0 0
      %2628 = vmatprep.subr.bf16.mxu0 0
      %2629 = vmatpush1.bf16.msra.mxu0 0
      %2630 = vmatprep.subr.bf16.mxu0 0
      %2631 = vmatpush1.bf16.msra.mxu0 0
      %2632 = vmatprep.subr.bf16.mxu0 0
      %2633 = vmatpush1.bf16.msra.mxu0 0
      %2634 = vmatprep.subr.bf16.mxu0 0
      %2635 = vmatpush1.bf16.msra.mxu0 0
      %2636 = vmatprep.subr.bf16.mxu0 0
      %2637 = vmatpush1.bf16.msra.mxu0 0
      %2638 = vmatprep.mubr.bf16.mxu0 0
      %2639 = vmatmul.mubr.bf16.gmra.mrb[0].mxu0 %v2505
      %v2640 = vpop.f32.mrb[0].mxu0
      %v2641 = vadd.f32 0.0, %v2640
      %v2642 = vpop.f32.mrb[0].mxu0
      %v2643 = vadd.f32 0.0, %v2642
      %v2644 = vpop.f32.mrb[0].mxu0
      %v2645 = vadd.f32 0.0, %v2644
      %v2646 = vpop.f32.mrb[0].mxu0
      %v2647 = vadd.f32 0.0, %v2646
      %2648 = vmatprep.mubr.bf16.mxu0 0
      %2649 = vmatmul.mubr.bf16.gmra.mrb[0].mxu0 %v2506
      %v2650 = vpop.f32.mrb[0].mxu0
      %v2651 = vadd.f32 0.0, %v2650
      %v2652 = vpop.f32.mrb[0].mxu0
      %v2653 = vadd.f32 0.0, %v2652
      %v2654 = vpop.f32.mrb[0].mxu0
      %v2655 = vadd.f32 0.0, %v2654
      %v2656 = vpop.f32.mrb[0].mxu0
      %v2657 = vadd.f32 0.0, %v2656
      %2658 = vmatprep.mubr.bf16.mxu0 0
      %2659 = vmatmul.mubr.bf16.gmra.mrb[0].mxu0 %v2507
      %v2660 = vpop.f32.mrb[0].mxu0
      %v2661 = vadd.f32 0.0, %v2660
      %v2662 = vpop.f32.mrb[0].mxu0
      %v2663 = vadd.f32 0.0, %v2662
      %v2664 = vpop.f32.mrb[0].mxu0
      %v2665 = vadd.f32 0.0, %v2664
      %v2666 = vpop.f32.mrb[0].mxu0
      %v2667 = vadd.f32 0.0, %v2666
      %2668 = vmatprep.mubr.bf16.mxu0 0
      %2669 = vmatmul.mubr.bf16.gmra.mrb[0].mxu0 %v2508
      %v2670 = vpop.f32.mrb[0].mxu0
      %v2671 = vadd.f32 0.0, %v2670
      %v2672 = vpop.f32.mrb[0].mxu0
      %v2673 = vadd.f32 0.0, %v2672
      %v2674 = vpop.f32.mrb[0].mxu0
      %v2675 = vpop.f32.mrb[0].mxu0
      %2676 = vdwg.mxu0
      %v2677 = vadd.f32 %v2462, %v2641
      %v2678 = vadd.f32 %v2464, %v2643
      %v2679 = vadd.f32 %v2466, %v2645
      %v2680 = vadd.f32 %v2468, %v2647
      %v2681 = vadd.f32 %v2472, %v2651
      %v2682 = vadd.f32 %v2474, %v2653
      %v2683 = vadd.f32 %v2476, %v2655
      %v2684 = vadd.f32 %v2478, %v2657
      %v2685 = vadd.f32 %v2482, %v2661
      %v2686 = vadd.f32 %v2484, %v2663
      %v2687 = vadd.f32 %v2486, %v2665
      %v2688 = vadd.f32 %v2488, %v2667
      %v2689 = vadd.f32 %v2492, %v2671
      %v2690 = vadd.f32 %v2494, %v2673
      %v2691 = vld [vmem:[#allocation3 + $0x9] sm:$0xff]
      %v2692 = vld [vmem:[#allocation3 + $0x11] sm:$0xff]
      %v2693 = vld [vmem:[#allocation3 + $0x19] sm:$0xff]
      %v2694 = vld [vmem:[#allocation3 + $0x21] sm:$0xff]
      %v2695 = vld [vmem:[#allocation3 + $0x29] sm:$0xff]
      %v2696 = vld [vmem:[#allocation3 + $0x31] sm:$0xff]
      %v2697 = vld [vmem:[#allocation3 + $0x39] sm:$0x3f]
      %v2698 = vpack.c.bf16 %v2692, %v2691
      %v2699 = vpack.c.bf16 %v2694, %v2693
      %v2700 = vpack.c.bf16 %v2696, %v2695
      %v2701 = vpack.c.bf16 %v2697, %v2697
      %s2702 = scalar_lea.vmem %s3, 384
      %v2703 = vld [vmem:[%s2702] sm:$0xff]
      %v2704 = vld [vmem:[%s2702 + $0x8] sm:$0xff]
      %v2705 = vld [vmem:[%s2702 + $0x10] sm:$0xff]
      %v2706 = vld [vmem:[%s2702 + $0x18] sm:$0xff]
      %v2707 = vld [vmem:[%s2702 + $0x20] sm:$0xff]
      %v2708 = vld [vmem:[%s2702 + $0x28] sm:$0xff]
      %v2709 = vld [vmem:[%s2702 + $0x30] sm:$0xff]
      %v2710 = vld [vmem:[%s2702 + $0x38] sm:$0xff]
      %v2711 = vld [vmem:[%s2702 + $0x40] sm:$0xff]
      %v2712 = vld [vmem:[%s2702 + $0x48] sm:$0xff]
      %v2713 = vld [vmem:[%s2702 + $0x50] sm:$0xff]
      %v2714 = vld [vmem:[%s2702 + $0x58] sm:$0xff]
      %v2715 = vld [vmem:[%s2702 + $0x60] sm:$0xff]
      %v2716 = vld [vmem:[%s2702 + $0x68] sm:$0xff]
      %v2717 = vld [vmem:[%s2702 + $0x70] sm:$0xff]
      %v2718 = vld [vmem:[%s2702 + $0x78] sm:$0xff]
      %v2735 = vunpack.c.l.b16 %v2703
      %v2736 = vunpack.c.h.b16 %v2703
      %v2737 = vunpack.c.l.b16 %v2704
      %v2738 = vunpack.c.h.b16 %v2704
      %v2739 = vunpack.c.l.b16 %v2705
      %v2740 = vunpack.c.h.b16 %v2705
      %v2741 = vunpack.c.l.b16 %v2706
      %v2742 = vunpack.c.h.b16 %v2706
      %v2743 = vunpack.c.l.b16 %v2707
      %v2744 = vunpack.c.h.b16 %v2707
      %v2745 = vunpack.c.l.b16 %v2708
      %v2746 = vunpack.c.h.b16 %v2708
      %v2747 = vunpack.c.l.b16 %v2709
      %v2748 = vunpack.c.h.b16 %v2709
      %v2749 = vunpack.c.l.b16 %v2710
      %v2750 = vunpack.c.h.b16 %v2710
      %v2751 = vunpack.c.l.b16 %v2711
      %v2752 = vunpack.c.h.b16 %v2711
      %v2753 = vunpack.c.l.b16 %v2712
      %v2754 = vunpack.c.h.b16 %v2712
      %v2755 = vunpack.c.l.b16 %v2713
      %v2756 = vunpack.c.h.b16 %v2713
      %v2757 = vunpack.c.l.b16 %v2714
      %v2758 = vunpack.c.h.b16 %v2714
      %v2759 = vunpack.c.l.b16 %v2715
      %v2760 = vunpack.c.h.b16 %v2715
      %v2761 = vunpack.c.l.b16 %v2716
      %v2762 = vunpack.c.h.b16 %v2716
      %v2763 = vunpack.c.l.b16 %v2717
      %v2764 = vunpack.c.h.b16 %v2717
      %v2765 = vunpack.c.l.b16 %v2718
      %v2766 = vunpack.c.h.b16 %v2718
      %v2767 = vpack.c.b16 %v2737, %v2735
      %v2768 = vpack.c.b16 %v2738, %v2736
      %v2769 = vpack.c.b16 %v2741, %v2739
      %v2770 = vpack.c.b16 %v2742, %v2740
      %v2771 = vpack.c.b16 %v2745, %v2743
      %v2772 = vpack.c.b16 %v2746, %v2744
      %v2773 = vpack.c.b16 %v2749, %v2747
      %v2774 = vpack.c.b16 %v2750, %v2748
      %v2775 = vpack.c.b16 %v2753, %v2751
      %v2776 = vpack.c.b16 %v2754, %v2752
      %v2777 = vpack.c.b16 %v2757, %v2755
      %v2778 = vpack.c.b16 %v2758, %v2756
      %v2779 = vpack.c.b16 %v2761, %v2759
      %v2780 = vpack.c.b16 %v2762, %v2760
      %v2781 = vpack.c.b16 %v2765, %v2763
      %v2782 = vpack.c.b16 %v2766, %v2764
      %2799 = vmatprep.subr.bf16.mxu0 %v2768
      %2800 = vmatpush1.bf16.msra.mxu0 %v2767
      %2801 = vmatprep.subr.bf16.mxu0 %v2770
      %2802 = vmatpush1.bf16.msra.mxu0 %v2769
      %2803 = vmatprep.subr.bf16.mxu0 %v2772
      %2804 = vmatpush1.bf16.msra.mxu0 %v2771
      %2805 = vmatprep.subr.bf16.mxu0 %v2774
      %2806 = vmatpush1.bf16.msra.mxu0 %v2773
      %2807 = vmatprep.subr.bf16.mxu0 %v2776
      %2808 = vmatpush1.bf16.msra.mxu0 %v2775
      %2809 = vmatprep.subr.bf16.mxu0 %v2778
      %2810 = vmatpush1.bf16.msra.mxu0 %v2777
      %2811 = vmatprep.subr.bf16.mxu0 %v2780
      %2812 = vmatpush1.bf16.msra.mxu0 %v2779
      %2813 = vmatprep.subr.bf16.mxu0 %v2782
      %2814 = vmatpush1.bf16.msra.mxu0 %v2781
      %2815 = vmatprep.subr.bf16.mxu0 0
      %2816 = vmatpush1.bf16.msra.mxu0 0
      %2817 = vmatprep.subr.bf16.mxu0 0
      %2818 = vmatpush1.bf16.msra.mxu0 0
      %2819 = vmatprep.subr.bf16.mxu0 0
      %2820 = vmatpush1.bf16.msra.mxu0 0
      %2821 = vmatprep.subr.bf16.mxu0 0
      %2822 = vmatpush1.bf16.msra.mxu0 0
      %2823 = vmatprep.subr.bf16.mxu0 0
      %2824 = vmatpush1.bf16.msra.mxu0 0
      %2825 = vmatprep.subr.bf16.mxu0 0
      %2826 = vmatpush1.bf16.msra.mxu0 0
      %2827 = vmatprep.subr.bf16.mxu0 0
      %2828 = vmatpush1.bf16.msra.mxu0 0
      %2829 = vmatprep.subr.bf16.mxu0 0
      %2830 = vmatpush1.bf16.msra.mxu0 0
      %2831 = vmatprep.mubr.bf16.mxu0 0
      %2832 = vmatmul.mubr.bf16.gmra.mrb[0].mxu0 %v2698
      %v2833 = vpop.f32.mrb[0].mxu0
      %v2834 = vadd.f32 0.0, %v2833
      %v2835 = vpop.f32.mrb[0].mxu0
      %v2836 = vadd.f32 0.0, %v2835
      %v2837 = vpop.f32.mrb[0].mxu0
      %v2838 = vadd.f32 0.0, %v2837
      %v2839 = vpop.f32.mrb[0].mxu0
      %v2840 = vadd.f32 0.0, %v2839
      %2841 = vmatprep.mubr.bf16.mxu0 0
      %2842 = vmatmul.mubr.bf16.gmra.mrb[0].mxu0 %v2699
      %v2843 = vpop.f32.mrb[0].mxu0
      %v2844 = vadd.f32 0.0, %v2843
      %v2845 = vpop.f32.mrb[0].mxu0
      %v2846 = vadd.f32 0.0, %v2845
      %v2847 = vpop.f32.mrb[0].mxu0
      %v2848 = vadd.f32 0.0, %v2847
      %v2849 = vpop.f32.mrb[0].mxu0
      %v2850 = vadd.f32 0.0, %v2849
      %2851 = vmatprep.mubr.bf16.mxu0 0
      %2852 = vmatmul.mubr.bf16.gmra.mrb[0].mxu0 %v2700
      %v2853 = vpop.f32.mrb[0].mxu0
      %v2854 = vadd.f32 0.0, %v2853
      %v2855 = vpop.f32.mrb[0].mxu0
      %v2856 = vadd.f32 0.0, %v2855
      %v2857 = vpop.f32.mrb[0].mxu0
      %v2858 = vadd.f32 0.0, %v2857
      %v2859 = vpop.f32.mrb[0].mxu0
      %v2860 = vadd.f32 0.0, %v2859
      %2861 = vmatprep.mubr.bf16.mxu0 0
      %2862 = vmatmul.mubr.bf16.gmra.mrb[0].mxu0 %v2701
      %v2863 = vpop.f32.mrb[0].mxu0
      %v2864 = vadd.f32 0.0, %v2863
      %v2865 = vpop.f32.mrb[0].mxu0
      %v2866 = vadd.f32 0.0, %v2865
      %v2867 = vpop.f32.mrb[0].mxu0
      %v2868 = vpop.f32.mrb[0].mxu0
      %2869 = vdwg.mxu0
      %v2870 = vadd.f32 %v2677, %v2834
      %v2871 = vadd.f32 %v2678, %v2836
      %v2872 = vadd.f32 %v2679, %v2838
      %v2873 = vadd.f32 %v2680, %v2840
      %v2874 = vadd.f32 %v2681, %v2844
      %v2875 = vadd.f32 %v2682, %v2846
      %v2876 = vadd.f32 %v2683, %v2848
      %v2877 = vadd.f32 %v2684, %v2850
      %v2878 = vadd.f32 %v2685, %v2854
      %v2879 = vadd.f32 %v2686, %v2856
      %v2880 = vadd.f32 %v2687, %v2858
      %v2881 = vadd.f32 %v2688, %v2860
      %v2882 = vadd.f32 %v2689, %v2864
      %v2883 = vadd.f32 %v2690, %v2866
      %v2884 = vld [vmem:[#allocation3 + $0xa] sm:$0xff]
      %v2885 = vld [vmem:[#allocation3 + $0x12] sm:$0xff]
      %v2886 = vld [vmem:[#allocation3 + $0x1a] sm:$0xff]
      %v2887 = vld [vmem:[#allocation3 + $0x22] sm:$0xff]
      %v2888 = vld [vmem:[#allocation3 + $0x2a] sm:$0xff]
      %v2889 = vld [vmem:[#allocation3 + $0x32] sm:$0xff]
      %v2890 = vld [vmem:[#allocation3 + $0x3a] sm:$0x3f]
      %v2891 = vpack.c.bf16 %v2885, %v2884
      %v2892 = vpack.c.bf16 %v2887, %v2886
      %v2893 = vpack.c.bf16 %v2889, %v2888
      %v2894 = vpack.c.bf16 %v2890, %v2890
      %s2895 = scalar_lea.vmem %s3, 512
      %v2896 = vld [vmem:[%s2895] sm:$0xff]
      %v2897 = vld [vmem:[%s2895 + $0x8] sm:$0xff]
      %v2898 = vld [vmem:[%s2895 + $0x10] sm:$0xff]
      %v2899 = vld [vmem:[%s2895 + $0x18] sm:$0xff]
      %v2900 = vld [vmem:[%s2895 + $0x20] sm:$0xff]
      %v2901 = vld [vmem:[%s2895 + $0x28] sm:$0xff]
      %v2902 = vld [vmem:[%s2895 + $0x30] sm:$0xff]
      %v2903 = vld [vmem:[%s2895 + $0x38] sm:$0xff]
      %v2904 = vld [vmem:[%s2895 + $0x40] sm:$0xff]
      %v2905 = vld [vmem:[%s2895 + $0x48] sm:$0xff]
      %v2906 = vld [vmem:[%s2895 + $0x50] sm:$0xff]
      %v2907 = vld [vmem:[%s2895 + $0x58] sm:$0xff]
      %v2908 = vld [vmem:[%s2895 + $0x60] sm:$0xff]
      %v2909 = vld [vmem:[%s2895 + $0x68] sm:$0xff]
      %v2910 = vld [vmem:[%s2895 + $0x70] sm:$0xff]
      %v2911 = vld [vmem:[%s2895 + $0x78] sm:$0xff]
      %v2928 = vunpack.c.l.b16 %v2896
      %v2929 = vunpack.c.h.b16 %v2896
      %v2930 = vunpack.c.l.b16 %v2897
      %v2931 = vunpack.c.h.b16 %v2897
      %v2932 = vunpack.c.l.b16 %v2898
      %v2933 = vunpack.c.h.b16 %v2898
      %v2934 = vunpack.c.l.b16 %v2899
      %v2935 = vunpack.c.h.b16 %v2899
      %v2936 = vunpack.c.l.b16 %v2900
      %v2937 = vunpack.c.h.b16 %v2900
      %v2938 = vunpack.c.l.b16 %v2901
      %v2939 = vunpack.c.h.b16 %v2901
      %v2940 = vunpack.c.l.b16 %v2902
      %v2941 = vunpack.c.h.b16 %v2902
      %v2942 = vunpack.c.l.b16 %v2903
      %v2943 = vunpack.c.h.b16 %v2903
      %v2944 = vunpack.c.l.b16 %v2904
      %v2945 = vunpack.c.h.b16 %v2904
      %v2946 = vunpack.c.l.b16 %v2905
      %v2947 = vunpack.c.h.b16 %v2905
      %v2948 = vunpack.c.l.b16 %v2906
      %v2949 = vunpack.c.h.b16 %v2906
      %v2950 = vunpack.c.l.b16 %v2907
      %v2951 = vunpack.c.h.b16 %v2907
      %v2952 = vunpack.c.l.b16 %v2908
      %v2953 = vunpack.c.h.b16 %v2908
      %v2954 = vunpack.c.l.b16 %v2909
      %v2955 = vunpack.c.h.b16 %v2909
      %v2956 = vunpack.c.l.b16 %v2910
      %v2957 = vunpack.c.h.b16 %v2910
      %v2958 = vunpack.c.l.b16 %v2911
      %v2959 = vunpack.c.h.b16 %v2911
      %v2960 = vpack.c.b16 %v2930, %v2928
      %v2961 = vpack.c.b16 %v2931, %v2929
      %v2962 = vpack.c.b16 %v2934, %v2932
      %v2963 = vpack.c.b16 %v2935, %v2933
      %v2964 = vpack.c.b16 %v2938, %v2936
      %v2965 = vpack.c.b16 %v2939, %v2937
      %v2966 = vpack.c.b16 %v2942, %v2940
      %v2967 = vpack.c.b16 %v2943, %v2941
      %v2968 = vpack.c.b16 %v2946, %v2944
      %v2969 = vpack.c.b16 %v2947, %v2945
      %v2970 = vpack.c.b16 %v2950, %v2948
      %v2971 = vpack.c.b16 %v2951, %v2949
      %v2972 = vpack.c.b16 %v2954, %v2952
      %v2973 = vpack.c.b16 %v2955, %v2953
      %v2974 = vpack.c.b16 %v2958, %v2956
      %v2975 = vpack.c.b16 %v2959, %v2957
      %2992 = vmatprep.subr.bf16.mxu0 %v2961
      %2993 = vmatpush1.bf16.msra.mxu0 %v2960
      %2994 = vmatprep.subr.bf16.mxu0 %v2963
      %2995 = vmatpush1.bf16.msra.mxu0 %v2962
      %2996 = vmatprep.subr.bf16.mxu0 %v2965
      %2997 = vmatpush1.bf16.msra.mxu0 %v2964
      %2998 = vmatprep.subr.bf16.mxu0 %v2967
      %2999 = vmatpush1.bf16.msra.mxu0 %v2966
      %3000 = vmatprep.subr.bf16.mxu0 %v2969
      %3001 = vmatpush1.bf16.msra.mxu0 %v2968
      %3002 = vmatprep.subr.bf16.mxu0 %v2971
      %3003 = vmatpush1.bf16.msra.mxu0 %v2970
      %3004 = vmatprep.subr.bf16.mxu0 %v2973
      %3005 = vmatpush1.bf16.msra.mxu0 %v2972
      %3006 = vmatprep.subr.bf16.mxu0 %v2975
      %3007 = vmatpush1.bf16.msra.mxu0 %v2974
      %3008 = vmatprep.subr.bf16.mxu0 0
      %3009 = vmatpush1.bf16.msra.mxu0 0
      %3010 = vmatprep.subr.bf16.mxu0 0
      %3011 = vmatpush1.bf16.msra.mxu0 0
      %3012 = vmatprep.subr.bf16.mxu0 0
      %3013 = vmatpush1.bf16.msra.mxu0 0
      %3014 = vmatprep.subr.bf16.mxu0 0
      %3015 = vmatpush1.bf16.msra.mxu0 0
      %3016 = vmatprep.subr.bf16.mxu0 0
      %3017 = vmatpush1.bf16.msra.mxu0 0
      %3018 = vmatprep.subr.bf16.mxu0 0
      %3019 = vmatpush1.bf16.msra.mxu0 0
      %3020 = vmatprep.subr.bf16.mxu0 0
      %3021 = vmatpush1.bf16.msra.mxu0 0
      %3022 = vmatprep.subr.bf16.mxu0 0
      %3023 = vmatpush1.bf16.msra.mxu0 0
      %3024 = vmatprep.mubr.bf16.mxu0 0
      %3025 = vmatmul.mubr.bf16.gmra.mrb[0].mxu0 %v2891
      %v3026 = vpop.f32.mrb[0].mxu0
      %v3027 = vadd.f32 0.0, %v3026
      %v3028 = vpop.f32.mrb[0].mxu0
      %v3029 = vadd.f32 0.0, %v3028
      %v3030 = vpop.f32.mrb[0].mxu0
      %v3031 = vadd.f32 0.0, %v3030
      %v3032 = vpop.f32.mrb[0].mxu0
      %v3033 = vadd.f32 0.0, %v3032
      %3034 = vmatprep.mubr.bf16.mxu0 0
      %3035 = vmatmul.mubr.bf16.gmra.mrb[0].mxu0 %v2892
      %v3036 = vpop.f32.mrb[0].mxu0
      %v3037 = vadd.f32 0.0, %v3036
      %v3038 = vpop.f32.mrb[0].mxu0
      %v3039 = vadd.f32 0.0, %v3038
      %v3040 = vpop.f32.mrb[0].mxu0
      %v3041 = vadd.f32 0.0, %v3040
      %v3042 = vpop.f32.mrb[0].mxu0
      %v3043 = vadd.f32 0.0, %v3042
      %3044 = vmatprep.mubr.bf16.mxu0 0
      %3045 = vmatmul.mubr.bf16.gmra.mrb[0].mxu0 %v2893
      %v3046 = vpop.f32.mrb[0].mxu0
      %v3047 = vadd.f32 0.0, %v3046
      %v3048 = vpop.f32.mrb[0].mxu0
      %v3049 = vadd.f32 0.0, %v3048
      %v3050 = vpop.f32.mrb[0].mxu0
      %v3051 = vadd.f32 0.0, %v3050
      %v3052 = vpop.f32.mrb[0].mxu0
      %v3053 = vadd.f32 0.0, %v3052
      %3054 = vmatprep.mubr.bf16.mxu0 0
      %3055 = vmatmul.mubr.bf16.gmra.mrb[0].mxu0 %v2894
      %v3056 = vpop.f32.mrb[0].mxu0
      %v3057 = vadd.f32 0.0, %v3056
      %v3058 = vpop.f32.mrb[0].mxu0
      %v3059 = vadd.f32 0.0, %v3058
      %v3060 = vpop.f32.mrb[0].mxu0
      %v3061 = vpop.f32.mrb[0].mxu0
      %3062 = vdwg.mxu0
      %v3063 = vadd.f32 %v2870, %v3027
      %v3064 = vadd.f32 %v2871, %v3029
      %v3065 = vadd.f32 %v2872, %v3031
      %v3066 = vadd.f32 %v2873, %v3033
      %v3067 = vadd.f32 %v2874, %v3037
      %v3068 = vadd.f32 %v2875, %v3039
      %v3069 = vadd.f32 %v2876, %v3041
      %v3070 = vadd.f32 %v2877, %v3043
      %v3071 = vadd.f32 %v2878, %v3047
      %v3072 = vadd.f32 %v2879, %v3049
      %v3073 = vadd.f32 %v2880, %v3051
      %v3074 = vadd.f32 %v2881, %v3053
      %v3075 = vadd.f32 %v2882, %v3057
      %v3076 = vadd.f32 %v2883, %v3059
      %v3077 = vld [vmem:[#allocation3 + $0xb] sm:$0xff]
      %v3078 = vld [vmem:[#allocation3 + $0x13] sm:$0xff]
      %v3079 = vld [vmem:[#allocation3 + $0x1b] sm:$0xff]
      %v3080 = vld [vmem:[#allocation3 + $0x23] sm:$0xff]
      %v3081 = vld [vmem:[#allocation3 + $0x2b] sm:$0xff]
      %v3082 = vld [vmem:[#allocation3 + $0x33] sm:$0xff]
      %v3083 = vld [vmem:[#allocation3 + $0x3b] sm:$0x3f]
      %v3084 = vpack.c.bf16 %v3078, %v3077
      %v3085 = vpack.c.bf16 %v3080, %v3079
      %v3086 = vpack.c.bf16 %v3082, %v3081
      %v3087 = vpack.c.bf16 %v3083, %v3083
      %s3088 = scalar_lea.vmem %s3, 640
      %v3089 = vld [vmem:[%s3088] sm:$0xff]
      %v3090 = vld [vmem:[%s3088 + $0x8] sm:$0xff]
      %v3091 = vld [vmem:[%s3088 + $0x10] sm:$0xff]
      %v3092 = vld [vmem:[%s3088 + $0x18] sm:$0xff]
      %v3093 = vld [vmem:[%s3088 + $0x20] sm:$0xff]
      %v3094 = vld [vmem:[%s3088 + $0x28] sm:$0xff]
      %v3095 = vld [vmem:[%s3088 + $0x30] sm:$0xff]
      %v3096 = vld [vmem:[%s3088 + $0x38] sm:$0xff]
      %v3097 = vld [vmem:[%s3088 + $0x40] sm:$0xff]
      %v3098 = vld [vmem:[%s3088 + $0x48] sm:$0xff]
      %v3099 = vld [vmem:[%s3088 + $0x50] sm:$0xff]
      %v3100 = vld [vmem:[%s3088 + $0x58] sm:$0xff]
      %v3101 = vld [vmem:[%s3088 + $0x60] sm:$0xff]
      %v3102 = vld [vmem:[%s3088 + $0x68] sm:$0xff]
      %v3103 = vld [vmem:[%s3088 + $0x70] sm:$0xff]
      %v3104 = vld [vmem:[%s3088 + $0x78] sm:$0xff]
      %v3121 = vunpack.c.l.b16 %v3089
      %v3122 = vunpack.c.h.b16 %v3089
      %v3123 = vunpack.c.l.b16 %v3090
      %v3124 = vunpack.c.h.b16 %v3090
      %v3125 = vunpack.c.l.b16 %v3091
      %v3126 = vunpack.c.h.b16 %v3091
      %v3127 = vunpack.c.l.b16 %v3092
      %v3128 = vunpack.c.h.b16 %v3092
      %v3129 = vunpack.c.l.b16 %v3093
      %v3130 = vunpack.c.h.b16 %v3093
      %v3131 = vunpack.c.l.b16 %v3094
      %v3132 = vunpack.c.h.b16 %v3094
      %v3133 = vunpack.c.l.b16 %v3095
      %v3134 = vunpack.c.h.b16 %v3095
      %v3135 = vunpack.c.l.b16 %v3096
      %v3136 = vunpack.c.h.b16 %v3096
      %v3137 = vunpack.c.l.b16 %v3097
      %v3138 = vunpack.c.h.b16 %v3097
      %v3139 = vunpack.c.l.b16 %v3098
      %v3140 = vunpack.c.h.b16 %v3098
      %v3141 = vunpack.c.l.b16 %v3099
      %v3142 = vunpack.c.h.b16 %v3099
      %v3143 = vunpack.c.l.b16 %v3100
      %v3144 = vunpack.c.h.b16 %v3100
      %v3145 = vunpack.c.l.b16 %v3101
      %v3146 = vunpack.c.h.b16 %v3101
      %v3147 = vunpack.c.l.b16 %v3102
      %v3148 = vunpack.c.h.b16 %v3102
      %v3149 = vunpack.c.l.b16 %v3103
      %v3150 = vunpack.c.h.b16 %v3103
      %v3151 = vunpack.c.l.b16 %v3104
      %v3152 = vunpack.c.h.b16 %v3104
      %v3153 = vpack.c.b16 %v3123, %v3121
      %v3154 = vpack.c.b16 %v3124, %v3122
      %v3155 = vpack.c.b16 %v3127, %v3125
      %v3156 = vpack.c.b16 %v3128, %v3126
      %v3157 = vpack.c.b16 %v3131, %v3129
      %v3158 = vpack.c.b16 %v3132, %v3130
      %v3159 = vpack.c.b16 %v3135, %v3133
      %v3160 = vpack.c.b16 %v3136, %v3134
      %v3161 = vpack.c.b16 %v3139, %v3137
      %v3162 = vpack.c.b16 %v3140, %v3138
      %v3163 = vpack.c.b16 %v3143, %v3141
      %v3164 = vpack.c.b16 %v3144, %v3142
      %v3165 = vpack.c.b16 %v3147, %v3145
      %v3166 = vpack.c.b16 %v3148, %v3146
      %v3167 = vpack.c.b16 %v3151, %v3149
      %v3168 = vpack.c.b16 %v3152, %v3150
      %3185 = vmatprep.subr.bf16.mxu0 %v3154
      %3186 = vmatpush1.bf16.msra.mxu0 %v3153
      %3187 = vmatprep.subr.bf16.mxu0 %v3156
      %3188 = vmatpush1.bf16.msra.mxu0 %v3155
      %3189 = vmatprep.subr.bf16.mxu0 %v3158
      %3190 = vmatpush1.bf16.msra.mxu0 %v3157
      %3191 = vmatprep.subr.bf16.mxu0 %v3160
      %3192 = vmatpush1.bf16.msra.mxu0 %v3159
      %3193 = vmatprep.subr.bf16.mxu0 %v3162
      %3194 = vmatpush1.bf16.msra.mxu0 %v3161
      %3195 = vmatprep.subr.bf16.mxu0 %v3164
      %3196 = vmatpush1.bf16.msra.mxu0 %v3163
      %3197 = vmatprep.subr.bf16.mxu0 %v3166
      %3198 = vmatpush1.bf16.msra.mxu0 %v3165
      %3199 = vmatprep.subr.bf16.mxu0 %v3168
      %3200 = vmatpush1.bf16.msra.mxu0 %v3167
      %3201 = vmatprep.subr.bf16.mxu0 0
      %3202 = vmatpush1.bf16.msra.mxu0 0
      %3203 = vmatprep.subr.bf16.mxu0 0
      %3204 = vmatpush1.bf16.msra.mxu0 0
      %3205 = vmatprep.subr.bf16.mxu0 0
      %3206 = vmatpush1.bf16.msra.mxu0 0
      %3207 = vmatprep.subr.bf16.mxu0 0
      %3208 = vmatpush1.bf16.msra.mxu0 0
      %3209 = vmatprep.subr.bf16.mxu0 0
      %3210 = vmatpush1.bf16.msra.mxu0 0
      %3211 = vmatprep.subr.bf16.mxu0 0
      %3212 = vmatpush1.bf16.msra.mxu0 0
      %3213 = vmatprep.subr.bf16.mxu0 0
      %3214 = vmatpush1.bf16.msra.mxu0 0
      %3215 = vmatprep.subr.bf16.mxu0 0
      %3216 = vmatpush1.bf16.msra.mxu0 0
      %3217 = vmatprep.mubr.bf16.mxu0 0
      %3218 = vmatmul.mubr.bf16.gmra.mrb[0].mxu0 %v3084
      %v3219 = vpop.f32.mrb[0].mxu0
      %v3220 = vadd.f32 0.0, %v3219
      %v3221 = vpop.f32.mrb[0].mxu0
      %v3222 = vadd.f32 0.0, %v3221
      %v3223 = vpop.f32.mrb[0].mxu0
      %v3224 = vadd.f32 0.0, %v3223
      %v3225 = vpop.f32.mrb[0].mxu0
      %v3226 = vadd.f32 0.0, %v3225
      %3227 = vmatprep.mubr.bf16.mxu0 0
      %3228 = vmatmul.mubr.bf16.gmra.mrb[0].mxu0 %v3085
      %v3229 = vpop.f32.mrb[0].mxu0
      %v3230 = vadd.f32 0.0, %v3229
      %v3231 = vpop.f32.mrb[0].mxu0
      %v3232 = vadd.f32 0.0, %v3231
      %v3233 = vpop.f32.mrb[0].mxu0
      %v3234 = vadd.f32 0.0, %v3233
      %v3235 = vpop.f32.mrb[0].mxu0
      %v3236 = vadd.f32 0.0, %v3235
      %3237 = vmatprep.mubr.bf16.mxu0 0
      %3238 = vmatmul.mubr.bf16.gmra.mrb[0].mxu0 %v3086
      %v3239 = vpop.f32.mrb[0].mxu0
      %v3240 = vadd.f32 0.0, %v3239
      %v3241 = vpop.f32.mrb[0].mxu0
      %v3242 = vadd.f32 0.0, %v3241
      %v3243 = vpop.f32.mrb[0].mxu0
      %v3244 = vadd.f32 0.0, %v3243
      %v3245 = vpop.f32.mrb[0].mxu0
      %v3246 = vadd.f32 0.0, %v3245
      %3247 = vmatprep.mubr.bf16.mxu0 0
      %3248 = vmatmul.mubr.bf16.gmra.mrb[0].mxu0 %v3087
      %v3249 = vpop.f32.mrb[0].mxu0
      %v3250 = vadd.f32 0.0, %v3249
      %v3251 = vpop.f32.mrb[0].mxu0
      %v3252 = vadd.f32 0.0, %v3251
      %v3253 = vpop.f32.mrb[0].mxu0
      %v3254 = vpop.f32.mrb[0].mxu0
      %3255 = vdwg.mxu0
      %v3256 = vadd.f32 %v3063, %v3220
      %v3257 = vadd.f32 %v3064, %v3222
      %v3258 = vadd.f32 %v3065, %v3224
      %v3259 = vadd.f32 %v3066, %v3226
      %v3260 = vadd.f32 %v3067, %v3230
      %v3261 = vadd.f32 %v3068, %v3232
      %v3262 = vadd.f32 %v3069, %v3234
      %v3263 = vadd.f32 %v3070, %v3236
      %v3264 = vadd.f32 %v3071, %v3240
      %v3265 = vadd.f32 %v3072, %v3242
      %v3266 = vadd.f32 %v3073, %v3244
      %v3267 = vadd.f32 %v3074, %v3246
      %v3268 = vadd.f32 %v3075, %v3250
      %v3269 = vadd.f32 %v3076, %v3252
      %v3270 = vld [vmem:[#allocation3 + $0x12] sm:$0xff]
      %v3271 = vld [vmem:[#allocation3 + $0x1a] sm:$0xff]
      %v3272 = vld [vmem:[#allocation3 + $0x22] sm:$0xff]
      %v3273 = vld [vmem:[#allocation3 + $0x2a] sm:$0xff]
      %v3274 = vld [vmem:[#allocation3 + $0x32] sm:$0xff]
      %v3275 = vld [vmem:[#allocation3 + $0x3a] sm:$0xff]
      %v3276 = vld [vmem:[#allocation3 + $0x42] sm:$0x3f]
      %v3277 = vpack.c.bf16 %v3271, %v3270
      %v3278 = vpack.c.bf16 %v3273, %v3272
      %v3279 = vpack.c.bf16 %v3275, %v3274
      %v3280 = vpack.c.bf16 %v3276, %v3276
      %s3281 = scalar_lea.vmem %s3, 768
      %v3282 = vld [vmem:[%s3281] sm:$0xff]
      %v3283 = vld [vmem:[%s3281 + $0x8] sm:$0xff]
      %v3284 = vld [vmem:[%s3281 + $0x10] sm:$0xff]
      %v3285 = vld [vmem:[%s3281 + $0x18] sm:$0xff]
      %v3286 = vld [vmem:[%s3281 + $0x20] sm:$0xff]
      %v3287 = vld [vmem:[%s3281 + $0x28] sm:$0xff]
      %v3288 = vld [vmem:[%s3281 + $0x30] sm:$0xff]
      %v3289 = vld [vmem:[%s3281 + $0x38] sm:$0xff]
      %v3290 = vld [vmem:[%s3281 + $0x40] sm:$0xff]
      %v3291 = vld [vmem:[%s3281 + $0x48] sm:$0xff]
      %v3292 = vld [vmem:[%s3281 + $0x50] sm:$0xff]
      %v3293 = vld [vmem:[%s3281 + $0x58] sm:$0xff]
      %v3294 = vld [vmem:[%s3281 + $0x60] sm:$0xff]
      %v3295 = vld [vmem:[%s3281 + $0x68] sm:$0xff]
      %v3296 = vld [vmem:[%s3281 + $0x70] sm:$0xff]
      %v3297 = vld [vmem:[%s3281 + $0x78] sm:$0xff]
      %v3314 = vunpack.c.l.b16 %v3282
      %v3315 = vunpack.c.h.b16 %v3282
      %v3316 = vunpack.c.l.b16 %v3283
      %v3317 = vunpack.c.h.b16 %v3283
      %v3318 = vunpack.c.l.b16 %v3284
      %v3319 = vunpack.c.h.b16 %v3284
      %v3320 = vunpack.c.l.b16 %v3285
      %v3321 = vunpack.c.h.b16 %v3285
      %v3322 = vunpack.c.l.b16 %v3286
      %v3323 = vunpack.c.h.b16 %v3286
      %v3324 = vunpack.c.l.b16 %v3287
      %v3325 = vunpack.c.h.b16 %v3287
      %v3326 = vunpack.c.l.b16 %v3288
      %v3327 = vunpack.c.h.b16 %v3288
      %v3328 = vunpack.c.l.b16 %v3289
      %v3329 = vunpack.c.h.b16 %v3289
      %v3330 = vunpack.c.l.b16 %v3290
      %v3331 = vunpack.c.h.b16 %v3290
      %v3332 = vunpack.c.l.b16 %v3291
      %v3333 = vunpack.c.h.b16 %v3291
      %v3334 = vunpack.c.l.b16 %v3292
      %v3335 = vunpack.c.h.b16 %v3292
      %v3336 = vunpack.c.l.b16 %v3293
      %v3337 = vunpack.c.h.b16 %v3293
      %v3338 = vunpack.c.l.b16 %v3294
      %v3339 = vunpack.c.h.b16 %v3294
      %v3340 = vunpack.c.l.b16 %v3295
      %v3341 = vunpack.c.h.b16 %v3295
      %v3342 = vunpack.c.l.b16 %v3296
      %v3343 = vunpack.c.h.b16 %v3296
      %v3344 = vunpack.c.l.b16 %v3297
      %v3345 = vunpack.c.h.b16 %v3297
      %v3346 = vpack.c.b16 %v3316, %v3314
      %v3347 = vpack.c.b16 %v3317, %v3315
      %v3348 = vpack.c.b16 %v3320, %v3318
      %v3349 = vpack.c.b16 %v3321, %v3319
      %v3350 = vpack.c.b16 %v3324, %v3322
      %v3351 = vpack.c.b16 %v3325, %v3323
      %v3352 = vpack.c.b16 %v3328, %v3326
      %v3353 = vpack.c.b16 %v3329, %v3327
      %v3354 = vpack.c.b16 %v3332, %v3330
      %v3355 = vpack.c.b16 %v3333, %v3331
      %v3356 = vpack.c.b16 %v3336, %v3334
      %v3357 = vpack.c.b16 %v3337, %v3335
      %v3358 = vpack.c.b16 %v3340, %v3338
      %v3359 = vpack.c.b16 %v3341, %v3339
      %v3360 = vpack.c.b16 %v3344, %v3342
      %v3361 = vpack.c.b16 %v3345, %v3343
      %3378 = vmatprep.subr.bf16.mxu0 %v3347
      %3379 = vmatpush1.bf16.msra.mxu0 %v3346
      %3380 = vmatprep.subr.bf16.mxu0 %v3349
      %3381 = vmatpush1.bf16.msra.mxu0 %v3348
      %3382 = vmatprep.subr.bf16.mxu0 %v3351
      %3383 = vmatpush1.bf16.msra.mxu0 %v3350
      %3384 = vmatprep.subr.bf16.mxu0 %v3353
      %3385 = vmatpush1.bf16.msra.mxu0 %v3352
      %3386 = vmatprep.subr.bf16.mxu0 %v3355
      %3387 = vmatpush1.bf16.msra.mxu0 %v3354
      %3388 = vmatprep.subr.bf16.mxu0 %v3357
      %3389 = vmatpush1.bf16.msra.mxu0 %v3356
      %3390 = vmatprep.subr.bf16.mxu0 %v3359
      %3391 = vmatpush1.bf16.msra.mxu0 %v3358
      %3392 = vmatprep.subr.bf16.mxu0 %v3361
      %3393 = vmatpush1.bf16.msra.mxu0 %v3360
      %3394 = vmatprep.subr.bf16.mxu0 0
      %3395 = vmatpush1.bf16.msra.mxu0 0
      %3396 = vmatprep.subr.bf16.mxu0 0
      %3397 = vmatpush1.bf16.msra.mxu0 0
      %3398 = vmatprep.subr.bf16.mxu0 0
      %3399 = vmatpush1.bf16.msra.mxu0 0
      %3400 = vmatprep.subr.bf16.mxu0 0
      %3401 = vmatpush1.bf16.msra.mxu0 0
      %3402 = vmatprep.subr.bf16.mxu0 0
      %3403 = vmatpush1.bf16.msra.mxu0 0
      %3404 = vmatprep.subr.bf16.mxu0 0
      %3405 = vmatpush1.bf16.msra.mxu0 0
      %3406 = vmatprep.subr.bf16.mxu0 0
      %3407 = vmatpush1.bf16.msra.mxu0 0
      %3408 = vmatprep.subr.bf16.mxu0 0
      %3409 = vmatpush1.bf16.msra.mxu0 0
      %3410 = vmatprep.mubr.bf16.mxu0 0
      %3411 = vmatmul.mubr.bf16.gmra.mrb[0].mxu0 %v3277
      %v3412 = vpop.f32.mrb[0].mxu0
      %v3413 = vadd.f32 0.0, %v3412
      %v3414 = vpop.f32.mrb[0].mxu0
      %v3415 = vadd.f32 0.0, %v3414
      %v3416 = vpop.f32.mrb[0].mxu0
      %v3417 = vadd.f32 0.0, %v3416
      %v3418 = vpop.f32.mrb[0].mxu0
      %v3419 = vadd.f32 0.0, %v3418
      %3420 = vmatprep.mubr.bf16.mxu0 0
      %3421 = vmatmul.mubr.bf16.gmra.mrb[0].mxu0 %v3278
      %v3422 = vpop.f32.mrb[0].mxu0
      %v3423 = vadd.f32 0.0, %v3422
      %v3424 = vpop.f32.mrb[0].mxu0
      %v3425 = vadd.f32 0.0, %v3424
      %v3426 = vpop.f32.mrb[0].mxu0
      %v3427 = vadd.f32 0.0, %v3426
      %v3428 = vpop.f32.mrb[0].mxu0
      %v3429 = vadd.f32 0.0, %v3428
      %3430 = vmatprep.mubr.bf16.mxu0 0
      %3431 = vmatmul.mubr.bf16.gmra.mrb[0].mxu0 %v3279
      %v3432 = vpop.f32.mrb[0].mxu0
      %v3433 = vadd.f32 0.0, %v3432
      %v3434 = vpop.f32.mrb[0].mxu0
      %v3435 = vadd.f32 0.0, %v3434
      %v3436 = vpop.f32.mrb[0].mxu0
      %v3437 = vadd.f32 0.0, %v3436
      %v3438 = vpop.f32.mrb[0].mxu0
      %v3439 = vadd.f32 0.0, %v3438
      %3440 = vmatprep.mubr.bf16.mxu0 0
      %3441 = vmatmul.mubr.bf16.gmra.mrb[0].mxu0 %v3280
      %v3442 = vpop.f32.mrb[0].mxu0
      %v3443 = vadd.f32 0.0, %v3442
      %v3444 = vpop.f32.mrb[0].mxu0
      %v3445 = vadd.f32 0.0, %v3444
      %v3446 = vpop.f32.mrb[0].mxu0
      %v3447 = vpop.f32.mrb[0].mxu0
      %3448 = vdwg.mxu0
      %v3449 = vadd.f32 %v3256, %v3413
      %v3450 = vadd.f32 %v3257, %v3415
      %v3451 = vadd.f32 %v3258, %v3417
      %v3452 = vadd.f32 %v3259, %v3419
      %v3453 = vadd.f32 %v3260, %v3423
      %v3454 = vadd.f32 %v3261, %v3425
      %v3455 = vadd.f32 %v3262, %v3427
      %v3456 = vadd.f32 %v3263, %v3429
      %v3457 = vadd.f32 %v3264, %v3433
      %v3458 = vadd.f32 %v3265, %v3435
      %v3459 = vadd.f32 %v3266, %v3437
      %v3460 = vadd.f32 %v3267, %v3439
      %v3461 = vadd.f32 %v3268, %v3443
      %v3462 = vadd.f32 %v3269, %v3445
      %v3463 = vld [vmem:[#allocation3 + $0x13] sm:$0xff]
      %v3464 = vld [vmem:[#allocation3 + $0x1b] sm:$0xff]
      %v3465 = vld [vmem:[#allocation3 + $0x23] sm:$0xff]
      %v3466 = vld [vmem:[#allocation3 + $0x2b] sm:$0xff]
      %v3467 = vld [vmem:[#allocation3 + $0x33] sm:$0xff]
      %v3468 = vld [vmem:[#allocation3 + $0x3b] sm:$0xff]
      %v3469 = vld [vmem:[#allocation3 + $0x43] sm:$0x3f]
      %v3470 = vpack.c.bf16 %v3464, %v3463
      %v3471 = vpack.c.bf16 %v3466, %v3465
      %v3472 = vpack.c.bf16 %v3468, %v3467
      %v3473 = vpack.c.bf16 %v3469, %v3469
      %s3474 = scalar_lea.vmem %s3, 896
      %v3475 = vld [vmem:[%s3474] sm:$0xff]
      %v3476 = vld [vmem:[%s3474 + $0x8] sm:$0xff]
      %v3477 = vld [vmem:[%s3474 + $0x10] sm:$0xff]
      %v3478 = vld [vmem:[%s3474 + $0x18] sm:$0xff]
      %v3479 = vld [vmem:[%s3474 + $0x20] sm:$0xff]
      %v3480 = vld [vmem:[%s3474 + $0x28] sm:$0xff]
      %v3481 = vld [vmem:[%s3474 + $0x30] sm:$0xff]
      %v3482 = vld [vmem:[%s3474 + $0x38] sm:$0xff]
      %v3483 = vld [vmem:[%s3474 + $0x40] sm:$0xff]
      %v3484 = vld [vmem:[%s3474 + $0x48] sm:$0xff]
      %v3485 = vld [vmem:[%s3474 + $0x50] sm:$0xff]
      %v3486 = vld [vmem:[%s3474 + $0x58] sm:$0xff]
      %v3487 = vld [vmem:[%s3474 + $0x60] sm:$0xff]
      %v3488 = vld [vmem:[%s3474 + $0x68] sm:$0xff]
      %v3489 = vld [vmem:[%s3474 + $0x70] sm:$0xff]
      %v3490 = vld [vmem:[%s3474 + $0x78] sm:$0xff]
      %v3507 = vunpack.c.l.b16 %v3475
      %v3508 = vunpack.c.h.b16 %v3475
      %v3509 = vunpack.c.l.b16 %v3476
      %v3510 = vunpack.c.h.b16 %v3476
      %v3511 = vunpack.c.l.b16 %v3477
      %v3512 = vunpack.c.h.b16 %v3477
      %v3513 = vunpack.c.l.b16 %v3478
      %v3514 = vunpack.c.h.b16 %v3478
      %v3515 = vunpack.c.l.b16 %v3479
      %v3516 = vunpack.c.h.b16 %v3479
      %v3517 = vunpack.c.l.b16 %v3480
      %v3518 = vunpack.c.h.b16 %v3480
      %v3519 = vunpack.c.l.b16 %v3481
      %v3520 = vunpack.c.h.b16 %v3481
      %v3521 = vunpack.c.l.b16 %v3482
      %v3522 = vunpack.c.h.b16 %v3482
      %v3523 = vunpack.c.l.b16 %v3483
      %v3524 = vunpack.c.h.b16 %v3483
      %v3525 = vunpack.c.l.b16 %v3484
      %v3526 = vunpack.c.h.b16 %v3484
      %v3527 = vunpack.c.l.b16 %v3485
      %v3528 = vunpack.c.h.b16 %v3485
      %v3529 = vunpack.c.l.b16 %v3486
      %v3530 = vunpack.c.h.b16 %v3486
      %v3531 = vunpack.c.l.b16 %v3487
      %v3532 = vunpack.c.h.b16 %v3487
      %v3533 = vunpack.c.l.b16 %v3488
      %v3534 = vunpack.c.h.b16 %v3488
      %v3535 = vunpack.c.l.b16 %v3489
      %v3536 = vunpack.c.h.b16 %v3489
      %v3537 = vunpack.c.l.b16 %v3490
      %v3538 = vunpack.c.h.b16 %v3490
      %v3539 = vpack.c.b16 %v3509, %v3507
      %v3540 = vpack.c.b16 %v3510, %v3508
      %v3541 = vpack.c.b16 %v3513, %v3511
      %v3542 = vpack.c.b16 %v3514, %v3512
      %v3543 = vpack.c.b16 %v3517, %v3515
      %v3544 = vpack.c.b16 %v3518, %v3516
      %v3545 = vpack.c.b16 %v3521, %v3519
      %v3546 = vpack.c.b16 %v3522, %v3520
      %v3547 = vpack.c.b16 %v3525, %v3523
      %v3548 = vpack.c.b16 %v3526, %v3524
      %v3549 = vpack.c.b16 %v3529, %v3527
      %v3550 = vpack.c.b16 %v3530, %v3528
      %v3551 = vpack.c.b16 %v3533, %v3531
      %v3552 = vpack.c.b16 %v3534, %v3532
      %v3553 = vpack.c.b16 %v3537, %v3535
      %v3554 = vpack.c.b16 %v3538, %v3536
      %3571 = vmatprep.subr.bf16.mxu0 %v3540
      %3572 = vmatpush1.bf16.msra.mxu0 %v3539
      %3573 = vmatprep.subr.bf16.mxu0 %v3542
      %3574 = vmatpush1.bf16.msra.mxu0 %v3541
      %3575 = vmatprep.subr.bf16.mxu0 %v3544
      %3576 = vmatpush1.bf16.msra.mxu0 %v3543
      %3577 = vmatprep.subr.bf16.mxu0 %v3546
      %3578 = vmatpush1.bf16.msra.mxu0 %v3545
      %3579 = vmatprep.subr.bf16.mxu0 %v3548
      %3580 = vmatpush1.bf16.msra.mxu0 %v3547
      %3581 = vmatprep.subr.bf16.mxu0 %v3550
      %3582 = vmatpush1.bf16.msra.mxu0 %v3549
      %3583 = vmatprep.subr.bf16.mxu0 %v3552
      %3584 = vmatpush1.bf16.msra.mxu0 %v3551
      %3585 = vmatprep.subr.bf16.mxu0 %v3554
      %3586 = vmatpush1.bf16.msra.mxu0 %v3553
      %3587 = vmatprep.subr.bf16.mxu0 0
      %3588 = vmatpush1.bf16.msra.mxu0 0
      %3589 = vmatprep.subr.bf16.mxu0 0
      %3590 = vmatpush1.bf16.msra.mxu0 0
      %3591 = vmatprep.subr.bf16.mxu0 0
      %3592 = vmatpush1.bf16.msra.mxu0 0
      %3593 = vmatprep.subr.bf16.mxu0 0
      %3594 = vmatpush1.bf16.msra.mxu0 0
      %3595 = vmatprep.subr.bf16.mxu0 0
      %3596 = vmatpush1.bf16.msra.mxu0 0
      %3597 = vmatprep.subr.bf16.mxu0 0
      %3598 = vmatpush1.bf16.msra.mxu0 0
      %3599 = vmatprep.subr.bf16.mxu0 0
      %3600 = vmatpush1.bf16.msra.mxu0 0
      %3601 = vmatprep.subr.bf16.mxu0 0
      %3602 = vmatpush1.bf16.msra.mxu0 0
      %3603 = vmatprep.mubr.bf16.mxu0 0
      %3604 = vmatmul.mubr.bf16.gmra.mrb[0].mxu0 %v3470
      %v3605 = vpop.f32.mrb[0].mxu0
      %v3606 = vadd.f32 0.0, %v3605
      %v3607 = vpop.f32.mrb[0].mxu0
      %v3608 = vadd.f32 0.0, %v3607
      %v3609 = vpop.f32.mrb[0].mxu0
      %v3610 = vadd.f32 0.0, %v3609
      %v3611 = vpop.f32.mrb[0].mxu0
      %v3612 = vadd.f32 0.0, %v3611
      %3613 = vmatprep.mubr.bf16.mxu0 0
      %3614 = vmatmul.mubr.bf16.gmra.mrb[0].mxu0 %v3471
      %v3615 = vpop.f32.mrb[0].mxu0
      %v3616 = vadd.f32 0.0, %v3615
      %v3617 = vpop.f32.mrb[0].mxu0
      %v3618 = vadd.f32 0.0, %v3617
      %v3619 = vpop.f32.mrb[0].mxu0
      %v3620 = vadd.f32 0.0, %v3619
      %v3621 = vpop.f32.mrb[0].mxu0
      %v3622 = vadd.f32 0.0, %v3621
      %3623 = vmatprep.mubr.bf16.mxu0 0
      %3624 = vmatmul.mubr.bf16.gmra.mrb[0].mxu0 %v3472
      %v3625 = vpop.f32.mrb[0].mxu0
      %v3626 = vadd.f32 0.0, %v3625
      %v3627 = vpop.f32.mrb[0].mxu0
      %v3628 = vadd.f32 0.0, %v3627
      %v3629 = vpop.f32.mrb[0].mxu0
      %v3630 = vadd.f32 0.0, %v3629
      %v3631 = vpop.f32.mrb[0].mxu0
      %v3632 = vadd.f32 0.0, %v3631
      %3633 = vmatprep.mubr.bf16.mxu0 0
      %3634 = vmatmul.mubr.bf16.gmra.mrb[0].mxu0 %v3473
      %v3635 = vpop.f32.mrb[0].mxu0
      %v3636 = vadd.f32 0.0, %v3635
      %v3637 = vpop.f32.mrb[0].mxu0
      %v3638 = vadd.f32 0.0, %v3637
      %v3639 = vpop.f32.mrb[0].mxu0
      %v3640 = vpop.f32.mrb[0].mxu0
      %3641 = vdwg.mxu0
      %v3642 = vadd.f32 %v3449, %v3606
      %v3643 = vadd.f32 %v3450, %v3608
      %v3644 = vadd.f32 %v3451, %v3610
      %v3645 = vadd.f32 %v3452, %v3612
      %v3646 = vadd.f32 %v3453, %v3616
      %v3647 = vadd.f32 %v3454, %v3618
      %v3648 = vadd.f32 %v3455, %v3620
      %v3649 = vadd.f32 %v3456, %v3622
      %v3650 = vadd.f32 %v3457, %v3626
      %v3651 = vadd.f32 %v3458, %v3628
      %v3652 = vadd.f32 %v3459, %v3630
      %v3653 = vadd.f32 %v3460, %v3632
      %v3654 = vadd.f32 %v3461, %v3636
      %v3655 = vadd.f32 %v3462, %v3638
      %v3656 = vld [vmem:[#allocation3 + $0x14] sm:$0xff]
      %v3657 = vld [vmem:[#allocation3 + $0x1c] sm:$0xff]
      %v3658 = vld [vmem:[#allocation3 + $0x24] sm:$0xff]
      %v3659 = vld [vmem:[#allocation3 + $0x2c] sm:$0xff]
      %v3660 = vld [vmem:[#allocation3 + $0x34] sm:$0xff]
      %v3661 = vld [vmem:[#allocation3 + $0x3c] sm:$0xff]
      %v3662 = vld [vmem:[#allocation3 + $0x44] sm:$0x3f]
      %v3663 = vpack.c.bf16 %v3657, %v3656
      %v3664 = vpack.c.bf16 %v3659, %v3658
      %v3665 = vpack.c.bf16 %v3661, %v3660
      %v3666 = vpack.c.bf16 %v3662, %v3662
      %s3667 = scalar_lea.vmem %s3, 1024
      %v3668 = vld [vmem:[%s3667] sm:$0xff]
      %v3669 = vld [vmem:[%s3667 + $0x8] sm:$0xff]
      %v3670 = vld [vmem:[%s3667 + $0x10] sm:$0xff]
      %v3671 = vld [vmem:[%s3667 + $0x18] sm:$0xff]
      %v3672 = vld [vmem:[%s3667 + $0x20] sm:$0xff]
      %v3673 = vld [vmem:[%s3667 + $0x28] sm:$0xff]
      %v3674 = vld [vmem:[%s3667 + $0x30] sm:$0xff]
      %v3675 = vld [vmem:[%s3667 + $0x38] sm:$0xff]
      %v3676 = vld [vmem:[%s3667 + $0x40] sm:$0xff]
      %v3677 = vld [vmem:[%s3667 + $0x48] sm:$0xff]
      %v3678 = vld [vmem:[%s3667 + $0x50] sm:$0xff]
      %v3679 = vld [vmem:[%s3667 + $0x58] sm:$0xff]
      %v3680 = vld [vmem:[%s3667 + $0x60] sm:$0xff]
      %v3681 = vld [vmem:[%s3667 + $0x68] sm:$0xff]
      %v3682 = vld [vmem:[%s3667 + $0x70] sm:$0xff]
      %v3683 = vld [vmem:[%s3667 + $0x78] sm:$0xff]
      %v3700 = vunpack.c.l.b16 %v3668
      %v3701 = vunpack.c.h.b16 %v3668
      %v3702 = vunpack.c.l.b16 %v3669
      %v3703 = vunpack.c.h.b16 %v3669
      %v3704 = vunpack.c.l.b16 %v3670
      %v3705 = vunpack.c.h.b16 %v3670
      %v3706 = vunpack.c.l.b16 %v3671
      %v3707 = vunpack.c.h.b16 %v3671
      %v3708 = vunpack.c.l.b16 %v3672
      %v3709 = vunpack.c.h.b16 %v3672
      %v3710 = vunpack.c.l.b16 %v3673
      %v3711 = vunpack.c.h.b16 %v3673
      %v3712 = vunpack.c.l.b16 %v3674
      %v3713 = vunpack.c.h.b16 %v3674
      %v3714 = vunpack.c.l.b16 %v3675
      %v3715 = vunpack.c.h.b16 %v3675
      %v3716 = vunpack.c.l.b16 %v3676
      %v3717 = vunpack.c.h.b16 %v3676
      %v3718 = vunpack.c.l.b16 %v3677
      %v3719 = vunpack.c.h.b16 %v3677
      %v3720 = vunpack.c.l.b16 %v3678
      %v3721 = vunpack.c.h.b16 %v3678
      %v3722 = vunpack.c.l.b16 %v3679
      %v3723 = vunpack.c.h.b16 %v3679
      %v3724 = vunpack.c.l.b16 %v3680
      %v3725 = vunpack.c.h.b16 %v3680
      %v3726 = vunpack.c.l.b16 %v3681
      %v3727 = vunpack.c.h.b16 %v3681
      %v3728 = vunpack.c.l.b16 %v3682
      %v3729 = vunpack.c.h.b16 %v3682
      %v3730 = vunpack.c.l.b16 %v3683
      %v3731 = vunpack.c.h.b16 %v3683
      %v3732 = vpack.c.b16 %v3702, %v3700
      %v3733 = vpack.c.b16 %v3703, %v3701
      %v3734 = vpack.c.b16 %v3706, %v3704
      %v3735 = vpack.c.b16 %v3707, %v3705
      %v3736 = vpack.c.b16 %v3710, %v3708
      %v3737 = vpack.c.b16 %v3711, %v3709
      %v3738 = vpack.c.b16 %v3714, %v3712
      %v3739 = vpack.c.b16 %v3715, %v3713
      %v3740 = vpack.c.b16 %v3718, %v3716
      %v3741 = vpack.c.b16 %v3719, %v3717
      %v3742 = vpack.c.b16 %v3722, %v3720
      %v3743 = vpack.c.b16 %v3723, %v3721
      %v3744 = vpack.c.b16 %v3726, %v3724
      %v3745 = vpack.c.b16 %v3727, %v3725
      %v3746 = vpack.c.b16 %v3730, %v3728
      %v3747 = vpack.c.b16 %v3731, %v3729
      %3764 = vmatprep.subr.bf16.mxu0 %v3733
      %3765 = vmatpush1.bf16.msra.mxu0 %v3732
      %3766 = vmatprep.subr.bf16.mxu0 %v3735
      %3767 = vmatpush1.bf16.msra.mxu0 %v3734
      %3768 = vmatprep.subr.bf16.mxu0 %v3737
      %3769 = vmatpush1.bf16.msra.mxu0 %v3736
      %3770 = vmatprep.subr.bf16.mxu0 %v3739
      %3771 = vmatpush1.bf16.msra.mxu0 %v3738
      %3772 = vmatprep.subr.bf16.mxu0 %v3741
      %3773 = vmatpush1.bf16.msra.mxu0 %v3740
      %3774 = vmatprep.subr.bf16.mxu0 %v3743
      %3775 = vmatpush1.bf16.msra.mxu0 %v3742
      %3776 = vmatprep.subr.bf16.mxu0 %v3745
      %3777 = vmatpush1.bf16.msra.mxu0 %v3744
      %3778 = vmatprep.subr.bf16.mxu0 %v3747
      %3779 = vmatpush1.bf16.msra.mxu0 %v3746
      %3780 = vmatprep.subr.bf16.mxu0 0
      %3781 = vmatpush1.bf16.msra.mxu0 0
      %3782 = vmatprep.subr.bf16.mxu0 0
      %3783 = vmatpush1.bf16.msra.mxu0 0
      %3784 = vmatprep.subr.bf16.mxu0 0
      %3785 = vmatpush1.bf16.msra.mxu0 0
      %3786 = vmatprep.subr.bf16.mxu0 0
      %3787 = vmatpush1.bf16.msra.mxu0 0
      %3788 = vmatprep.subr.bf16.mxu0 0
      %3789 = vmatpush1.bf16.msra.mxu0 0
      %3790 = vmatprep.subr.bf16.mxu0 0
      %3791 = vmatpush1.bf16.msra.mxu0 0
      %3792 = vmatprep.subr.bf16.mxu0 0
      %3793 = vmatpush1.bf16.msra.mxu0 0
      %3794 = vmatprep.subr.bf16.mxu0 0
      %3795 = vmatpush1.bf16.msra.mxu0 0
      %3796 = vmatprep.mubr.bf16.mxu0 0
      %3797 = vmatmul.mubr.bf16.gmra.mrb[0].mxu0 %v3663
      %v3798 = vpop.f32.mrb[0].mxu0
      %v3799 = vadd.f32 0.0, %v3798
      %v3800 = vpop.f32.mrb[0].mxu0
      %v3801 = vadd.f32 0.0, %v3800
      %v3802 = vpop.f32.mrb[0].mxu0
      %v3803 = vadd.f32 0.0, %v3802
      %v3804 = vpop.f32.mrb[0].mxu0
      %v3805 = vadd.f32 0.0, %v3804
      %3806 = vmatprep.mubr.bf16.mxu0 0
      %3807 = vmatmul.mubr.bf16.gmra.mrb[0].mxu0 %v3664
      %v3808 = vpop.f32.mrb[0].mxu0
      %v3809 = vadd.f32 0.0, %v3808
      %v3810 = vpop.f32.mrb[0].mxu0
      %v3811 = vadd.f32 0.0, %v3810
      %v3812 = vpop.f32.mrb[0].mxu0
      %v3813 = vadd.f32 0.0, %v3812
      %v3814 = vpop.f32.mrb[0].mxu0
      %v3815 = vadd.f32 0.0, %v3814
      %3816 = vmatprep.mubr.bf16.mxu0 0
      %3817 = vmatmul.mubr.bf16.gmra.mrb[0].mxu0 %v3665
      %v3818 = vpop.f32.mrb[0].mxu0
      %v3819 = vadd.f32 0.0, %v3818
      %v3820 = vpop.f32.mrb[0].mxu0
      %v3821 = vadd.f32 0.0, %v3820
      %v3822 = vpop.f32.mrb[0].mxu0
      %v3823 = vadd.f32 0.0, %v3822
      %v3824 = vpop.f32.mrb[0].mxu0
      %v3825 = vadd.f32 0.0, %v3824
      %3826 = vmatprep.mubr.bf16.mxu0 0
      %3827 = vmatmul.mubr.bf16.gmra.mrb[0].mxu0 %v3666
      %v3828 = vpop.f32.mrb[0].mxu0
      %v3829 = vadd.f32 0.0, %v3828
      %v3830 = vpop.f32.mrb[0].mxu0
      %v3831 = vadd.f32 0.0, %v3830
      %v3832 = vpop.f32.mrb[0].mxu0
      %v3833 = vpop.f32.mrb[0].mxu0
      %3834 = vdwg.mxu0
      %v3835 = vadd.f32 %v3642, %v3799
      %v3836 = vadd.f32 %v3643, %v3801
      %v3837 = vadd.f32 %v3644, %v3803
      %v3838 = vadd.f32 %v3645, %v3805
      %v3839 = vadd.f32 %v3646, %v3809
      %v3840 = vadd.f32 %v3647, %v3811
      %v3841 = vadd.f32 %v3648, %v3813
      %v3842 = vadd.f32 %v3649, %v3815
      %v3843 = vadd.f32 %v3650, %v3819
      %v3844 = vadd.f32 %v3651, %v3821
      %v3845 = vadd.f32 %v3652, %v3823
      %v3846 = vadd.f32 %v3653, %v3825
      %v3847 = vadd.f32 %v3654, %v3829
      %v3848 = vadd.f32 %v3655, %v3831
      %s3849 = scalar_lea.vmem %s5, 4
      %v3850 = vld [vmem:[%s3849] ss:$8 sm:$0x3]
      %v3852 = vlaneseq
      %v3853 = vshrl.u32 %v3852, 7
      %v3854 = vsub.s32 0, %v3853
      %v3855 = vrot.slane %v3850, %v3854
      %v3856 = vlaneseq
      %v3857 = vshrl.u32 %v3856, 7
      %v3858 = vsub.s32 1, %v3857
      %v3859 = vrot.slane %v3850, %v3858
      %v3862 = vadd.f32 %v3835, %v3855
      %v3863 = vadd.f32 %v3836, %v3859
      %v3864 = vadd.f32 %v3837, %v3855
      %v3865 = vadd.f32 %v3838, %v3859
      %v3866 = vadd.f32 %v3839, %v3855
      %v3867 = vadd.f32 %v3840, %v3859
      %v3868 = vadd.f32 %v3841, %v3855
      %v3869 = vadd.f32 %v3842, %v3859
      %v3870 = vadd.f32 %v3843, %v3855
      %v3871 = vadd.f32 %v3844, %v3859
      %v3872 = vadd.f32 %v3845, %v3855
      %v3873 = vadd.f32 %v3846, %v3859
      %v3874 = vadd.f32 %v3847, %v3855
      %v3875 = vadd.f32 %v3848, %v3859
      %vm3876 = vcmp.ge.f32.partialorder %v3862, 0.0
      %vm3877 = vcmp.ge.f32.partialorder %v3863, 0.0
      %vm3878 = vcmp.ge.f32.partialorder %v3864, 0.0
      %vm3879 = vcmp.ge.f32.partialorder %v3865, 0.0
      %vm3880 = vcmp.ge.f32.partialorder %v3866, 0.0
      %vm3881 = vcmp.ge.f32.partialorder %v3867, 0.0
      %vm3882 = vcmp.ge.f32.partialorder %v3868, 0.0
      %vm3883 = vcmp.ge.f32.partialorder %v3869, 0.0
      %vm3884 = vcmp.ge.f32.partialorder %v3870, 0.0
      %vm3885 = vcmp.ge.f32.partialorder %v3871, 0.0
      %vm3886 = vcmp.ge.f32.partialorder %v3872, 0.0
      %vm3887 = vcmp.ge.f32.partialorder %v3873, 0.0
      %vm3888 = vcmp.ge.f32.partialorder %v3874, 0.0
      %vm3889 = vcmp.ge.f32.partialorder %v3875, 0.0
      %v3890 = vmul.f32 %v3862, 0.01
      %v3891 = vmul.f32 %v3863, 0.01
      %v3892 = vmul.f32 %v3864, 0.01
      %v3893 = vmul.f32 %v3865, 0.01
      %v3894 = vmul.f32 %v3866, 0.01
      %v3895 = vmul.f32 %v3867, 0.01
      %v3896 = vmul.f32 %v3868, 0.01
      %v3897 = vmul.f32 %v3869, 0.01
      %v3898 = vmul.f32 %v3870, 0.01
      %v3899 = vmul.f32 %v3871, 0.01
      %v3900 = vmul.f32 %v3872, 0.01
      %v3901 = vmul.f32 %v3873, 0.01
      %v3902 = vmul.f32 %v3874, 0.01
      %v3903 = vmul.f32 %v3875, 0.01
      %v3904 = vsel %vm3876, %v3862, %v3890
      %v3905 = vsel %vm3877, %v3863, %v3891
      %v3906 = vsel %vm3878, %v3864, %v3892
      %v3907 = vsel %vm3879, %v3865, %v3893
      %v3908 = vsel %vm3880, %v3866, %v3894
      %v3909 = vsel %vm3881, %v3867, %v3895
      %v3910 = vsel %vm3882, %v3868, %v3896
      %v3911 = vsel %vm3883, %v3869, %v3897
      %v3912 = vsel %vm3884, %v3870, %v3898
      %v3913 = vsel %vm3885, %v3871, %v3899
      %v3914 = vsel %vm3886, %v3872, %v3900
      %v3915 = vsel %vm3887, %v3873, %v3901
      %v3916 = vsel %vm3888, %v3874, %v3902
      %v3917 = vsel %vm3889, %v3875, %v3903
      %s3918 = scalar_lea.vmem %s5, 5
      %v3919 = vld [vmem:[%s3918] ss:$8 sm:$0x3]
      %v3921 = vlaneseq
      %v3922 = vshrl.u32 %v3921, 7
      %v3923 = vsub.s32 0, %v3922
      %v3924 = vrot.slane %v3919, %v3923
      %v3925 = vlaneseq
      %v3926 = vshrl.u32 %v3925, 7
      %v3927 = vsub.s32 1, %v3926
      %v3928 = vrot.slane %v3919, %v3927
      %v3931 = vmul.f32 %v3904, %v3924
      %v3932 = vmul.f32 %v3905, %v3928
      %v3933 = vmul.f32 %v3906, %v3924
      %v3934 = vmul.f32 %v3907, %v3928
      %v3935 = vmul.f32 %v3908, %v3924
      %v3936 = vmul.f32 %v3909, %v3928
      %v3937 = vmul.f32 %v3910, %v3924
      %v3938 = vmul.f32 %v3911, %v3928
      %v3939 = vmul.f32 %v3912, %v3924
      %v3940 = vmul.f32 %v3913, %v3928
      %v3941 = vmul.f32 %v3914, %v3924
      %v3942 = vmul.f32 %v3915, %v3928
      %v3943 = vmul.f32 %v3916, %v3924
      %v3944 = vmul.f32 %v3917, %v3928
      %s3945 = scalar_lea.vmem %s5, 6
      %v3946 = vld [vmem:[%s3945] ss:$8 sm:$0x3]
      %v3948 = vlaneseq
      %v3949 = vshrl.u32 %v3948, 7
      %v3950 = vsub.s32 0, %v3949
      %v3951 = vrot.slane %v3946, %v3950
      %v3952 = vlaneseq
      %v3953 = vshrl.u32 %v3952, 7
      %v3954 = vsub.s32 1, %v3953
      %v3955 = vrot.slane %v3946, %v3954
      %v3958 = vadd.f32 %v3931, %v3951
      %v3959 = vadd.f32 %v3932, %v3955
      %v3960 = vadd.f32 %v3933, %v3951
      %v3961 = vadd.f32 %v3934, %v3955
      %v3962 = vadd.f32 %v3935, %v3951
      %v3963 = vadd.f32 %v3936, %v3955
      %v3964 = vadd.f32 %v3937, %v3951
      %v3965 = vadd.f32 %v3938, %v3955
      %v3966 = vadd.f32 %v3939, %v3951
      %v3967 = vadd.f32 %v3940, %v3955
      %v3968 = vadd.f32 %v3941, %v3951
      %v3969 = vadd.f32 %v3942, %v3955
      %v3970 = vadd.f32 %v3943, %v3951
      %v3971 = vadd.f32 %v3944, %v3955
      %3972 = vst [vmem:[#allocation4] sm:$0xff] %v3958
      %3973 = vst [vmem:[#allocation4 + $0x8] sm:$0xff] %v3959
      %3974 = vst [vmem:[#allocation4 + $0x10] sm:$0xff] %v3960
      %3975 = vst [vmem:[#allocation4 + $0x18] sm:$0xff] %v3961
      %3976 = vst [vmem:[#allocation4 + $0x20] sm:$0xff] %v3962
      %3977 = vst [vmem:[#allocation4 + $0x28] sm:$0xff] %v3963
      %3978 = vst [vmem:[#allocation4 + $0x30] sm:$0xff] %v3964
      %3979 = vst [vmem:[#allocation4 + $0x38] sm:$0xff] %v3965
      %3980 = vst [vmem:[#allocation4 + $0x40] sm:$0xff] %v3966
      %3981 = vst [vmem:[#allocation4 + $0x48] sm:$0xff] %v3967
      %3982 = vst [vmem:[#allocation4 + $0x50] sm:$0xff] %v3968
      %3983 = vst [vmem:[#allocation4 + $0x58] sm:$0xff] %v3969
      %3984 = vst [vmem:[#allocation4 + $0x60] sm:$0x3f] %v3970
      %3985 = vst [vmem:[#allocation4 + $0x68] sm:$0x3f] %v3971
      %v3986 = vld [vmem:[#allocation4] sm:$0xff]
      %v3987 = vld [vmem:[#allocation4 + $0x8] sm:$0xff]
      %v3988 = vld [vmem:[#allocation4 + $0x10] sm:$0xff]
      %v3989 = vld [vmem:[#allocation4 + $0x18] sm:$0xff]
      %v3990 = vld [vmem:[#allocation4 + $0x20] sm:$0xff]
      %v3991 = vld [vmem:[#allocation4 + $0x28] sm:$0xff]
      %v3992 = vld [vmem:[#allocation4 + $0x30] sm:$0xff]
      %v3993 = vld [vmem:[#allocation4 + $0x38] sm:$0xff]
      %v3994 = vld [vmem:[%s4] ss:$8 sm:$0x3]
      %v3996 = vlaneseq
      %v3997 = vshrl.u32 %v3996, 7
      %v3998 = vsub.s32 0, %v3997
      %v3999 = vrot.slane %v3994, %v3998
      %v4000 = vlaneseq
      %v4001 = vshrl.u32 %v4000, 7
      %v4002 = vsub.s32 1, %v4001
      %v4003 = vrot.slane %v3994, %v4002
      %v4006 = vmul.f32 %v3986, %v3999
      %v4007 = vmul.f32 %v3987, %v4003
      %v4008 = vmul.f32 %v3988, %v3999
      %v4009 = vmul.f32 %v3989, %v4003
      %v4010 = vmul.f32 %v3990, %v3999
      %v4011 = vmul.f32 %v3991, %v4003
      %v4012 = vmul.f32 %v3992, %v3999
      %v4013 = vmul.f32 %v3993, %v4003
      %v4014 = vadd.f32 %v4006, 0.0
      %v4015 = vadd.f32 %v4007, 0.0
      %v4016 = vadd.f32 %v4008, 0.0
      %v4017 = vadd.f32 %v4009, 0.0
      %v4018 = vadd.f32 %v4010, 0.0
      %v4019 = vadd.f32 %v4011, 0.0
      %v4020 = vadd.f32 %v4012, 0.0
      %v4021 = vadd.f32 %v4013, 0.0
      %v4022 = vld [vmem:[#allocation4] sm:$0xfe]
      %v4023 = vld [vmem:[#allocation4 + $0x8] sm:$0xfe]
      %v4024 = vld [vmem:[#allocation4 + $0x40] sm:$0x1f]
      %v4025 = vld [vmem:[#allocation4 + $0x48] sm:$0x1f]
      %s4026 = scalar_lea.vmem %s4, 1
      %v4027 = vld [vmem:[%s4026] ss:$8 sm:$0x3]
      %v4029 = vlaneseq
      %v4030 = vshrl.u32 %v4029, 7
      %v4031 = vsub.s32 0, %v4030
      %v4032 = vrot.slane %v4027, %v4031
      %v4033 = vlaneseq
      %v4034 = vshrl.u32 %v4033, 7
      %v4035 = vsub.s32 1, %v4034
      %v4036 = vrot.slane %v4027, %v4035
      %v4039 = vmul.f32 %v4022, %v4032
      %v4040 = vmul.f32 %v4023, %v4036
      %v4041 = vmul.f32 %v3988, %v4032
      %v4042 = vmul.f32 %v3989, %v4036
      %v4043 = vmul.f32 %v3990, %v4032
      %v4044 = vmul.f32 %v3991, %v4036
      %v4045 = vmul.f32 %v3992, %v4032
      %v4046 = vmul.f32 %v3993, %v4036
      %v4047 = vmul.f32 %v4024, %v4032
      %v4048 = vmul.f32 %v4025, %v4036
      %vm4059 = vcmask 1046528
      %v4060 = vrot.slane %v4039, 1
      %v4061 = vrot.slane %v4041, 1
      %v4062 = vsel %vm4059, %v4060, %v4061
      %v4063 = vrot.slane %v4040, 1
      %v4064 = vrot.slane %v4042, 1
      %v4065 = vsel %vm4059, %v4063, %v4064
      %v4066 = vrot.slane %v4043, 1
      %v4067 = vsel %vm4059, %v4061, %v4066
      %v4068 = vrot.slane %v4044, 1
      %v4069 = vsel %vm4059, %v4064, %v4068
      %v4070 = vrot.slane %v4045, 1
      %v4071 = vsel %vm4059, %v4066, %v4070
      %v4072 = vrot.slane %v4046, 1
      %v4073 = vsel %vm4059, %v4068, %v4072
      %v4074 = vrot.slane %v4047, 1
      %v4075 = vsel %vm4059, %v4070, %v4074
      %v4076 = vrot.slane %v4048, 1
      %v4077 = vsel %vm4059, %v4072, %v4076
      %v4086 = vadd.f32 %v4014, %v4062
      %v4087 = vadd.f32 %v4015, %v4065
      %v4088 = vadd.f32 %v4016, %v4067
      %v4089 = vadd.f32 %v4017, %v4069
      %v4090 = vadd.f32 %v4018, %v4071
      %v4091 = vadd.f32 %v4019, %v4073
      %v4092 = vadd.f32 %v4020, %v4075
      %v4093 = vadd.f32 %v4021, %v4077
      %v4094 = vld [vmem:[#allocation4] sm:$0xfc]
      %v4095 = vld [vmem:[#allocation4 + $0x8] sm:$0xfc]
      %v4096 = vld [vmem:[#allocation4 + $0x40] sm:$0x3f]
      %v4097 = vld [vmem:[#allocation4 + $0x48] sm:$0x3f]
      %s4098 = scalar_lea.vmem %s4, 2
      %v4099 = vld [vmem:[%s4098] ss:$8 sm:$0x3]
      %v4101 = vlaneseq
      %v4102 = vshrl.u32 %v4101, 7
      %v4103 = vsub.s32 0, %v4102
      %v4104 = vrot.slane %v4099, %v4103
      %v4105 = vlaneseq
      %v4106 = vshrl.u32 %v4105, 7
      %v4107 = vsub.s32 1, %v4106
      %v4108 = vrot.slane %v4099, %v4107
      %v4111 = vmul.f32 %v4094, %v4104
      %v4112 = vmul.f32 %v4095, %v4108
      %v4113 = vmul.f32 %v3988, %v4104
      %v4114 = vmul.f32 %v3989, %v4108
      %v4115 = vmul.f32 %v3990, %v4104
      %v4116 = vmul.f32 %v3991, %v4108
      %v4117 = vmul.f32 %v3992, %v4104
      %v4118 = vmul.f32 %v3993, %v4108
      %v4119 = vmul.f32 %v4096, %v4104
      %v4120 = vmul.f32 %v4097, %v4108
      %vm4131 = vcmask 1045504
      %v4132 = vrot.slane %v4111, 2
      %v4133 = vrot.slane %v4113, 2
      %v4134 = vsel %vm4131, %v4132, %v4133
      %v4135 = vrot.slane %v4112, 2
      %v4136 = vrot.slane %v4114, 2
      %v4137 = vsel %vm4131, %v4135, %v4136
      %v4138 = vrot.slane %v4115, 2
      %v4139 = vsel %vm4131, %v4133, %v4138
      %v4140 = vrot.slane %v4116, 2
      %v4141 = vsel %vm4131, %v4136, %v4140
      %v4142 = vrot.slane %v4117, 2
      %v4143 = vsel %vm4131, %v4138, %v4142
      %v4144 = vrot.slane %v4118, 2
      %v4145 = vsel %vm4131, %v4140, %v4144
      %v4146 = vrot.slane %v4119, 2
      %v4147 = vsel %vm4131, %v4142, %v4146
      %v4148 = vrot.slane %v4120, 2
      %v4149 = vsel %vm4131, %v4144, %v4148
      %v4158 = vadd.f32 %v4086, %v4134
      %v4159 = vadd.f32 %v4087, %v4137
      %v4160 = vadd.f32 %v4088, %v4139
      %v4161 = vadd.f32 %v4089, %v4141
      %v4162 = vadd.f32 %v4090, %v4143
      %v4163 = vadd.f32 %v4091, %v4145
      %v4164 = vadd.f32 %v4092, %v4147
      %v4165 = vadd.f32 %v4093, %v4149
      %v4166 = vld [vmem:[#allocation4 + $0x10] sm:$0xfe]
      %v4167 = vld [vmem:[#allocation4 + $0x18] sm:$0xfe]
      %v4168 = vld [vmem:[#allocation4 + $0x40] sm:$0xff]
      %v4169 = vld [vmem:[#allocation4 + $0x48] sm:$0xff]
      %v4170 = vld [vmem:[#allocation4 + $0x50] sm:$0x1f]
      %v4171 = vld [vmem:[#allocation4 + $0x58] sm:$0x1f]
      %s4172 = scalar_lea.vmem %s4, 3
      %v4173 = vld [vmem:[%s4172] ss:$8 sm:$0x3]
      %v4175 = vlaneseq
      %v4176 = vshrl.u32 %v4175, 7
      %v4177 = vsub.s32 0, %v4176
      %v4178 = vrot.slane %v4173, %v4177
      %v4179 = vlaneseq
      %v4180 = vshrl.u32 %v4179, 7
      %v4181 = vsub.s32 1, %v4180
      %v4182 = vrot.slane %v4173, %v4181
      %v4185 = vmul.f32 %v4166, %v4178
      %v4186 = vmul.f32 %v4167, %v4182
      %v4187 = vmul.f32 %v3990, %v4178
      %v4188 = vmul.f32 %v3991, %v4182
      %v4189 = vmul.f32 %v3992, %v4178
      %v4190 = vmul.f32 %v3993, %v4182
      %v4191 = vmul.f32 %v4168, %v4178
      %v4192 = vmul.f32 %v4169, %v4182
      %v4193 = vmul.f32 %v4170, %v4178
      %v4194 = vmul.f32 %v4171, %v4182
      %v4205 = vrot.slane %v4185, 1
      %v4206 = vrot.slane %v4187, 1
      %v4207 = vsel %vm4059, %v4205, %v4206
      %v4208 = vrot.slane %v4186, 1
      %v4209 = vrot.slane %v4188, 1
      %v4210 = vsel %vm4059, %v4208, %v4209
      %v4211 = vrot.slane %v4189, 1
      %v4212 = vsel %vm4059, %v4206, %v4211
      %v4213 = vrot.slane %v4190, 1
      %v4214 = vsel %vm4059, %v4209, %v4213
      %v4215 = vrot.slane %v4191, 1
      %v4216 = vsel %vm4059, %v4211, %v4215
      %v4217 = vrot.slane %v4192, 1
      %v4218 = vsel %vm4059, %v4213, %v4217
      %v4219 = vrot.slane %v4193, 1
      %v4220 = vsel %vm4059, %v4215, %v4219
      %v4221 = vrot.slane %v4194, 1
      %v4222 = vsel %vm4059, %v4217, %v4221
      %v4231 = vadd.f32 %v4158, %v4207
      %v4232 = vadd.f32 %v4159, %v4210
      %v4233 = vadd.f32 %v4160, %v4212
      %v4234 = vadd.f32 %v4161, %v4214
      %v4235 = vadd.f32 %v4162, %v4216
      %v4236 = vadd.f32 %v4163, %v4218
      %v4237 = vadd.f32 %v4164, %v4220
      %v4238 = vadd.f32 %v4165, %v4222
      %v4239 = vld [vmem:[#allocation4 + $0x10] sm:$0xfc]
      %v4240 = vld [vmem:[#allocation4 + $0x18] sm:$0xfc]
      %v4241 = vld [vmem:[#allocation4 + $0x50] sm:$0x3f]
      %v4242 = vld [vmem:[#allocation4 + $0x58] sm:$0x3f]
      %s4243 = scalar_lea.vmem %s4, 4
      %v4244 = vld [vmem:[%s4243] ss:$8 sm:$0x3]
      %v4246 = vlaneseq
      %v4247 = vshrl.u32 %v4246, 7
      %v4248 = vsub.s32 0, %v4247
      %v4249 = vrot.slane %v4244, %v4248
      %v4250 = vlaneseq
      %v4251 = vshrl.u32 %v4250, 7
      %v4252 = vsub.s32 1, %v4251
      %v4253 = vrot.slane %v4244, %v4252
      %v4256 = vmul.f32 %v4239, %v4249
      %v4257 = vmul.f32 %v4240, %v4253
      %v4258 = vmul.f32 %v3990, %v4249
      %v4259 = vmul.f32 %v3991, %v4253
      %v4260 = vmul.f32 %v3992, %v4249
      %v4261 = vmul.f32 %v3993, %v4253
      %v4262 = vmul.f32 %v4168, %v4249
      %v4263 = vmul.f32 %v4169, %v4253
      %v4264 = vmul.f32 %v4241, %v4249
      %v4265 = vmul.f32 %v4242, %v4253
      %v4276 = vrot.slane %v4256, 2
      %v4277 = vrot.slane %v4258, 2
      %v4278 = vsel %vm4131, %v4276, %v4277
      %v4279 = vrot.slane %v4257, 2
      %v4280 = vrot.slane %v4259, 2
      %v4281 = vsel %vm4131, %v4279, %v4280
      %v4282 = vrot.slane %v4260, 2
      %v4283 = vsel %vm4131, %v4277, %v4282
      %v4284 = vrot.slane %v4261, 2
      %v4285 = vsel %vm4131, %v4280, %v4284
      %v4286 = vrot.slane %v4262, 2
      %v4287 = vsel %vm4131, %v4282, %v4286
      %v4288 = vrot.slane %v4263, 2
      %v4289 = vsel %vm4131, %v4284, %v4288
      %v4290 = vrot.slane %v4264, 2
      %v4291 = vsel %vm4131, %v4286, %v4290
      %v4292 = vrot.slane %v4265, 2
      %v4293 = vsel %vm4131, %v4288, %v4292
      %v4302 = vadd.f32 %v4231, %v4278
      %v4303 = vadd.f32 %v4232, %v4281
      %v4304 = vadd.f32 %v4233, %v4283
      %v4305 = vadd.f32 %v4234, %v4285
      %v4306 = vadd.f32 %v4235, %v4287
      %v4307 = vadd.f32 %v4236, %v4289
      %v4308 = vadd.f32 %v4237, %v4291
      %v4309 = vadd.f32 %v4238, %v4293
      %v4310 = vld [vmem:[#allocation4 + $0x10] sm:$0xf8]
      %v4311 = vld [vmem:[#allocation4 + $0x18] sm:$0xf8]
      %v4312 = vld [vmem:[#allocation4 + $0x50] sm:$0x7f]
      %v4313 = vld [vmem:[#allocation4 + $0x58] sm:$0x7f]
      %s4314 = scalar_lea.vmem %s4, 5
      %v4315 = vld [vmem:[%s4314] ss:$8 sm:$0x3]
      %v4317 = vlaneseq
      %v4318 = vshrl.u32 %v4317, 7
      %v4319 = vsub.s32 0, %v4318
      %v4320 = vrot.slane %v4315, %v4319
      %v4321 = vlaneseq
      %v4322 = vshrl.u32 %v4321, 7
      %v4323 = vsub.s32 1, %v4322
      %v4324 = vrot.slane %v4315, %v4323
      %v4327 = vmul.f32 %v4310, %v4320
      %v4328 = vmul.f32 %v4311, %v4324
      %v4329 = vmul.f32 %v3990, %v4320
      %v4330 = vmul.f32 %v3991, %v4324
      %v4331 = vmul.f32 %v3992, %v4320
      %v4332 = vmul.f32 %v3993, %v4324
      %v4333 = vmul.f32 %v4168, %v4320
      %v4334 = vmul.f32 %v4169, %v4324
      %v4335 = vmul.f32 %v4312, %v4320
      %v4336 = vmul.f32 %v4313, %v4324
      %vm4347 = vcmask 1044480
      %v4348 = vrot.slane %v4327, 3
      %v4349 = vrot.slane %v4329, 3
      %v4350 = vsel %vm4347, %v4348, %v4349
      %v4351 = vrot.slane %v4328, 3
      %v4352 = vrot.slane %v4330, 3
      %v4353 = vsel %vm4347, %v4351, %v4352
      %v4354 = vrot.slane %v4331, 3
      %v4355 = vsel %vm4347, %v4349, %v4354
      %v4356 = vrot.slane %v4332, 3
      %v4357 = vsel %vm4347, %v4352, %v4356
      %v4358 = vrot.slane %v4333, 3
      %v4359 = vsel %vm4347, %v4354, %v4358
      %v4360 = vrot.slane %v4334, 3
      %v4361 = vsel %vm4347, %v4356, %v4360
      %v4362 = vrot.slane %v4335, 3
      %v4363 = vsel %vm4347, %v4358, %v4362
      %v4364 = vrot.slane %v4336, 3
      %v4365 = vsel %vm4347, %v4360, %v4364
      %v4374 = vadd.f32 %v4302, %v4350
      %v4375 = vadd.f32 %v4303, %v4353
      %v4376 = vadd.f32 %v4304, %v4355
      %v4377 = vadd.f32 %v4305, %v4357
      %v4378 = vadd.f32 %v4306, %v4359
      %v4379 = vadd.f32 %v4307, %v4361
      %v4380 = vadd.f32 %v4308, %v4363
      %v4381 = vadd.f32 %v4309, %v4365
      %v4382 = vld [vmem:[#allocation4 + $0x20] sm:$0xfc]
      %v4383 = vld [vmem:[#allocation4 + $0x28] sm:$0xfc]
      %v4384 = vld [vmem:[#allocation4 + $0x30] sm:$0xff]
      %v4385 = vld [vmem:[#allocation4 + $0x38] sm:$0xff]
      %v4386 = vld [vmem:[#allocation4 + $0x40] sm:$0xff]
      %v4387 = vld [vmem:[#allocation4 + $0x48] sm:$0xff]
      %v4388 = vld [vmem:[#allocation4 + $0x50] sm:$0xff]
      %v4389 = vld [vmem:[#allocation4 + $0x58] sm:$0xff]
      %v4390 = vld [vmem:[#allocation4 + $0x60] sm:$0x3f]
      %v4391 = vld [vmem:[#allocation4 + $0x68] sm:$0x3f]
      %s4392 = scalar_lea.vmem %s4, 6
      %v4393 = vld [vmem:[%s4392] ss:$8 sm:$0x3]
      %v4395 = vlaneseq
      %v4396 = vshrl.u32 %v4395, 7
      %v4397 = vsub.s32 0, %v4396
      %v4398 = vrot.slane %v4393, %v4397
      %v4399 = vlaneseq
      %v4400 = vshrl.u32 %v4399, 7
      %v4401 = vsub.s32 1, %v4400
      %v4402 = vrot.slane %v4393, %v4401
      %v4405 = vmul.f32 %v4382, %v4398
      %v4406 = vmul.f32 %v4383, %v4402
      %v4407 = vmul.f32 %v4384, %v4398
      %v4408 = vmul.f32 %v4385, %v4402
      %v4409 = vmul.f32 %v4386, %v4398
      %v4410 = vmul.f32 %v4387, %v4402
      %v4411 = vmul.f32 %v4388, %v4398
      %v4412 = vmul.f32 %v4389, %v4402
      %v4413 = vmul.f32 %v4390, %v4398
      %v4414 = vmul.f32 %v4391, %v4402
      %v4425 = vrot.slane %v4405, 2
      %v4426 = vrot.slane %v4407, 2
      %v4427 = vsel %vm4131, %v4425, %v4426
      %v4428 = vrot.slane %v4406, 2
      %v4429 = vrot.slane %v4408, 2
      %v4430 = vsel %vm4131, %v4428, %v4429
      %v4431 = vrot.slane %v4409, 2
      %v4432 = vsel %vm4131, %v4426, %v4431
      %v4433 = vrot.slane %v4410, 2
      %v4434 = vsel %vm4131, %v4429, %v4433
      %v4435 = vrot.slane %v4411, 2
      %v4436 = vsel %vm4131, %v4431, %v4435
      %v4437 = vrot.slane %v4412, 2
      %v4438 = vsel %vm4131, %v4433, %v4437
      %v4439 = vrot.slane %v4413, 2
      %v4440 = vsel %vm4131, %v4435, %v4439
      %v4441 = vrot.slane %v4414, 2
      %v4442 = vsel %vm4131, %v4437, %v4441
      %v4451 = vadd.f32 %v4374, %v4427
      %v4452 = vadd.f32 %v4375, %v4430
      %v4453 = vadd.f32 %v4376, %v4432
      %v4454 = vadd.f32 %v4377, %v4434
      %v4455 = vadd.f32 %v4378, %v4436
      %v4456 = vadd.f32 %v4379, %v4438
      %v4457 = vadd.f32 %v4380, %v4440
      %v4458 = vadd.f32 %v4381, %v4442
      %v4459 = vld [vmem:[#allocation4 + $0x20] sm:$0xf8]
      %v4460 = vld [vmem:[#allocation4 + $0x28] sm:$0xf8]
      %v4461 = vld [vmem:[#allocation4 + $0x60] sm:$0x7f]
      %v4462 = vld [vmem:[#allocation4 + $0x68] sm:$0x7f]
      %s4463 = scalar_lea.vmem %s4, 7
      %v4464 = vld [vmem:[%s4463] ss:$8 sm:$0x3]
      %v4466 = vlaneseq
      %v4467 = vshrl.u32 %v4466, 7
      %v4468 = vsub.s32 0, %v4467
      %v4469 = vrot.slane %v4464, %v4468
      %v4470 = vlaneseq
      %v4471 = vshrl.u32 %v4470, 7
      %v4472 = vsub.s32 1, %v4471
      %v4473 = vrot.slane %v4464, %v4472
      %v4476 = vmul.f32 %v4459, %v4469
      %v4477 = vmul.f32 %v4460, %v4473
      %v4478 = vmul.f32 %v4384, %v4469
      %v4479 = vmul.f32 %v4385, %v4473
      %v4480 = vmul.f32 %v4386, %v4469
      %v4481 = vmul.f32 %v4387, %v4473
      %v4482 = vmul.f32 %v4388, %v4469
      %v4483 = vmul.f32 %v4389, %v4473
      %v4484 = vmul.f32 %v4461, %v4469
      %v4485 = vmul.f32 %v4462, %v4473
      %v4496 = vrot.slane %v4476, 3
      %v4497 = vrot.slane %v4478, 3
      %v4498 = vsel %vm4347, %v4496, %v4497
      %v4499 = vrot.slane %v4477, 3
      %v4500 = vrot.slane %v4479, 3
      %v4501 = vsel %vm4347, %v4499, %v4500
      %v4502 = vrot.slane %v4480, 3
      %v4503 = vsel %vm4347, %v4497, %v4502
      %v4504 = vrot.slane %v4481, 3
      %v4505 = vsel %vm4347, %v4500, %v4504
      %v4506 = vrot.slane %v4482, 3
      %v4507 = vsel %vm4347, %v4502, %v4506
      %v4508 = vrot.slane %v4483, 3
      %v4509 = vsel %vm4347, %v4504, %v4508
      %v4510 = vrot.slane %v4484, 3
      %v4511 = vsel %vm4347, %v4506, %v4510
      %v4512 = vrot.slane %v4485, 3
      %v4513 = vsel %vm4347, %v4508, %v4512
      %v4522 = vadd.f32 %v4451, %v4498
      %v4523 = vadd.f32 %v4452, %v4501
      %v4524 = vadd.f32 %v4453, %v4503
      %v4525 = vadd.f32 %v4454, %v4505
      %v4526 = vadd.f32 %v4455, %v4507
      %v4527 = vadd.f32 %v4456, %v4509
      %v4528 = vadd.f32 %v4457, %v4511
      %v4529 = vadd.f32 %v4458, %v4513
      %v4530 = vld [vmem:[#allocation4 + $0x20] sm:$0xf0]
      %v4531 = vld [vmem:[#allocation4 + $0x28] sm:$0xf0]
      %v4532 = vld [vmem:[#allocation4 + $0x60] sm:$0xff]
      %v4533 = vld [vmem:[#allocation4 + $0x68] sm:$0xff]
      %s4534 = scalar_lea.vmem %s4, 16
      %v4535 = vld [vmem:[%s4534] ss:$8 sm:$0x3]
      %v4537 = vlaneseq
      %v4538 = vshrl.u32 %v4537, 7
      %v4539 = vsub.s32 0, %v4538
      %v4540 = vrot.slane %v4535, %v4539
      %v4541 = vlaneseq
      %v4542 = vshrl.u32 %v4541, 7
      %v4543 = vsub.s32 1, %v4542
      %v4544 = vrot.slane %v4535, %v4543
      %v4547 = vmul.f32 %v4530, %v4540
      %v4548 = vmul.f32 %v4531, %v4544
      %v4549 = vmul.f32 %v4384, %v4540
      %v4550 = vmul.f32 %v4385, %v4544
      %v4551 = vmul.f32 %v4386, %v4540
      %v4552 = vmul.f32 %v4387, %v4544
      %v4553 = vmul.f32 %v4388, %v4540
      %v4554 = vmul.f32 %v4389, %v4544
      %v4555 = vmul.f32 %v4532, %v4540
      %v4556 = vmul.f32 %v4533, %v4544
      %vm4567 = vcmask 1043456
      %v4568 = vrot.slane %v4547, 4
      %v4569 = vrot.slane %v4549, 4
      %v4570 = vsel %vm4567, %v4568, %v4569
      %v4571 = vrot.slane %v4548, 4
      %v4572 = vrot.slane %v4550, 4
      %v4573 = vsel %vm4567, %v4571, %v4572
      %v4574 = vrot.slane %v4551, 4
      %v4575 = vsel %vm4567, %v4569, %v4574
      %v4576 = vrot.slane %v4552, 4
      %v4577 = vsel %vm4567, %v4572, %v4576
      %v4578 = vrot.slane %v4553, 4
      %v4579 = vsel %vm4567, %v4574, %v4578
      %v4580 = vrot.slane %v4554, 4
      %v4581 = vsel %vm4567, %v4576, %v4580
      %v4582 = vrot.slane %v4555, 4
      %v4583 = vsel %vm4567, %v4578, %v4582
      %v4584 = vrot.slane %v4556, 4
      %v4585 = vsel %vm4567, %v4580, %v4584
      %v4594 = vadd.f32 %v4522, %v4570
      %v4595 = vadd.f32 %v4523, %v4573
      %v4596 = vadd.f32 %v4524, %v4575
      %v4597 = vadd.f32 %v4525, %v4577
      %v4598 = vadd.f32 %v4526, %v4579
      %v4599 = vadd.f32 %v4527, %v4581
      %v4600 = vadd.f32 %v4528, %v4583
      %v4601 = vadd.f32 %v4529, %v4585
      %v4602 = vadd.f32 %v4594, %v4595
      %4603 = vadd.xlane.f32.xlu0 %v4602
      %v4604 = vpop.xlane.xlu0 %4603
      %v4605 = vadd.f32 %v4596, %v4597
      %4606 = vadd.xlane.f32.xlu0 %v4605
      %v4607 = vpop.xlane.xlu0 %4606
      %v4608 = vadd.f32 %v4598, %v4599
      %4609 = vadd.xlane.f32.xlu0 %v4608
      %v4610 = vpop.xlane.xlu0 %4609
      %v4611 = vadd.f32 %v4600, %v4601
      %4612 = vadd.xlane.f32.xlu0 %v4611
      %v4613 = vpop.xlane.xlu0 %4612
      %v4614 = vld [vmem:[%s5 + $0x7] ss:$0 sm:$0xff]
      %v4615 = vadd.f32 %v4604, %v4614
      %v4616 = vadd.f32 %v4607, %v4614
      %v4617 = vadd.f32 %v4610, %v4614
      %v4618 = vadd.f32 %v4613, %v4614
      %v4619 = vsub.f32 0.0, %v4615
      %v4620 = vsub.f32 0.0, %v4616
      %v4621 = vsub.f32 0.0, %v4617
      %v4622 = vsub.f32 0.0, %v4618
      %v4623 = vmul.f32 %v4619, 1.442695
      %v4624 = vpow.pop %v4623
      %v4625 = vmul.f32 %v4620, 1.442695
      %v4626 = vpow.pop %v4625
      %v4627 = vmul.f32 %v4621, 1.442695
      %v4628 = vpow.pop %v4627
      %v4629 = vmul.f32 %v4622, 1.442695
      %v4630 = vpow.pop %v4629
      %v4631 = vadd.f32 %v4624, 1.0
      %v4632 = vadd.f32 %v4626, 1.0
      %v4633 = vadd.f32 %v4628, 1.0
      %v4634 = vadd.f32 %v4630, 1.0
      %v4635 = vrcp.pop %v4631
      %v4636 = vrcp.pop %v4632
      %v4637 = vrcp.pop %v4633
      %v4638 = vrcp.pop %v4634
      %vm4639 = vcmask 3072
      %4640 = vst.msk [vmem:[%s251] sm:$0xf] %vm4639, %v4635
      %vm4641 = vcmask 4097
      %4642 = vst.msk [vmem:[%s251 + $0x3] sm:$0x1e] %vm4641, %v4636
      %vm4643 = vcmask 5122
      %4644 = vst.msk [vmem:[%s251 + $0x6] sm:$0x3c] %vm4643, %v4637
      %vm4645 = vcmask 6147
      %4646 = vst.msk [vmem:[%s251 + $0x9] sm:$0x78] %vm4645, %v4638
      %p4647 = scmp.lt.s32.totalorder %s17, 1
      %s4648 = scalar_select %p4647, %s17, 1
      %s4649 = smul.addr %s4648, 2
      %s4650 = smul.addr %s4649, 8
      %s4651 = scalar_lea.vmem %s6, %s4650
      // Predicated region
      $region45: #{discriminator_forward.1} parent=43 // pred_check
        %p4652 = pneg %p166
      $region46: #{discriminator_forward.1} parent=43 // pred_check_branch
        %4654 = sbr.rel (%p4652) target = $region48
      $region47: #{discriminator_forward.1} parent=43 // pred_region
        _
      $region48: #{discriminator_forward.1} parent=43 // pred_fallthru
        _
    $region44: #{discriminator_forward.1} parent=5 // pred_fallthru
      _
    %p4655 = scmp.le.s32.totalorder 2, %s12
    // Predicated region
    $region49: #{discriminator_forward.1} parent=5 // pred_check
      %p4656 = pneg %p4655
    $region50: #{discriminator_forward.1} parent=5 // pred_check_branch
      %4658 = sbr.rel (%p4656) target = $region52
    $region51: #{discriminator_forward.1} parent=5 // pred_region
      %s4659 = ssub.s32 %s12, 2
      // Predicated region
      $region53: #{discriminator_forward.1} parent=51 // pred_check
        %p4660 = pneg %p172
      $region54: #{discriminator_forward.1} parent=51 // pred_check_branch
        %4662 = sbr.rel (%p4660) target = $region56
      $region55: #{discriminator_forward.1} parent=51 // pred_region
        %p4663 = scmp.lt.s32.totalorder %s18, 1
        %s4664 = scalar_select %p4663, %s18, 1
        %s4665 = smul.addr %s4664, 2
        %s4666 = smul.addr %s4665, 8
        %s4667 = scalar_lea.vmem %s6, %s4666
      $region56: #{discriminator_forward.1} parent=51 // pred_fallthru
        _
    $region52: #{discriminator_forward.1} parent=5 // pred_fallthru
      _
  $region6: #{discriminator_forward.1} parent=0 // loop_footer
    %s16 = sadd.s32 1, %s12
  $region7: #{discriminator_forward.1} parent=0 // loop_footer_branch
    %11 = sbr.rel target = $region3
  $region8: #{discriminator_forward.1} parent=0 // loop_exit
    _

</llo_original>
